<compile_context>
chip_gen: v7x
topology: tpu7x:2x2x1
jax: 0.10.0
libtpu: 0.0.40
codegen_flags: <defaults>
</compile_context>

<pallas_src>
import functools

import jax
import jax.numpy as jnp
from jax.experimental import pallas as pl
from jax.experimental.pallas import tpu as pltpu

EPS = 1e-5


def _round_up(x, m):
    return (x + m - 1) // m * m


def _vmem_limit_bytes():
    # v7x has 64 MiB of VMEM per TensorCore; v5e/v6e have 128 MiB. Use half as
    # the scoped limit so the compiler keeps headroom on every generation.
    try:
        cap = pltpu.get_tpu_info().vmem_capacity_bytes
    except Exception:
        cap = 128 * 1024 * 1024
    return int(min(cap // 2, 64 * 1024 * 1024))


_VMEM_LIMIT = _vmem_limit_bytes()


def _conv_stats_kernel(x_ref, w_ref, y_ref, s_ref, ss_ref, *,
                       kh, kw, stride, ho, wo):
    """Phase 0: implicit-GEMM conv (single deep-K matmul) + per-image stats.

    x_ref : (Hp, Wp, C)   bf16  spatially padded NHWC input, one image
    w_ref : (Kpad, OCp)   bf16  im2col weight, K=KH*KW*C zero-padded to Kpad
    y_ref : (Ho*Wo, OCp)  bf16  bias-free conv output, flattened spatial
    s_ref : (1, OCp)      f32   sum_p y[p, :]
    ss_ref: (1, OCp)      f32   sum_p y[p, :]^2
    """
    c = x_ref.shape[-1]
    k = kh * kw * c
    kpad = w_ref.shape[0]

    # Build the (Ho*Wo, Kpad) im2col operand in VMEM from the KH*KW shifted
    # windows. Lane-concatenation is done in f32 (well-trodden path), then the
    # operand is cast to bf16 so the MXU runs native bf16 x bf16 -> f32.
    cols = []
    for i in range(kh):
        for j in range(kw):
            if stride == 1:
                win = x_ref[i:i + ho, j:j + wo, :]
            else:
                # TODO(synk): pre-split x into stride^2 phase planes in the
                # wrapper if stride>1 becomes hot (avoids strided sublane loads).
                win = x_ref[pl.ds(i, ho, stride=stride),
                            pl.ds(j, wo, stride=stride), :]
            cols.append(win.astype(jnp.float32).reshape(ho * wo, c))
    if kpad > k:
        cols.append(jnp.zeros((ho * wo, kpad - k), jnp.float32))
    x_col = jnp.concatenate(cols, axis=-1).astype(jnp.bfloat16)  # (Ho*Wo, Kpad)

    # Single MXU matmul; accumulation over K happens inside the MXU.
    acc = jnp.dot(x_col, w_ref[...], preferred_element_type=jnp.float32)

    y_ref[...] = acc.astype(y_ref.dtype)
    s_ref[...] = jnp.sum(acc, axis=0, keepdims=True)
    ss_ref[...] = jnp.sum(acc * acc, axis=0, keepdims=True)


def _bn_relu_nchw_kernel(y_ref, a_ref, b_ref, o_ref):
    """Phase 1: z = relu(y*a + b), emitted channel-major (final NCHW layout).

    y_ref : (Ho*Wo, OCp) bf16
    a_ref : (1, OCp)     f32   folded BN scale (gamma * rsqrt(var+eps))
    b_ref : (1, OCp)     f32   folded BN shift (beta - mean*a)
    o_ref : (OC, Ho*Wo)  f32   final output block, channel-major
    """
    oc = o_ref.shape[0]
    z = jnp.maximum(y_ref[...].astype(jnp.float32) * a_ref[...] + b_ref[...],
                    0.0)                      # (Ho*Wo, OCp) f32
    o_ref[...] = jnp.transpose(z)[:oc, :]     # (OC, Ho*Wo), drops OC padding


@functools.partial(jax.jit, static_argnames=("stride", "padding"))
def basic_conv_forward(x_nchw, weight, bias, gamma, beta, *, stride, padding):
    """Conv2d + BatchNorm2d (training batch stats) + ReLU.

    NOTE: the conv bias cancels exactly under training-mode BatchNorm (the
    batch mean absorbs it, variance is unchanged), so it is folded away
    analytically. Do NOT reuse this path with running (eval) statistics.
    """
    del bias
    n, c, h, w = x_nchw.shape
    oc, ic, kh, kw = weight.shape
    assert ic == c
    hp, wp = h + 2 * padding, w + 2 * padding
    ho = (hp - kh) // stride + 1
    wo = (wp - kw) // stride + 1
    ocp = _round_up(oc, 128)
    k = kh * kw * ic
    kpad = _round_up(k, 128)

    # NHWC, spatially padded, bf16 (native MXU operand, half the input DMA).
    x_nhwc = jnp.transpose(x_nchw, (0, 2, 3, 1))
    x_pad = jnp.pad(
        x_nhwc, ((0, 0), (padding, padding), (padding, padding), (0, 0))
    ).astype(jnp.bfloat16)

    # (OC, IC, KH, KW) -> (KH, KW, IC, OC) -> (K, OC); zero-pad K to Kpad and
    # OC to the 128-lane boundary so the in-kernel matmul is fully tile-aligned.
    w_mat = jnp.transpose(weight, (2, 3, 1, 0)).reshape(k, oc)
    w_mat = jnp.pad(w_mat, ((0, kpad - k), (0, ocp - oc))).astype(jnp.bfloat16)

    cparams = pltpu.CompilerParams(
        dimension_semantics=("parallel",),   # batch axis -> both TCs on v7x
        vmem_limit_bytes=_VMEM_LIMIT)

    conv_flops = 2 * n * ho * wo * kpad * ocp
    conv_bytes = (n * hp * wp * c * 2 + kpad * ocp * 2
                  + n * ho * wo * ocp * 2 + 2 * n * ocp * 4)
    y, psum, psumsq = pl.pallas_call(
        functools.partial(_conv_stats_kernel, kh=kh, kw=kw, stride=stride,
                          ho=ho, wo=wo),
        grid=(n,),
        in_specs=[
            pl.BlockSpec((None, hp, wp, c), lambda b: (b, 0, 0, 0)),
            pl.BlockSpec((kpad, ocp), lambda b: (0, 0)),
        ],
        out_specs=(
            pl.BlockSpec((None, ho * wo, ocp), lambda b: (b, 0, 0)),
            pl.BlockSpec((None, 1, ocp), lambda b: (b, 0, 0)),
            pl.BlockSpec((None, 1, ocp), lambda b: (b, 0, 0)),
        ),
        out_shape=(
            jax.ShapeDtypeStruct((n, ho * wo, ocp), jnp.bfloat16),
            jax.ShapeDtypeStruct((n, 1, ocp), jnp.float32),
            jax.ShapeDtypeStruct((n, 1, ocp), jnp.float32),
        ),
        compiler_params=cparams,
        cost_estimate=pl.CostEstimate(flops=conv_flops, transcendentals=0,
                                      bytes_accessed=conv_bytes),
    )(x_pad, w_mat)

    # Tiny per-channel reduction + BN fold (exact element count; padded
    # channels have zero sum/sumsq and are sliced away in phase 1).
    count = float(n * ho * wo)
    mean = jnp.sum(psum, axis=(0, 1)) / count
    # TODO(synk): E[y^2]-mean^2 is cancellation-prone if |mean| >> sigma; use a
    # shifted two-pass for production-scale activations.
    var = jnp.maximum(jnp.sum(psumsq, axis=(0, 1)) / count - mean * mean, 0.0)
    gamma_p = jnp.pad(gamma.astype(jnp.float32), (0, ocp - oc),
                      constant_values=1.0)
    beta_p = jnp.pad(beta.astype(jnp.float32), (0, ocp - oc))
    a_flat = gamma_p * jax.lax.rsqrt(var + EPS)
    b_flat = beta_p - mean * a_flat
    a_vec = a_flat.reshape(1, ocp)
    b_vec = b_flat.reshape(1, ocp)

    norm_flops = 3 * n * ho * wo * ocp
    norm_bytes = n * ho * wo * ocp * 2 + n * oc * ho * wo * 4 + 2 * ocp * 4
    out_flat = pl.pallas_call(
        _bn_relu_nchw_kernel,
        grid=(n,),
        in_specs=[
            pl.BlockSpec((None, ho * wo, ocp), lambda b: (b, 0, 0)),
            pl.BlockSpec((1, ocp), lambda b: (0, 0)),
            pl.BlockSpec((1, ocp), lambda b: (0, 0)),
        ],
        out_specs=pl.BlockSpec((None, oc, ho * wo), lambda b: (b, 0, 0)),
        out_shape=jax.ShapeDtypeStruct((n, oc, ho * wo), jnp.float32),
        compiler_params=cparams,
        cost_estimate=pl.CostEstimate(flops=norm_flops, transcendentals=0,
                                      bytes_accessed=norm_bytes),
    )(y, a_vec, b_vec)

    # Free metadata reshape: (N, OC, Ho*Wo) -> (N, OC, Ho, Wo).
    return out_flat.reshape(n, oc, ho, wo)


def _reference_forward(x_nchw, weight, bias, gamma, beta, *, stride, padding):
    y = jax.lax.conv_general_dilated(
        x_nchw.astype(jnp.float32), weight.astype(jnp.float32),
        window_strides=(stride, stride),
        padding=[(padding, padding), (padding, padding)],
        dimension_numbers=("NCHW", "OIHW", "NCHW"),
        precision=jax.lax.Precision.HIGHEST,
    ) + bias.reshape(1, -1, 1, 1)
    mean = jnp.mean(y, axis=(0, 2, 3), keepdims=True)
    var = jnp.mean((y - mean) ** 2, axis=(0, 2, 3), keepdims=True)
    y_hat = (y - mean) * jax.lax.rsqrt(var + EPS)
    z = y_hat * gamma.reshape(1, -1, 1, 1) + beta.reshape(1, -1, 1, 1)
    return jnp.maximum(z, 0.0)


if __name__ == "__main__":
    # Basic_Conv(in_channels=4, out_channels=8, kernel_size=3, stride=1, padding=1)
    N, C, H, W = 2, 4, 16, 16
    OC, KH, KW = 8, 3, 3
    STRIDE, PAD = 1, 1

    key = jax.random.PRNGKey(0)
    k_x, k_w, k_b, k_g, k_be = jax.random.split(key, 5)

    x = jax.random.normal(k_x, (N, C, H, W), dtype=jnp.float32)
    fan_in = C * KH * KW
    bound = 1.0 / (fan_in ** 0.5)
    conv_w = jax.random.uniform(k_w, (OC, C, KH, KW), jnp.float32, -bound, bound)
    conv_b = jax.random.uniform(k_b, (OC,), jnp.float32, -bound, bound)
    bn_gamma = 1.0 + 0.05 * jax.random.normal(k_g, (OC,), dtype=jnp.float32)
    bn_beta = 0.05 * jax.random.normal(k_be, (OC,), dtype=jnp.float32)

    out = basic_conv_forward(x, conv_w, conv_b, bn_gamma, bn_beta,
                             stride=STRIDE, padding=PAD)
    out = jax.block_until_ready(out)

    ref = _reference_forward(x, conv_w, conv_b, bn_gamma, bn_beta,
                             stride=STRIDE, padding=PAD)
    assert out.shape == (N, OC, H, W)
    # 2e-2 tolerance vs the full-f32 reference: the kernel intentionally uses
    # bf16 MXU operands and a bf16 intermediate y (f32 accumulation).
    assert jnp.allclose(out, ref, rtol=2e-2, atol=2e-2), "mismatch vs reference"

    print("KERNEL_OK")
</pallas_src>

<mosaic_0001>
module attributes {stable_mosaic.version = 11 : i64} {
  func.func @_conv_stats_kernel(%arg0: i32, %arg1: memref<1x18x18x4xbf16, #tpu.memory_space<vmem>>, %arg2: memref<128x128xbf16, #tpu.memory_space<vmem>>, %arg3: memref<1x256x128xbf16, #tpu.memory_space<vmem>>, %arg4: memref<1x1x128xf32, #tpu.memory_space<vmem>>, %arg5: memref<1x1x128xf32, #tpu.memory_space<vmem>>) attributes {dimension_semantics = [#tpu.dimension_semantics<parallel>], iteration_bounds = array<i64: 2>, scalar_prefetch = 0 : i64, scratch_operands = 0 : i64, tpu.core_type = #tpu.core_type<tc>, window_params = [{transform_indices = @transform_0, window_bounds = array<i64: 1, 18, 18, 4>}, {pipeline_mode = #tpu.pipeline_mode<synchronous>, transform_indices = @transform_1, window_bounds = array<i64: 128, 128>}, {transform_indices = @transform_2, window_bounds = array<i64: 1, 256, 128>}, {transform_indices = @transform_3, window_bounds = array<i64: 1, 1, 128>}, {transform_indices = @transform_4, window_bounds = array<i64: 1, 1, 128>}]} {
    %c0 = arith.constant 0 : index
    %c0_0 = arith.constant 0 : index
    %c0_1 = arith.constant 0 : index
    %c0_2 = arith.constant 0 : index
    %0 = vector.load %arg1[%c0, %c0_0, %c0_1, %c0_2] : memref<1x18x18x4xbf16, #tpu.memory_space<vmem>>, vector<1x16x16x4xbf16>
    %1 = vector.shape_cast %0 : vector<1x16x16x4xbf16> to vector<16x16x4xbf16>
    %2 = arith.extf %1 : vector<16x16x4xbf16> to vector<16x16x4xf32>
    %3 = vector.shape_cast %2 : vector<16x16x4xf32> to vector<256x4xf32>
    %c0_3 = arith.constant 0 : index
    %c0_4 = arith.constant 0 : index
    %c1 = arith.constant 1 : index
    %c0_5 = arith.constant 0 : index
    %4 = vector.load %arg1[%c0_3, %c0_4, %c1, %c0_5] : memref<1x18x18x4xbf16, #tpu.memory_space<vmem>>, vector<1x16x16x4xbf16>
    %5 = vector.shape_cast %4 : vector<1x16x16x4xbf16> to vector<16x16x4xbf16>
    %6 = arith.extf %5 : vector<16x16x4xbf16> to vector<16x16x4xf32>
    %7 = vector.shape_cast %6 : vector<16x16x4xf32> to vector<256x4xf32>
    %c0_6 = arith.constant 0 : index
    %c0_7 = arith.constant 0 : index
    %c2 = arith.constant 2 : index
    %c0_8 = arith.constant 0 : index
    %8 = vector.load %arg1[%c0_6, %c0_7, %c2, %c0_8] : memref<1x18x18x4xbf16, #tpu.memory_space<vmem>>, vector<1x16x16x4xbf16>
    %9 = vector.shape_cast %8 : vector<1x16x16x4xbf16> to vector<16x16x4xbf16>
    %10 = arith.extf %9 : vector<16x16x4xbf16> to vector<16x16x4xf32>
    %11 = vector.shape_cast %10 : vector<16x16x4xf32> to vector<256x4xf32>
    %c0_9 = arith.constant 0 : index
    %c1_10 = arith.constant 1 : index
    %c0_11 = arith.constant 0 : index
    %c0_12 = arith.constant 0 : index
    %12 = vector.load %arg1[%c0_9, %c1_10, %c0_11, %c0_12] : memref<1x18x18x4xbf16, #tpu.memory_space<vmem>>, vector<1x16x16x4xbf16>
    %13 = vector.shape_cast %12 : vector<1x16x16x4xbf16> to vector<16x16x4xbf16>
    %14 = arith.extf %13 : vector<16x16x4xbf16> to vector<16x16x4xf32>
    %15 = vector.shape_cast %14 : vector<16x16x4xf32> to vector<256x4xf32>
    %c0_13 = arith.constant 0 : index
    %c1_14 = arith.constant 1 : index
    %c1_15 = arith.constant 1 : index
    %c0_16 = arith.constant 0 : index
    %16 = vector.load %arg1[%c0_13, %c1_14, %c1_15, %c0_16] : memref<1x18x18x4xbf16, #tpu.memory_space<vmem>>, vector<1x16x16x4xbf16>
    %17 = vector.shape_cast %16 : vector<1x16x16x4xbf16> to vector<16x16x4xbf16>
    %18 = arith.extf %17 : vector<16x16x4xbf16> to vector<16x16x4xf32>
    %19 = vector.shape_cast %18 : vector<16x16x4xf32> to vector<256x4xf32>
    %c0_17 = arith.constant 0 : index
    %c1_18 = arith.constant 1 : index
    %c2_19 = arith.constant 2 : index
    %c0_20 = arith.constant 0 : index
    %20 = vector.load %arg1[%c0_17, %c1_18, %c2_19, %c0_20] : memref<1x18x18x4xbf16, #tpu.memory_space<vmem>>, vector<1x16x16x4xbf16>
    %21 = vector.shape_cast %20 : vector<1x16x16x4xbf16> to vector<16x16x4xbf16>
    %22 = arith.extf %21 : vector<16x16x4xbf16> to vector<16x16x4xf32>
    %23 = vector.shape_cast %22 : vector<16x16x4xf32> to vector<256x4xf32>
    %c0_21 = arith.constant 0 : index
    %c2_22 = arith.constant 2 : index
    %c0_23 = arith.constant 0 : index
    %c0_24 = arith.constant 0 : index
    %24 = vector.load %arg1[%c0_21, %c2_22, %c0_23, %c0_24] : memref<1x18x18x4xbf16, #tpu.memory_space<vmem>>, vector<1x16x16x4xbf16>
    %25 = vector.shape_cast %24 : vector<1x16x16x4xbf16> to vector<16x16x4xbf16>
    %26 = arith.extf %25 : vector<16x16x4xbf16> to vector<16x16x4xf32>
    %27 = vector.shape_cast %26 : vector<16x16x4xf32> to vector<256x4xf32>
    %c0_25 = arith.constant 0 : index
    %c2_26 = arith.constant 2 : index
    %c1_27 = arith.constant 1 : index
    %c0_28 = arith.constant 0 : index
    %28 = vector.load %arg1[%c0_25, %c2_26, %c1_27, %c0_28] : memref<1x18x18x4xbf16, #tpu.memory_space<vmem>>, vector<1x16x16x4xbf16>
    %29 = vector.shape_cast %28 : vector<1x16x16x4xbf16> to vector<16x16x4xbf16>
    %30 = arith.extf %29 : vector<16x16x4xbf16> to vector<16x16x4xf32>
    %31 = vector.shape_cast %30 : vector<16x16x4xf32> to vector<256x4xf32>
    %c0_29 = arith.constant 0 : index
    %c2_30 = arith.constant 2 : index
    %c2_31 = arith.constant 2 : index
    %c0_32 = arith.constant 0 : index
    %32 = vector.load %arg1[%c0_29, %c2_30, %c2_31, %c0_32] : memref<1x18x18x4xbf16, #tpu.memory_space<vmem>>, vector<1x16x16x4xbf16>
    %33 = vector.shape_cast %32 : vector<1x16x16x4xbf16> to vector<16x16x4xbf16>
    %34 = arith.extf %33 : vector<16x16x4xbf16> to vector<16x16x4xf32>
    %35 = vector.shape_cast %34 : vector<16x16x4xf32> to vector<256x4xf32>
    %cst = arith.constant 0.000000e+00 : f32
    %36 = vector.broadcast %cst : f32 to vector<256x92xf32>
    %37 = tpu.concatenate %3, %7, %11, %15, %19, %23, %27, %31, %35, %36 in 1 : vector<256x4xf32>, vector<256x4xf32>, vector<256x4xf32>, vector<256x4xf32>, vector<256x4xf32>, vector<256x4xf32>, vector<256x4xf32>, vector<256x4xf32>, vector<256x4xf32>, vector<256x92xf32> -> vector<256x128xf32>
    %38 = arith.truncf %37 : vector<256x128xf32> to vector<256x128xbf16>
    %c0_33 = arith.constant 0 : index
    %c0_34 = arith.constant 0 : index
    %39 = vector.load %arg2[%c0_33, %c0_34] : memref<128x128xbf16, #tpu.memory_space<vmem>>, vector<128x128xbf16>
    %cst_35 = arith.constant dense<0.000000e+00> : vector<256x128xf32>
    %40 = tpu.matmul %38, %39, %cst_35 {dimension_numbers = #tpu.dot_dimension_numbers<[1], [0], [0], [1], [0, 0, 1, 1], [], []>} : vector<256x128xbf16>, vector<128x128xbf16>, vector<256x128xf32> -> vector<256x128xf32>
    %41 = arith.truncf %40 : vector<256x128xf32> to vector<256x128xbf16>
    %c0_36 = arith.constant 0 : index
    %c0_37 = arith.constant 0 : index
    %c0_38 = arith.constant 0 : index
    %42 = vector.load %arg3[%c0_36, %c0_37, %c0_38] : memref<1x256x128xbf16, #tpu.memory_space<vmem>>, vector<1x256x128xbf16>
    %43 = vector.shape_cast %42 : vector<1x256x128xbf16> to vector<256x128xbf16>
    %44 = vector.shape_cast %41 : vector<256x128xbf16> to vector<1x256x128xbf16>
    tpu.vector_store %arg3[%c0_36, %c0_37, %c0_38], %44 {strides = array<i32>} : memref<1x256x128xbf16, #tpu.memory_space<vmem>>, vector<1x256x128xbf16>,
    %cst_39 = arith.constant dense<0.000000e+00> : vector<128xf32>
    %45 = vector.multi_reduction <add>, %40, %cst_39 [0] : vector<256x128xf32> to vector<128xf32>
    %46 = vector.shape_cast %45 : vector<128xf32> to vector<1x128xf32>
    %c0_40 = arith.constant 0 : index
    %c0_41 = arith.constant 0 : index
    %c0_42 = arith.constant 0 : index
    %47 = vector.load %arg4[%c0_40, %c0_41, %c0_42] : memref<1x1x128xf32, #tpu.memory_space<vmem>>, vector<1x1x128xf32>
    %48 = vector.shape_cast %47 : vector<1x1x128xf32> to vector<1x128xf32>
    %49 = vector.shape_cast %46 : vector<1x128xf32> to vector<1x1x128xf32>
    tpu.vector_store %arg4[%c0_40, %c0_41, %c0_42], %49 {strides = array<i32>} : memref<1x1x128xf32, #tpu.memory_space<vmem>>, vector<1x1x128xf32>,
    %50 = arith.mulf %40, %40 : vector<256x128xf32>
    %cst_43 = arith.constant dense<0.000000e+00> : vector<128xf32>
    %51 = vector.multi_reduction <add>, %50, %cst_43 [0] : vector<256x128xf32> to vector<128xf32>
    %52 = vector.shape_cast %51 : vector<128xf32> to vector<1x128xf32>
    %c0_44 = arith.constant 0 : index
    %c0_45 = arith.constant 0 : index
    %c0_46 = arith.constant 0 : index
    %53 = vector.load %arg5[%c0_44, %c0_45, %c0_46] : memref<1x1x128xf32, #tpu.memory_space<vmem>>, vector<1x1x128xf32>
    %54 = vector.shape_cast %53 : vector<1x1x128xf32> to vector<1x128xf32>
    %55 = vector.shape_cast %52 : vector<1x128xf32> to vector<1x1x128xf32>
    tpu.vector_store %arg5[%c0_44, %c0_45, %c0_46], %55 {strides = array<i32>} : memref<1x1x128xf32, #tpu.memory_space<vmem>>, vector<1x1x128xf32>,
    return
  }
  func.func @transform_0(%arg0: i32) -> (i32, i32, i32, i32) {
    %c0_i32 = arith.constant 0 : i32
    %c0_i32_0 = arith.constant 0 : i32
    %c0_i32_1 = arith.constant 0 : i32
    %c0_i32_2 = arith.constant 0 : i32
    return %arg0, %c0_i32, %c0_i32_0, %c0_i32_1 : i32, i32, i32, i32
  }
  func.func @transform_1(%arg0: i32) -> (i32, i32) {
    %c0_i32 = arith.constant 0 : i32
    %c0_i32_0 = arith.constant 0 : i32
    %c0_i32_1 = arith.constant 0 : i32
    return %c0_i32, %c0_i32_0 : i32, i32
  }
  func.func @transform_2(%arg0: i32) -> (i32, i32, i32) {
    %c0_i32 = arith.constant 0 : i32
    %c0_i32_0 = arith.constant 0 : i32
    %c0_i32_1 = arith.constant 0 : i32
    return %arg0, %c0_i32, %c0_i32_0 : i32, i32, i32
  }
  func.func @transform_3(%arg0: i32) -> (i32, i32, i32) {
    %c0_i32 = arith.constant 0 : i32
    %c0_i32_0 = arith.constant 0 : i32
    %c0_i32_1 = arith.constant 0 : i32
    return %arg0, %c0_i32, %c0_i32_0 : i32, i32, i32
  }
  func.func @transform_4(%arg0: i32) -> (i32, i32, i32) {
    %c0_i32 = arith.constant 0 : i32
    %c0_i32_0 = arith.constant 0 : i32
    %c0_i32_1 = arith.constant 0 : i32
    return %arg0, %c0_i32, %c0_i32_0 : i32, i32, i32
  }
}

module attributes {stable_mosaic.version = 11 : i64} {
  func.func @_bn_relu_nchw_kernel(%arg0: i32, %arg1: memref<1x256x128xbf16, #tpu.memory_space<vmem>>, %arg2: memref<1x128xf32, #tpu.memory_space<vmem>>, %arg3: memref<1x128xf32, #tpu.memory_space<vmem>>, %arg4: memref<1x8x256xf32, #tpu.memory_space<vmem>>) attributes {dimension_semantics = [#tpu.dimension_semantics<parallel>], iteration_bounds = array<i64: 2>, scalar_prefetch = 0 : i64, scratch_operands = 0 : i64, tpu.core_type = #tpu.core_type<tc>, window_params = [{transform_indices = @transform_0, window_bounds = array<i64: 1, 256, 128>}, {pipeline_mode = #tpu.pipeline_mode<synchronous>, transform_indices = @transform_1, window_bounds = array<i64: 1, 128>}, {pipeline_mode = #tpu.pipeline_mode<synchronous>, transform_indices = @transform_2, window_bounds = array<i64: 1, 128>}, {transform_indices = @transform_3, window_bounds = array<i64: 1, 8, 256>}]} {
    %c0 = arith.constant 0 : index
    %c0_0 = arith.constant 0 : index
    %c0_1 = arith.constant 0 : index
    %0 = vector.load %arg1[%c0, %c0_0, %c0_1] : memref<1x256x128xbf16, #tpu.memory_space<vmem>>, vector<1x256x128xbf16>
    %1 = vector.shape_cast %0 : vector<1x256x128xbf16> to vector<256x128xbf16>
    %2 = arith.extf %1 : vector<256x128xbf16> to vector<256x128xf32>
    %c0_2 = arith.constant 0 : index
    %c0_3 = arith.constant 0 : index
    %3 = vector.load %arg2[%c0_2, %c0_3] : memref<1x128xf32, #tpu.memory_space<vmem>>, vector<1x128xf32>
    %4 = vector.broadcast %3 : vector<1x128xf32> to vector<256x128xf32>
    %5 = arith.mulf %2, %4 : vector<256x128xf32>
    %c0_4 = arith.constant 0 : index
    %c0_5 = arith.constant 0 : index
    %6 = vector.load %arg3[%c0_4, %c0_5] : memref<1x128xf32, #tpu.memory_space<vmem>>, vector<1x128xf32>
    %7 = vector.broadcast %6 : vector<1x128xf32> to vector<256x128xf32>
    %8 = arith.addf %5, %7 : vector<256x128xf32>
    %cst = arith.constant 0.000000e+00 : f32
    %9 = vector.broadcast %cst : f32 to vector<256x128xf32>
    %10 = arith.maximumf %8, %9 : vector<256x128xf32>
    %11 = tpu.transpose %10, [1, 0] : vector<256x128xf32> -> vector<128x256xf32>
    %12 = vector.extract_strided_slice %11 {offsets = [0, 0], sizes = [8, 256], strides = [1, 1]} : vector<128x256xf32> to vector<8x256xf32>
    %c0_6 = arith.constant 0 : index
    %c0_7 = arith.constant 0 : index
    %c0_8 = arith.constant 0 : index
    %13 = vector.load %arg4[%c0_6, %c0_7, %c0_8] : memref<1x8x256xf32, #tpu.memory_space<vmem>>, vector<1x8x256xf32>
    %14 = vector.shape_cast %13 : vector<1x8x256xf32> to vector<8x256xf32>
    %15 = vector.shape_cast %12 : vector<8x256xf32> to vector<1x8x256xf32>
    tpu.vector_store %arg4[%c0_6, %c0_7, %c0_8], %15 {strides = array<i32>} : memref<1x8x256xf32, #tpu.memory_space<vmem>>, vector<1x8x256xf32>,
    return
  }
  func.func @transform_0(%arg0: i32) -> (i32, i32, i32) {
    %c0_i32 = arith.constant 0 : i32
    %c0_i32_0 = arith.constant 0 : i32
    %c0_i32_1 = arith.constant 0 : i32
    return %arg0, %c0_i32, %c0_i32_0 : i32, i32, i32
  }
  func.func @transform_1(%arg0: i32) -> (i32, i32) {
    %c0_i32 = arith.constant 0 : i32
    %c0_i32_0 = arith.constant 0 : i32
    %c0_i32_1 = arith.constant 0 : i32
    return %c0_i32, %c0_i32_0 : i32, i32
  }
  func.func @transform_2(%arg0: i32) -> (i32, i32) {
    %c0_i32 = arith.constant 0 : i32
    %c0_i32_0 = arith.constant 0 : i32
    %c0_i32_1 = arith.constant 0 : i32
    return %c0_i32, %c0_i32_0 : i32, i32
  }
  func.func @transform_3(%arg0: i32) -> (i32, i32, i32) {
    %c0_i32 = arith.constant 0 : i32
    %c0_i32_0 = arith.constant 0 : i32
    %c0_i32_1 = arith.constant 0 : i32
    return %arg0, %c0_i32, %c0_i32_0 : i32, i32, i32
  }
}

</mosaic_0001>

<llo_original>
// kernel: basic_conv_forward.3
$region0: #{basic_conv_forward.3}
  #allocation0 [shape = 'u32[]', space=smem, size = 0x4, offset = 0x4, fixed_abs, tag = 'smem constant byte address 0x4 - core index']
  #allocation1 [shape = 'u32[144,128]{1,0:T(1,128)}', space=vmem, size = 0x12000, scoped, tag = 'internal scratch']
  %s0 = inlined_call_operand.hbm [shape: bf16[2,256,128], index: 0, kind: input, shape index: {}]
  %s1 = inlined_call_operand.hbm [shape: f32[1,128], index: 1, kind: input, shape index: {}]
  %s2 = inlined_call_operand.hbm [shape: f32[1,128], index: 2, kind: input, shape index: {}]
  %s3 = inlined_call_operand.hbm [shape: f32[2,8,256], index: 3, kind: output, shape index: {}]
  %s4 = sld [smem:[#allocation0]]
  $region57: #{basic_conv_forward.3} parent=0
    _
  %s6 = ssub.s32 1, %s4
  %s7 = scalar_select 0, %s6, %s4
  $region1: #{basic_conv_forward.3} parent=0
    #allocation2 [shape = 'u8[131072]{0}', space=vmem, size = 0x20000, scoped, tag = 'input window, operand 0']
    #allocation3 [shape = 's32[2]{0}', space=sflag, size = 0x8, scoped, tag = 'scoped memory for basic_conv_forward.3']
    #allocation4 [shape = 's32[2]{0}', space=sflag, size = 0x8, scoped, tag = 'scoped memory for basic_conv_forward.3']
    #allocation5 [shape = 'u8[512]{0}', space=vmem, size = 0x400, scoped, tag = 'input window, operand 1, single buffered']
    #allocation6 [shape = 's32[1]{0}', space=sflag, size = 0x4, scoped, tag = 'scoped memory for basic_conv_forward.3']
    #allocation7 [shape = 'u8[512]{0}', space=vmem, size = 0x400, scoped, tag = 'input window, operand 2, single buffered']
    #allocation8 [shape = 'u8[16384]{0}', space=vmem, size = 0x4000, scoped, tag = 'output window, operand 0']
    %8 = vsyncpa [#allocation3], 0
    %s9 = scalar_lea.sflag [#allocation3], 1
    %10 = vsyncpa %s9, 0
    %11 = vsyncpa [#allocation6], 0
    %12 = vsyncpa [#allocation4], 0
    %s13 = scalar_lea.sflag [#allocation4], 1
    %14 = vsyncpa %s13, 0
    loop: start=0, step=1, limit=4
    $region2: #{basic_conv_forward.3} parent=1 // loop_pre_header
      _
    $region3: #{basic_conv_forward.3} parent=1 // loop_header
      %s16 = sphi 0, %s20
      %p17 = scmp.ge.s32.totalorder %s16, 4
      %s26 = sphi 0, %s28
      %s29 = sphi 0, %s26
      %s30 = sphi 0, %s29
      %s46 = sphi 0, %s30
      %s50 = sphi 0, %s50
      %s52 = sphi 0, %s50
      %s53 = sphi 0, %s52
      %s67 = sphi 0, %s53
      %s71 = sphi 0, %s71
      %s73 = sphi 0, %s71
      %s74 = sphi 0, %s73
      %s88 = sphi 0, %s74
      %s94 = sphi 0, %s96
      %s97 = sphi 0, %s94
      %s98 = sphi 0, %s97
      %s114 = sphi 0, %s98
    $region4: #{basic_conv_forward.3} parent=1 // loop_header_branch
      %19 = sbr.rel (%p17) target = $region8
    $region5: #{basic_conv_forward.3} parent=1 // loop_body
      %s21 = ssub.s32 %s16, 1
      %s22 = ssub.s32 %s16, 2
      %s23 = sadd.s32 %s16, 1
      %s24 = ssub.s32 %s16, %s23
      %p25 = scmp.eq.s32.totalorder %s24, 0
      %s27 = sadd.s32 %s26, 1
      %s28 = scalar_select %p25, %s26, %s27
      %p31 = pneg %p25
      %p32 = scmp.eq.s32.totalorder %s16, 1
      %p33 = por %p31, %p32
      %p34 = scmp.ne.s32.totalorder %s26, %s29
      %p35 = scmp.eq.s32.totalorder %s16, 0
      %p36 = por %p34, %p35
      %p37 = scmp.ne.s32.totalorder %s26, %s29
      %p38 = scmp.eq.s32.totalorder %s21, 1
      %p39 = por %p37, %p38
      %p40 = scmp.ne.s32.totalorder %s29, %s30
      %p41 = scmp.eq.s32.totalorder %s21, 0
      %p42 = por %p40, %p41
      %p43 = scmp.ne.s32.totalorder %s29, %s30
      %p44 = scmp.eq.s32.totalorder %s22, 1
      %p45 = por %p43, %p44
      %p47 = scmp.ne.s32.totalorder %s30, %s46
      %p48 = scmp.eq.s32.totalorder %s22, 0
      %p49 = por %p47, %p48
      %s51 = sadd.s32 %s50, 1
      %p54 = scmp.eq.s32.totalorder %s16, 1
      %p55 = scmp.ne.s32.totalorder %s50, %s52
      %p56 = scmp.eq.s32.totalorder %s16, 0
      %p57 = por %p55, %p56
      %p58 = scmp.ne.s32.totalorder %s50, %s52
      %p59 = scmp.eq.s32.totalorder %s21, 1
      %p60 = por %p58, %p59
      %p61 = scmp.ne.s32.totalorder %s52, %s53
      %p62 = scmp.eq.s32.totalorder %s21, 0
      %p63 = por %p61, %p62
      %p64 = scmp.ne.s32.totalorder %s52, %s53
      %p65 = scmp.eq.s32.totalorder %s22, 1
      %p66 = por %p64, %p65
      %p68 = scmp.ne.s32.totalorder %s53, %s67
      %p69 = scmp.eq.s32.totalorder %s22, 0
      %p70 = por %p68, %p69
      %s72 = sadd.s32 %s71, 1
      %p75 = scmp.eq.s32.totalorder %s16, 1
      %p76 = scmp.ne.s32.totalorder %s71, %s73
      %p77 = scmp.eq.s32.totalorder %s16, 0
      %p78 = por %p76, %p77
      %p79 = scmp.ne.s32.totalorder %s71, %s73
      %p80 = scmp.eq.s32.totalorder %s21, 1
      %p81 = por %p79, %p80
      %p82 = scmp.ne.s32.totalorder %s73, %s74
      %p83 = scmp.eq.s32.totalorder %s21, 0
      %p84 = por %p82, %p83
      %p85 = scmp.ne.s32.totalorder %s73, %s74
      %p86 = scmp.eq.s32.totalorder %s22, 1
      %p87 = por %p85, %p86
      %p89 = scmp.ne.s32.totalorder %s74, %s88
      %p90 = scmp.eq.s32.totalorder %s22, 0
      %p91 = por %p89, %p90
      %s92 = ssub.s32 %s16, %s23
      %p93 = scmp.eq.s32.totalorder %s92, 0
      %s95 = sadd.s32 %s94, 1
      %s96 = scalar_select %p93, %s94, %s95
      %p99 = pneg %p93
      %p100 = scmp.eq.s32.totalorder %s16, 1
      %p101 = por %p99, %p100
      %p102 = scmp.ne.s32.totalorder %s94, %s97
      %p103 = scmp.eq.s32.totalorder %s16, 0
      %p104 = por %p102, %p103
      %p105 = scmp.ne.s32.totalorder %s94, %s97
      %p106 = scmp.eq.s32.totalorder %s21, 1
      %p107 = por %p105, %p106
      %p108 = scmp.ne.s32.totalorder %s97, %s98
      %p109 = scmp.eq.s32.totalorder %s21, 0
      %p110 = por %p108, %p109
      %p111 = scmp.ne.s32.totalorder %s97, %s98
      %p112 = scmp.eq.s32.totalorder %s22, 1
      %p113 = por %p111, %p112
      %p115 = scmp.ne.s32.totalorder %s98, %s114
      %p116 = scmp.eq.s32.totalorder %s22, 0
      %p117 = por %p115, %p116
      %p118 = scmp.le.s32.totalorder 1, %s16
      %p119 = scmp.lt.s32.totalorder %s16, 3
      %p120 = pnand %p118, %p119
      %p121 = pneg %p120
      // Predicated region
      $region9: #{basic_conv_forward.3} parent=5 // pred_check
        _
      $region10: #{basic_conv_forward.3} parent=5 // pred_check_branch
        %123 = sbr.rel (%p120) target = $region12
      $region11: #{basic_conv_forward.3} parent=5 // pred_region
        %s124 = ssub.s32 %s16, 1
        // Predicated region
        $region13: #{basic_conv_forward.3} parent=11 // pred_check
          %p125 = pneg %p63
        $region14: #{basic_conv_forward.3} parent=11 // pred_check_branch
          %127 = sbr.rel (%p125) target = $region16
        $region15: #{basic_conv_forward.3} parent=11 // pred_region
          %s129 = ssub.s32 16, 16
          %130 = vsyncadd [#allocation6], %s129
          %s132 = sshll.u32 [#allocation5], 4
          %s133 = int_to_ptr.vmem [resolvable:$true] %s132
          %135 = dma.hbm_to_vmem [thread:$0]  %s1, 16, %s133, [#allocation6]
        $region16: #{basic_conv_forward.3} parent=11 // pred_fallthru
          _
        // Predicated region
        $region17: #{basic_conv_forward.3} parent=11 // pred_check
          %p136 = pneg %p84
        $region18: #{basic_conv_forward.3} parent=11 // pred_check_branch
          %138 = sbr.rel (%p136) target = $region20
        $region19: #{basic_conv_forward.3} parent=11 // pred_region
          %s140 = ssub.s32 16, 16
          %141 = vsyncadd [#allocation6], %s140
          %s143 = sshll.u32 [#allocation7], 4
          %s144 = int_to_ptr.vmem [resolvable:$true] %s143
          %146 = dma.hbm_to_vmem [thread:$0]  %s2, 16, %s144, [#allocation6]
        $region20: #{basic_conv_forward.3} parent=11 // pred_fallthru
          _
      $region12: #{basic_conv_forward.3} parent=5 // pred_fallthru
        _
      %p147 = scmp.lt.s32.totalorder %s16, 2
      // Predicated region
      $region21: #{basic_conv_forward.3} parent=5 // pred_check
        %p148 = pneg %p147
      $region22: #{basic_conv_forward.3} parent=5 // pred_check_branch
        %150 = sbr.rel (%p148) target = $region24
      $region23: #{basic_conv_forward.3} parent=5 // pred_region
        // Predicated region
        $region25: #{basic_conv_forward.3} parent=23 // pred_check
          %p151 = pneg %p36
        $region26: #{basic_conv_forward.3} parent=23 // pred_check_branch
          %153 = sbr.rel (%p151) target = $region28
        $region27: #{basic_conv_forward.3} parent=23 // pred_region
          %s154 = sand.u32 %s26, 1
          %s155 = scalar_lea.sflag [#allocation3], %s154
          %s156 = sand.u32 %s26, 1
          %s157 = smul.addr %s156, 128
          %s158 = scalar_lea.vmem [#allocation2], %s157
          %s160 = ssub.s32 2048, 2048
          %161 = vsyncadd %s155, %s160
          %s162 = smul.addr %s16, 32
          %s163 = smul.addr %s162, 64
          %s164 = scalar_lea.hbm %s0, %s163
          %s165 = sshll.u32 %s158, 4
          %s166 = int_to_ptr.vmem [resolvable:$true] %s165
          %171 = dma.hbm_to_vmem [thread:$0]  %s164, 2048, %s166, %s155, 64, 64, 4
        $region28: #{basic_conv_forward.3} parent=23 // pred_fallthru
          _
      $region24: #{basic_conv_forward.3} parent=5 // pred_fallthru
        _
      %p172 = scmp.le.s32.totalorder 1, %s16
      %p173 = scmp.lt.s32.totalorder %s16, 3
      %p174 = pnand %p172, %p173
      %p175 = pneg %p174
      // Predicated region
      $region29: #{basic_conv_forward.3} parent=5 // pred_check
        _
      $region30: #{basic_conv_forward.3} parent=5 // pred_check_branch
        %177 = sbr.rel (%p174) target = $region32
      $region31: #{basic_conv_forward.3} parent=5 // pred_region
        %s178 = ssub.s32 %s16, 1
        %s179 = sand.u32 %s29, 1
        %s180 = scalar_lea.sflag [#allocation3], %s179
        %s181 = sand.u32 %s29, 1
        %s182 = smul.addr %s181, 128
        %s183 = scalar_lea.vmem [#allocation2], %s182
        // Predicated region
        $region33: #{basic_conv_forward.3} parent=31 // pred_check
          %p184 = pneg %p42
        $region34: #{basic_conv_forward.3} parent=31 // pred_check_branch
          %186 = sbr.rel (%p184) target = $region36
        $region35: #{basic_conv_forward.3} parent=31 // pred_region
          %187 = dma.done %s180, 2048
        $region36: #{basic_conv_forward.3} parent=31 // pred_fallthru
          _
        // Predicated region
        $region37: #{basic_conv_forward.3} parent=31 // pred_check
          %p188 = pneg %p63
        $region38: #{basic_conv_forward.3} parent=31 // pred_check_branch
          %190 = sbr.rel (%p188) target = $region40
        $region39: #{basic_conv_forward.3} parent=31 // pred_region
          %191 = dma.done [#allocation6], 16
        $region40: #{basic_conv_forward.3} parent=31 // pred_fallthru
          _
        // Predicated region
        $region41: #{basic_conv_forward.3} parent=31 // pred_check
          %p192 = pneg %p84
        $region42: #{basic_conv_forward.3} parent=31 // pred_check_branch
          %194 = sbr.rel (%p192) target = $region44
        $region43: #{basic_conv_forward.3} parent=31 // pred_region
          %195 = dma.done [#allocation6], 16
        $region44: #{basic_conv_forward.3} parent=31 // pred_fallthru
          _
        %s196 = sand.u32 %s29, 1
        %s197 = scalar_lea.sflag [#allocation3], %s196
        %s198 = sand.u32 %s29, 1
        %s199 = smul.addr %s198, 128
        %s200 = scalar_lea.vmem [#allocation2], %s199
        %p201 = pneg %p42
        %p202 = pneg %p39
        %p203 = pneg %p63
        %p204 = pneg %p60
        %p205 = pneg %p84
        %p206 = pneg %p81
        %p207 = pneg %p110
        %p208 = pneg %p107
        %s209 = sand.u32 %s97, 1
        %s210 = scalar_lea.sflag [#allocation4], %s209
        %s211 = sand.u32 %s97, 1
        %s212 = smul.addr %s211, 16
        %s213 = scalar_lea.vmem [#allocation8], %s212
        %v214 = vld [vmem:[%s183] sm:$0xf]
        %v215 = vld [vmem:[%s183 + $0x4] sm:$0xf]
        %v216 = vld [vmem:[%s183 + $0x8] sm:$0xf]
        %v217 = vld [vmem:[%s183 + $0xc] sm:$0xf]
        %v218 = vld [vmem:[%s183 + $0x10] sm:$0xf]
        %v219 = vld [vmem:[%s183 + $0x14] sm:$0xf]
        %v220 = vld [vmem:[%s183 + $0x18] sm:$0xf]
        %v221 = vld [vmem:[%s183 + $0x1c] sm:$0xf]
        %v222 = vld [vmem:[%s183 + $0x20] sm:$0xf]
        %v223 = vld [vmem:[%s183 + $0x24] sm:$0xf]
        %v224 = vld [vmem:[%s183 + $0x28] sm:$0xf]
        %v225 = vld [vmem:[%s183 + $0x2c] sm:$0xf]
        %v226 = vld [vmem:[%s183 + $0x30] sm:$0xf]
        %v227 = vld [vmem:[%s183 + $0x34] sm:$0xf]
        %v228 = vld [vmem:[%s183 + $0x38] sm:$0xf]
        %v229 = vld [vmem:[%s183 + $0x3c] sm:$0xf]
        %v230 = vld [vmem:[%s183 + $0x40] sm:$0xf]
        %v231 = vld [vmem:[%s183 + $0x44] sm:$0xf]
        %v232 = vld [vmem:[%s183 + $0x48] sm:$0xf]
        %v233 = vld [vmem:[%s183 + $0x4c] sm:$0xf]
        %v234 = vld [vmem:[%s183 + $0x50] sm:$0xf]
        %v235 = vld [vmem:[%s183 + $0x54] sm:$0xf]
        %v236 = vld [vmem:[%s183 + $0x58] sm:$0xf]
        %v237 = vld [vmem:[%s183 + $0x5c] sm:$0xf]
        %v238 = vld [vmem:[%s183 + $0x60] sm:$0xf]
        %v239 = vld [vmem:[%s183 + $0x64] sm:$0xf]
        %v240 = vld [vmem:[%s183 + $0x68] sm:$0xf]
        %v241 = vld [vmem:[%s183 + $0x6c] sm:$0xf]
        %v242 = vld [vmem:[%s183 + $0x70] sm:$0xf]
        %v243 = vld [vmem:[%s183 + $0x74] sm:$0xf]
        %v244 = vld [vmem:[%s183 + $0x78] sm:$0xf]
        %v245 = vld [vmem:[%s183 + $0x7c] sm:$0xf]
        %v246 = vunpack.c.l.bf16 %v214
        %v247 = vunpack.c.l.bf16 %v215
        %v248 = vunpack.c.l.bf16 %v216
        %v249 = vunpack.c.l.bf16 %v217
        %v250 = vunpack.c.l.bf16 %v218
        %v251 = vunpack.c.l.bf16 %v219
        %v252 = vunpack.c.l.bf16 %v220
        %v253 = vunpack.c.l.bf16 %v221
        %v254 = vunpack.c.l.bf16 %v222
        %v255 = vunpack.c.l.bf16 %v223
        %v256 = vunpack.c.l.bf16 %v224
        %v257 = vunpack.c.l.bf16 %v225
        %v258 = vunpack.c.l.bf16 %v226
        %v259 = vunpack.c.l.bf16 %v227
        %v260 = vunpack.c.l.bf16 %v228
        %v261 = vunpack.c.l.bf16 %v229
        %v262 = vunpack.c.l.bf16 %v230
        %v263 = vunpack.c.l.bf16 %v231
        %v264 = vunpack.c.l.bf16 %v232
        %v265 = vunpack.c.l.bf16 %v233
        %v266 = vunpack.c.l.bf16 %v234
        %v267 = vunpack.c.l.bf16 %v235
        %v268 = vunpack.c.l.bf16 %v236
        %v269 = vunpack.c.l.bf16 %v237
        %v270 = vunpack.c.l.bf16 %v238
        %v271 = vunpack.c.l.bf16 %v239
        %v272 = vunpack.c.l.bf16 %v240
        %v273 = vunpack.c.l.bf16 %v241
        %v274 = vunpack.c.l.bf16 %v242
        %v275 = vunpack.c.l.bf16 %v243
        %v276 = vunpack.c.l.bf16 %v244
        %v277 = vunpack.c.l.bf16 %v245
        %v278 = vld [vmem:[#allocation5] sm:$0x1]
        %v280 = vlaneseq
        %v281 = vshrl.u32 %v280, 7
        %v282 = vsub.s32 0, %v281
        %v283 = vrot.slane %v278, %v282
        %v285 = vmul.f32 %v246, %v283
        %v286 = vmul.f32 %v247, %v283
        %v287 = vmul.f32 %v248, %v283
        %v288 = vmul.f32 %v249, %v283
        %v289 = vmul.f32 %v250, %v283
        %v290 = vmul.f32 %v251, %v283
        %v291 = vmul.f32 %v252, %v283
        %v292 = vmul.f32 %v253, %v283
        %v293 = vmul.f32 %v254, %v283
        %v294 = vmul.f32 %v255, %v283
        %v295 = vmul.f32 %v256, %v283
        %v296 = vmul.f32 %v257, %v283
        %v297 = vmul.f32 %v258, %v283
        %v298 = vmul.f32 %v259, %v283
        %v299 = vmul.f32 %v260, %v283
        %v300 = vmul.f32 %v261, %v283
        %v301 = vmul.f32 %v262, %v283
        %v302 = vmul.f32 %v263, %v283
        %v303 = vmul.f32 %v264, %v283
        %v304 = vmul.f32 %v265, %v283
        %v305 = vmul.f32 %v266, %v283
        %v306 = vmul.f32 %v267, %v283
        %v307 = vmul.f32 %v268, %v283
        %v308 = vmul.f32 %v269, %v283
        %v309 = vmul.f32 %v270, %v283
        %v310 = vmul.f32 %v271, %v283
        %v311 = vmul.f32 %v272, %v283
        %v312 = vmul.f32 %v273, %v283
        %v313 = vmul.f32 %v274, %v283
        %v314 = vmul.f32 %v275, %v283
        %v315 = vmul.f32 %v276, %v283
        %v316 = vmul.f32 %v277, %v283
        %v317 = vld [vmem:[#allocation7] sm:$0x1]
        %v319 = vlaneseq
        %v320 = vshrl.u32 %v319, 7
        %v321 = vsub.s32 0, %v320
        %v322 = vrot.slane %v317, %v321
        %v324 = vadd.f32 %v285, %v322
        %v325 = vadd.f32 %v286, %v322
        %v326 = vadd.f32 %v287, %v322
        %v327 = vadd.f32 %v288, %v322
        %v328 = vadd.f32 %v289, %v322
        %v329 = vadd.f32 %v290, %v322
        %v330 = vadd.f32 %v291, %v322
        %v331 = vadd.f32 %v292, %v322
        %v332 = vadd.f32 %v293, %v322
        %v333 = vadd.f32 %v294, %v322
        %v334 = vadd.f32 %v295, %v322
        %v335 = vadd.f32 %v296, %v322
        %v336 = vadd.f32 %v297, %v322
        %v337 = vadd.f32 %v298, %v322
        %v338 = vadd.f32 %v299, %v322
        %v339 = vadd.f32 %v300, %v322
        %v340 = vadd.f32 %v301, %v322
        %v341 = vadd.f32 %v302, %v322
        %v342 = vadd.f32 %v303, %v322
        %v343 = vadd.f32 %v304, %v322
        %v344 = vadd.f32 %v305, %v322
        %v345 = vadd.f32 %v306, %v322
        %v346 = vadd.f32 %v307, %v322
        %v347 = vadd.f32 %v308, %v322
        %v348 = vadd.f32 %v309, %v322
        %v349 = vadd.f32 %v310, %v322
        %v350 = vadd.f32 %v311, %v322
        %v351 = vadd.f32 %v312, %v322
        %v352 = vadd.f32 %v313, %v322
        %v353 = vadd.f32 %v314, %v322
        %v354 = vadd.f32 %v315, %v322
        %v355 = vadd.f32 %v316, %v322
        %v356 = vmax.f32 %v324, 0.0
        %v357 = vmax.f32 %v325, 0.0
        %v358 = vmax.f32 %v326, 0.0
        %v359 = vmax.f32 %v327, 0.0
        %v360 = vmax.f32 %v328, 0.0
        %v361 = vmax.f32 %v329, 0.0
        %v362 = vmax.f32 %v330, 0.0
        %v363 = vmax.f32 %v331, 0.0
        %v364 = vmax.f32 %v332, 0.0
        %v365 = vmax.f32 %v333, 0.0
        %v366 = vmax.f32 %v334, 0.0
        %v367 = vmax.f32 %v335, 0.0
        %v368 = vmax.f32 %v336, 0.0
        %v369 = vmax.f32 %v337, 0.0
        %v370 = vmax.f32 %v338, 0.0
        %v371 = vmax.f32 %v339, 0.0
        %v372 = vmax.f32 %v340, 0.0
        %v373 = vmax.f32 %v341, 0.0
        %v374 = vmax.f32 %v342, 0.0
        %v375 = vmax.f32 %v343, 0.0
        %v376 = vmax.f32 %v344, 0.0
        %v377 = vmax.f32 %v345, 0.0
        %v378 = vmax.f32 %v346, 0.0
        %v379 = vmax.f32 %v347, 0.0
        %v380 = vmax.f32 %v348, 0.0
        %v381 = vmax.f32 %v349, 0.0
        %v382 = vmax.f32 %v350, 0.0
        %v383 = vmax.f32 %v351, 0.0
        %v384 = vmax.f32 %v352, 0.0
        %v385 = vmax.f32 %v353, 0.0
        %v386 = vmax.f32 %v354, 0.0
        %v387 = vmax.f32 %v355, 0.0
        %388 = vxpose.xlu0.b32.start [1/16] %v356, 128
        %389 = vxpose.xlu0.b32.cont [2/16] %v357, 128
        %390 = vxpose.xlu0.b32.cont [3/16] %v358, 128
        %391 = vxpose.xlu0.b32.cont [4/16] %v359, 128
        %392 = vxpose.xlu0.b32.cont [5/16] %v360, 128
        %393 = vxpose.xlu0.b32.cont [6/16] %v361, 128
        %394 = vxpose.xlu0.b32.cont [7/16] %v362, 128
        %395 = vxpose.xlu0.b32.cont [8/16] %v363, 128
        %396 = vxpose.xlu0.b32.cont [9/16] %v364, 128
        %397 = vxpose.xlu0.b32.cont [10/16] %v365, 128
        %398 = vxpose.xlu0.b32.cont [11/16] %v366, 128
        %399 = vxpose.xlu0.b32.cont [12/16] %v367, 128
        %400 = vxpose.xlu0.b32.cont [13/16] %v368, 128
        %401 = vxpose.xlu0.b32.cont [14/16] %v369, 128
        %402 = vxpose.xlu0.b32.cont [15/16] %v370, 128
        %403 = vxpose.xlu0.b32.end [16/16] %v371, 128
        %v404 = vpop.trf.xlu0
        %v405 = vpop.trf.xlu0
        %v406 = vpop.trf.xlu0
        %v407 = vpop.trf.xlu0
        %v408 = vpop.trf.xlu0
        %v409 = vpop.trf.xlu0
        %v410 = vpop.trf.xlu0
        %v411 = vpop.trf.xlu0
        %v412 = vpop.trf.xlu0
        %v413 = vpop.trf.xlu0
        %v414 = vpop.trf.xlu0
        %v415 = vpop.trf.xlu0
        %v416 = vpop.trf.xlu0
        %v417 = vpop.trf.xlu0
        %v418 = vpop.trf.xlu0
        %v419 = vpop.trf.xlu0
        %420 = vxpose.xlu0.b32.start [1/16] %v372, 128
        %421 = vxpose.xlu0.b32.cont [2/16] %v373, 128
        %422 = vxpose.xlu0.b32.cont [3/16] %v374, 128
        %423 = vxpose.xlu0.b32.cont [4/16] %v375, 128
        %424 = vxpose.xlu0.b32.cont [5/16] %v376, 128
        %425 = vxpose.xlu0.b32.cont [6/16] %v377, 128
        %426 = vxpose.xlu0.b32.cont [7/16] %v378, 128
        %427 = vxpose.xlu0.b32.cont [8/16] %v379, 128
        %428 = vxpose.xlu0.b32.cont [9/16] %v380, 128
        %429 = vxpose.xlu0.b32.cont [10/16] %v381, 128
        %430 = vxpose.xlu0.b32.cont [11/16] %v382, 128
        %431 = vxpose.xlu0.b32.cont [12/16] %v383, 128
        %432 = vxpose.xlu0.b32.cont [13/16] %v384, 128
        %433 = vxpose.xlu0.b32.cont [14/16] %v385, 128
        %434 = vxpose.xlu0.b32.cont [15/16] %v386, 128
        %435 = vxpose.xlu0.b32.end [16/16] %v387, 128
        %v436 = vpop.trf.xlu0
        %v437 = vpop.trf.xlu0
        %v438 = vpop.trf.xlu0
        %v439 = vpop.trf.xlu0
        %v440 = vpop.trf.xlu0
        %v441 = vpop.trf.xlu0
        %v442 = vpop.trf.xlu0
        %v443 = vpop.trf.xlu0
        %v444 = vpop.trf.xlu0
        %v445 = vpop.trf.xlu0
        %v446 = vpop.trf.xlu0
        %v447 = vpop.trf.xlu0
        %v448 = vpop.trf.xlu0
        %v449 = vpop.trf.xlu0
        %v450 = vpop.trf.xlu0
        %v451 = vpop.trf.xlu0
        %452 = vst [vmem:[%s213] sm:$0xff] %v404
        %453 = vst [vmem:[%s213 + $0x8] sm:$0xff] %v436
        %s454 = sand.u32 %s97, 1
        %s455 = scalar_lea.sflag [#allocation4], %s454
        %s456 = sand.u32 %s97, 1
        %s457 = smul.addr %s456, 16
        %s458 = scalar_lea.vmem [#allocation8], %s457
        // Predicated region
        $region45: #{basic_conv_forward.3} parent=31 // pred_check
          %p459 = pneg %p107
        $region46: #{basic_conv_forward.3} parent=31 // pred_check_branch
          %461 = sbr.rel (%p459) target = $region48
        $region47: #{basic_conv_forward.3} parent=31 // pred_region
          %s463 = ssub.s32 256, 256
          %464 = vsyncadd %s455, %s463
          %s465 = smul.addr %s21, 2
          %s466 = smul.addr %s465, 128
          %s467 = scalar_lea.hbm %s3, %s466
          %s469 = sshll.u32 %s458, 4
          %s470 = int_to_ptr.vmem [resolvable:$true] %s469
          %472 = dma.vmem_to_hbm [thread:$0]  %s470, 256, %s467, %s455
        $region48: #{basic_conv_forward.3} parent=31 // pred_fallthru
          _
      $region32: #{basic_conv_forward.3} parent=5 // pred_fallthru
        _
      %p473 = scmp.le.s32.totalorder 2, %s16
      // Predicated region
      $region49: #{basic_conv_forward.3} parent=5 // pred_check
        %p474 = pneg %p473
      $region50: #{basic_conv_forward.3} parent=5 // pred_check_branch
        %476 = sbr.rel (%p474) target = $region52
      $region51: #{basic_conv_forward.3} parent=5 // pred_region
        %s477 = ssub.s32 %s16, 2
        // Predicated region
        $region53: #{basic_conv_forward.3} parent=51 // pred_check
          %p478 = pneg %p113
        $region54: #{basic_conv_forward.3} parent=51 // pred_check_branch
          %480 = sbr.rel (%p478) target = $region56
        $region55: #{basic_conv_forward.3} parent=51 // pred_region
          %s481 = sand.u32 %s98, 1
          %s482 = scalar_lea.sflag [#allocation4], %s481
          %s483 = sand.u32 %s98, 1
          %s484 = smul.addr %s483, 16
          %s485 = scalar_lea.vmem [#allocation8], %s484
          %486 = dma.done %s482, 256
        $region56: #{basic_conv_forward.3} parent=51 // pred_fallthru
          _
      $region52: #{basic_conv_forward.3} parent=5 // pred_fallthru
        _
    $region6: #{basic_conv_forward.3} parent=1 // loop_footer
      %s20 = sadd.s32 1, %s16
    $region7: #{basic_conv_forward.3} parent=1 // loop_footer_branch
      %15 = sbr.rel target = $region3
    $region8: #{basic_conv_forward.3} parent=1 // loop_exit
      _
    %487 = vsyncpa [#allocation3], 1
    %s488 = scalar_lea.sflag [#allocation3], 1
    %489 = vsyncpa %s488, 1
    %490 = vsyncpa [#allocation6], 1
    %491 = vsyncpa [#allocation4], 1
    %s492 = scalar_lea.sflag [#allocation4], 1
    %493 = vsyncpa %s492, 1

// kernel: basic_conv_forward.2
$region0: #{basic_conv_forward.2}
  #allocation0 [shape = 'u32[]', space=smem, size = 0x4, offset = 0x4, fixed_abs, tag = 'smem constant byte address 0x4 - core index']
  #allocation1 [shape = 'u32[144,128]{1,0:T(1,128)}', space=vmem, size = 0x12000, scoped, tag = 'internal scratch']
  %s0 = inlined_call_operand.hbm [shape: bf16[2,18,18,4], index: 0, kind: input, shape index: {}]
  %s1 = inlined_call_operand.hbm [shape: bf16[128,128], index: 1, kind: input, shape index: {}]
  %s2 = inlined_call_operand.hbm [shape: bf16[2,256,128], index: 2, kind: output, shape index: {0}]
  %s3 = inlined_call_operand.hbm [shape: f32[2,1,128], index: 3, kind: output, shape index: {1}]
  %s4 = inlined_call_operand.hbm [shape: f32[2,1,128], index: 4, kind: output, shape index: {2}]
  %5 = xla_tuple %s2, %s3, %s4
  %s6 = sld [smem:[#allocation0]]
  $region65: #{basic_conv_forward.2} parent=0
    _
  %s8 = ssub.s32 1, %s6
  %s9 = scalar_select 0, %s8, %s6
  $region1: #{basic_conv_forward.2} parent=0
    #allocation2 [shape = 'u8[221184]{0}', space=vmem, size = 0x36000, scoped, tag = 'input window, operand 0']
    #allocation3 [shape = 's32[2]{0}', space=sflag, size = 0x8, scoped, tag = 'scoped memory for basic_conv_forward.2']
    #allocation4 [shape = 's32[2]{0}', space=sflag, size = 0x8, scoped, tag = 'scoped memory for basic_conv_forward.2']
    #allocation5 [shape = 'u8[32768]{0}', space=vmem, size = 0x8000, scoped, tag = 'input window, operand 1, single buffered']
    #allocation6 [shape = 's32[1]{0}', space=sflag, size = 0x4, scoped, tag = 'scoped memory for basic_conv_forward.2']
    #allocation7 [shape = 'u8[131072]{0}', space=vmem, size = 0x20000, scoped, tag = 'output window, operand 0']
    #allocation8 [shape = 'u8[1024]{0}', space=vmem, size = 0x400, scoped, tag = 'output window, operand 1']
    #allocation9 [shape = 's32[2]{0}', space=sflag, size = 0x8, scoped, tag = 'scoped memory for basic_conv_forward.2']
    #allocation10 [shape = 'u8[1024]{0}', space=vmem, size = 0x400, scoped, tag = 'output window, operand 2']
    %10 = vsyncpa [#allocation3], 0
    %s11 = scalar_lea.sflag [#allocation3], 1
    %12 = vsyncpa %s11, 0
    %13 = vsyncpa [#allocation6], 0
    %14 = vsyncpa [#allocation4], 0
    %s15 = scalar_lea.sflag [#allocation4], 1
    %16 = vsyncpa %s15, 0
    %17 = vsyncpa [#allocation9], 0
    %s18 = scalar_lea.sflag [#allocation9], 1
    %19 = vsyncpa %s18, 0
    loop: start=0, step=1, limit=4
    $region2: #{basic_conv_forward.2} parent=1 // loop_pre_header
      _
    $region3: #{basic_conv_forward.2} parent=1 // loop_header
      %s21 = sphi 0, %s25
      %p22 = scmp.ge.s32.totalorder %s21, 4
      %s31 = sphi 0, %s33
      %s34 = sphi 0, %s31
      %s35 = sphi 0, %s34
      %s51 = sphi 0, %s35
      %s55 = sphi 0, %s55
      %s57 = sphi 0, %s55
      %s58 = sphi 0, %s57
      %s72 = sphi 0, %s58
      %s78 = sphi 0, %s80
      %s81 = sphi 0, %s78
      %s82 = sphi 0, %s81
      %s98 = sphi 0, %s82
      %s104 = sphi 0, %s106
      %s107 = sphi 0, %s104
      %s108 = sphi 0, %s107
      %s124 = sphi 0, %s108
      %s130 = sphi 0, %s132
      %s133 = sphi 0, %s130
      %s134 = sphi 0, %s133
      %s150 = sphi 0, %s134
    $region4: #{basic_conv_forward.2} parent=1 // loop_header_branch
      %24 = sbr.rel (%p22) target = $region8
    $region5: #{basic_conv_forward.2} parent=1 // loop_body
      %s26 = ssub.s32 %s21, 1
      %s27 = ssub.s32 %s21, 2
      %s28 = sadd.s32 %s21, 1
      %s29 = ssub.s32 %s21, %s28
      %p30 = scmp.eq.s32.totalorder %s29, 0
      %s32 = sadd.s32 %s31, 1
      %s33 = scalar_select %p30, %s31, %s32
      %p36 = pneg %p30
      %p37 = scmp.eq.s32.totalorder %s21, 1
      %p38 = por %p36, %p37
      %p39 = scmp.ne.s32.totalorder %s31, %s34
      %p40 = scmp.eq.s32.totalorder %s21, 0
      %p41 = por %p39, %p40
      %p42 = scmp.ne.s32.totalorder %s31, %s34
      %p43 = scmp.eq.s32.totalorder %s26, 1
      %p44 = por %p42, %p43
      %p45 = scmp.ne.s32.totalorder %s34, %s35
      %p46 = scmp.eq.s32.totalorder %s26, 0
      %p47 = por %p45, %p46
      %p48 = scmp.ne.s32.totalorder %s34, %s35
      %p49 = scmp.eq.s32.totalorder %s27, 1
      %p50 = por %p48, %p49
      %p52 = scmp.ne.s32.totalorder %s35, %s51
      %p53 = scmp.eq.s32.totalorder %s27, 0
      %p54 = por %p52, %p53
      %s56 = sadd.s32 %s55, 1
      %p59 = scmp.eq.s32.totalorder %s21, 1
      %p60 = scmp.ne.s32.totalorder %s55, %s57
      %p61 = scmp.eq.s32.totalorder %s21, 0
      %p62 = por %p60, %p61
      %p63 = scmp.ne.s32.totalorder %s55, %s57
      %p64 = scmp.eq.s32.totalorder %s26, 1
      %p65 = por %p63, %p64
      %p66 = scmp.ne.s32.totalorder %s57, %s58
      %p67 = scmp.eq.s32.totalorder %s26, 0
      %p68 = por %p66, %p67
      %p69 = scmp.ne.s32.totalorder %s57, %s58
      %p70 = scmp.eq.s32.totalorder %s27, 1
      %p71 = por %p69, %p70
      %p73 = scmp.ne.s32.totalorder %s58, %s72
      %p74 = scmp.eq.s32.totalorder %s27, 0
      %p75 = por %p73, %p74
      %s76 = ssub.s32 %s21, %s28
      %p77 = scmp.eq.s32.totalorder %s76, 0
      %s79 = sadd.s32 %s78, 1
      %s80 = scalar_select %p77, %s78, %s79
      %p83 = pneg %p77
      %p84 = scmp.eq.s32.totalorder %s21, 1
      %p85 = por %p83, %p84
      %p86 = scmp.ne.s32.totalorder %s78, %s81
      %p87 = scmp.eq.s32.totalorder %s21, 0
      %p88 = por %p86, %p87
      %p89 = scmp.ne.s32.totalorder %s78, %s81
      %p90 = scmp.eq.s32.totalorder %s26, 1
      %p91 = por %p89, %p90
      %p92 = scmp.ne.s32.totalorder %s81, %s82
      %p93 = scmp.eq.s32.totalorder %s26, 0
      %p94 = por %p92, %p93
      %p95 = scmp.ne.s32.totalorder %s81, %s82
      %p96 = scmp.eq.s32.totalorder %s27, 1
      %p97 = por %p95, %p96
      %p99 = scmp.ne.s32.totalorder %s82, %s98
      %p100 = scmp.eq.s32.totalorder %s27, 0
      %p101 = por %p99, %p100
      %s102 = ssub.s32 %s21, %s28
      %p103 = scmp.eq.s32.totalorder %s102, 0
      %s105 = sadd.s32 %s104, 1
      %s106 = scalar_select %p103, %s104, %s105
      %p109 = pneg %p103
      %p110 = scmp.eq.s32.totalorder %s21, 1
      %p111 = por %p109, %p110
      %p112 = scmp.ne.s32.totalorder %s104, %s107
      %p113 = scmp.eq.s32.totalorder %s21, 0
      %p114 = por %p112, %p113
      %p115 = scmp.ne.s32.totalorder %s104, %s107
      %p116 = scmp.eq.s32.totalorder %s26, 1
      %p117 = por %p115, %p116
      %p118 = scmp.ne.s32.totalorder %s107, %s108
      %p119 = scmp.eq.s32.totalorder %s26, 0
      %p120 = por %p118, %p119
      %p121 = scmp.ne.s32.totalorder %s107, %s108
      %p122 = scmp.eq.s32.totalorder %s27, 1
      %p123 = por %p121, %p122
      %p125 = scmp.ne.s32.totalorder %s108, %s124
      %p126 = scmp.eq.s32.totalorder %s27, 0
      %p127 = por %p125, %p126
      %s128 = ssub.s32 %s21, %s28
      %p129 = scmp.eq.s32.totalorder %s128, 0
      %s131 = sadd.s32 %s130, 1
      %s132 = scalar_select %p129, %s130, %s131
      %p135 = pneg %p129
      %p136 = scmp.eq.s32.totalorder %s21, 1
      %p137 = por %p135, %p136
      %p138 = scmp.ne.s32.totalorder %s130, %s133
      %p139 = scmp.eq.s32.totalorder %s21, 0
      %p140 = por %p138, %p139
      %p141 = scmp.ne.s32.totalorder %s130, %s133
      %p142 = scmp.eq.s32.totalorder %s26, 1
      %p143 = por %p141, %p142
      %p144 = scmp.ne.s32.totalorder %s133, %s134
      %p145 = scmp.eq.s32.totalorder %s26, 0
      %p146 = por %p144, %p145
      %p147 = scmp.ne.s32.totalorder %s133, %s134
      %p148 = scmp.eq.s32.totalorder %s27, 1
      %p149 = por %p147, %p148
      %p151 = scmp.ne.s32.totalorder %s134, %s150
      %p152 = scmp.eq.s32.totalorder %s27, 0
      %p153 = por %p151, %p152
      %p154 = scmp.le.s32.totalorder 1, %s21
      %p155 = scmp.lt.s32.totalorder %s21, 3
      %p156 = pnand %p154, %p155
      %p157 = pneg %p156
      // Predicated region
      $region9: #{basic_conv_forward.2} parent=5 // pred_check
        _
      $region10: #{basic_conv_forward.2} parent=5 // pred_check_branch
        %159 = sbr.rel (%p156) target = $region12
      $region11: #{basic_conv_forward.2} parent=5 // pred_region
        %s160 = ssub.s32 %s21, 1
        // Predicated region
        $region13: #{basic_conv_forward.2} parent=11 // pred_check
          %p161 = pneg %p68
        $region14: #{basic_conv_forward.2} parent=11 // pred_check_branch
          %163 = sbr.rel (%p161) target = $region16
        $region15: #{basic_conv_forward.2} parent=11 // pred_region
          %s165 = ssub.s32 1024, 1024
          %166 = vsyncadd [#allocation6], %s165
          %s167 = sshll.u32 [#allocation5], 4
          %s168 = int_to_ptr.vmem [resolvable:$true] %s167
          %173 = dma.hbm_to_vmem [thread:$0]  %s1, 1024, %s168, [#allocation6], 64, 64, 4
        $region16: #{basic_conv_forward.2} parent=11 // pred_fallthru
          _
      $region12: #{basic_conv_forward.2} parent=5 // pred_fallthru
        _
      %p174 = scmp.lt.s32.totalorder %s21, 2
      // Predicated region
      $region17: #{basic_conv_forward.2} parent=5 // pred_check
        %p175 = pneg %p174
      $region18: #{basic_conv_forward.2} parent=5 // pred_check_branch
        %177 = sbr.rel (%p175) target = $region20
      $region19: #{basic_conv_forward.2} parent=5 // pred_region
        // Predicated region
        $region21: #{basic_conv_forward.2} parent=19 // pred_check
          %p178 = pneg %p41
        $region22: #{basic_conv_forward.2} parent=19 // pred_check_branch
          %180 = sbr.rel (%p178) target = $region24
        $region23: #{basic_conv_forward.2} parent=19 // pred_region
          %s181 = sand.u32 %s31, 1
          %s182 = scalar_lea.sflag [#allocation3], %s181
          %s183 = sand.u32 %s31, 1
          %s184 = smul.addr %s183, 216
          %s185 = scalar_lea.vmem [#allocation2], %s184
          %s187 = ssub.s32 3456, 3456
          %188 = vsyncadd %s182, %s187
          %s189 = smul.addr %s21, 54
          %s190 = smul.addr %s189, 64
          %s191 = scalar_lea.hbm %s0, %s190
          %s192 = sshll.u32 %s185, 4
          %s193 = int_to_ptr.vmem [resolvable:$true] %s192
          %198 = dma.hbm_to_vmem [thread:$0]  %s191, 3456, %s193, %s182, 64, 64, 4
        $region24: #{basic_conv_forward.2} parent=19 // pred_fallthru
          _
      $region20: #{basic_conv_forward.2} parent=5 // pred_fallthru
        _
      %p199 = scmp.le.s32.totalorder 1, %s21
      %p200 = scmp.lt.s32.totalorder %s21, 3
      %p201 = pnand %p199, %p200
      %p202 = pneg %p201
      // Predicated region
      $region25: #{basic_conv_forward.2} parent=5 // pred_check
        _
      $region26: #{basic_conv_forward.2} parent=5 // pred_check_branch
        %204 = sbr.rel (%p201) target = $region28
      $region27: #{basic_conv_forward.2} parent=5 // pred_region
        %s205 = ssub.s32 %s21, 1
        %s206 = sand.u32 %s34, 1
        %s207 = scalar_lea.sflag [#allocation3], %s206
        %s208 = sand.u32 %s34, 1
        %s209 = smul.addr %s208, 216
        %s210 = scalar_lea.vmem [#allocation2], %s209
        // Predicated region
        $region29: #{basic_conv_forward.2} parent=27 // pred_check
          %p211 = pneg %p47
        $region30: #{basic_conv_forward.2} parent=27 // pred_check_branch
          %213 = sbr.rel (%p211) target = $region32
        $region31: #{basic_conv_forward.2} parent=27 // pred_region
          %214 = dma.done %s207, 3456
        $region32: #{basic_conv_forward.2} parent=27 // pred_fallthru
          _
        // Predicated region
        $region33: #{basic_conv_forward.2} parent=27 // pred_check
          %p215 = pneg %p68
        $region34: #{basic_conv_forward.2} parent=27 // pred_check_branch
          %217 = sbr.rel (%p215) target = $region36
        $region35: #{basic_conv_forward.2} parent=27 // pred_region
          %218 = dma.done [#allocation6], 1024
        $region36: #{basic_conv_forward.2} parent=27 // pred_fallthru
          _
        %s219 = sand.u32 %s34, 1
        %s220 = scalar_lea.sflag [#allocation3], %s219
        %s221 = sand.u32 %s34, 1
        %s222 = smul.addr %s221, 216
        %s223 = scalar_lea.vmem [#allocation2], %s222
        %p224 = pneg %p47
        %p225 = pneg %p44
        %p226 = pneg %p68
        %p227 = pneg %p65
        %p228 = pneg %p94
        %p229 = pneg %p91
        %s230 = sand.u32 %s81, 1
        %s231 = scalar_lea.sflag [#allocation4], %s230
        %s232 = sand.u32 %s81, 1
        %s233 = smul.addr %s232, 128
        %s234 = scalar_lea.vmem [#allocation7], %s233
        %p235 = pneg %p120
        %p236 = pneg %p117
        %s237 = sand.u32 %s26, 1
        %s238 = scalar_lea.sflag [#allocation9], %s237
        %s239 = sand.u32 %s107, 1
        %s240 = scalar_lea.vmem [#allocation8], %s239
        %p241 = pneg %p146
        %p242 = pneg %p143
        %s243 = sand.u32 %s26, 1
        %s244 = scalar_lea.sflag [#allocation9], %s243
        %s245 = sand.u32 %s133, 1
        %s246 = scalar_lea.vmem [#allocation10], %s245
        %v248 = vld [vmem:[%s210] sm:$0xf]
        %v249 = vld [vmem:[%s210 + $0x4] sm:$0xf]
        %v250 = vld [vmem:[%s210 + $0xc] sm:$0xf]
        %v251 = vld [vmem:[%s210 + $0x10] sm:$0xf]
        %v252 = vld [vmem:[%s210 + $0x18] sm:$0xf]
        %v253 = vld [vmem:[%s210 + $0x1c] sm:$0xf]
        %v254 = vld [vmem:[%s210 + $0x24] sm:$0xf]
        %v255 = vld [vmem:[%s210 + $0x28] sm:$0xf]
        %v256 = vld [vmem:[%s210 + $0x30] sm:$0xf]
        %v257 = vld [vmem:[%s210 + $0x34] sm:$0xf]
        %v258 = vld [vmem:[%s210 + $0x3c] sm:$0xf]
        %v259 = vld [vmem:[%s210 + $0x40] sm:$0xf]
        %v260 = vld [vmem:[%s210 + $0x48] sm:$0xf]
        %v261 = vld [vmem:[%s210 + $0x4c] sm:$0xf]
        %v262 = vld [vmem:[%s210 + $0x54] sm:$0xf]
        %v263 = vld [vmem:[%s210 + $0x58] sm:$0xf]
        %v264 = vld [vmem:[%s210 + $0x60] sm:$0xf]
        %v265 = vld [vmem:[%s210 + $0x64] sm:$0xf]
        %v266 = vld [vmem:[%s210 + $0x6c] sm:$0xf]
        %v267 = vld [vmem:[%s210 + $0x70] sm:$0xf]
        %v268 = vld [vmem:[%s210 + $0x78] sm:$0xf]
        %v269 = vld [vmem:[%s210 + $0x7c] sm:$0xf]
        %v270 = vld [vmem:[%s210 + $0x84] sm:$0xf]
        %v271 = vld [vmem:[%s210 + $0x88] sm:$0xf]
        %v272 = vld [vmem:[%s210 + $0x90] sm:$0xf]
        %v273 = vld [vmem:[%s210 + $0x94] sm:$0xf]
        %v274 = vld [vmem:[%s210 + $0x9c] sm:$0xf]
        %v275 = vld [vmem:[%s210 + $0xa0] sm:$0xf]
        %v276 = vld [vmem:[%s210 + $0xa8] sm:$0xf]
        %v277 = vld [vmem:[%s210 + $0xac] sm:$0xf]
        %v278 = vld [vmem:[%s210 + $0xb4] sm:$0xf]
        %v279 = vld [vmem:[%s210 + $0xb8] sm:$0xf]
        %v280 = vunpack.c.l.bf16 %v248
        %v281 = vunpack.c.l.bf16 %v249
        %v282 = vunpack.c.l.bf16 %v250
        %v283 = vunpack.c.l.bf16 %v251
        %v284 = vunpack.c.l.bf16 %v252
        %v285 = vunpack.c.l.bf16 %v253
        %v286 = vunpack.c.l.bf16 %v254
        %v287 = vunpack.c.l.bf16 %v255
        %v288 = vunpack.c.l.bf16 %v256
        %v289 = vunpack.c.l.bf16 %v257
        %v290 = vunpack.c.l.bf16 %v258
        %v291 = vunpack.c.l.bf16 %v259
        %v292 = vunpack.c.l.bf16 %v260
        %v293 = vunpack.c.l.bf16 %v261
        %v294 = vunpack.c.l.bf16 %v262
        %v295 = vunpack.c.l.bf16 %v263
        %v296 = vunpack.c.l.bf16 %v264
        %v297 = vunpack.c.l.bf16 %v265
        %v298 = vunpack.c.l.bf16 %v266
        %v299 = vunpack.c.l.bf16 %v267
        %v300 = vunpack.c.l.bf16 %v268
        %v301 = vunpack.c.l.bf16 %v269
        %v302 = vunpack.c.l.bf16 %v270
        %v303 = vunpack.c.l.bf16 %v271
        %v304 = vunpack.c.l.bf16 %v272
        %v305 = vunpack.c.l.bf16 %v273
        %v306 = vunpack.c.l.bf16 %v274
        %v307 = vunpack.c.l.bf16 %v275
        %v308 = vunpack.c.l.bf16 %v276
        %v309 = vunpack.c.l.bf16 %v277
        %v310 = vunpack.c.l.bf16 %v278
        %v311 = vunpack.c.l.bf16 %v279
        %v312 = vld [vmem:[%s210 + $0x8] sm:$0x1]
        %v313 = vld [vmem:[%s210 + $0x14] sm:$0x1]
        %v314 = vld [vmem:[%s210 + $0x20] sm:$0x1]
        %v315 = vld [vmem:[%s210 + $0x2c] sm:$0x1]
        %v316 = vld [vmem:[%s210 + $0x38] sm:$0x1]
        %v317 = vld [vmem:[%s210 + $0x44] sm:$0x1]
        %v318 = vld [vmem:[%s210 + $0x50] sm:$0x1]
        %v319 = vld [vmem:[%s210 + $0x5c] sm:$0x1]
        %v320 = vld [vmem:[%s210 + $0x68] sm:$0x1]
        %v321 = vld [vmem:[%s210 + $0x74] sm:$0x1]
        %v322 = vld [vmem:[%s210 + $0x80] sm:$0x1]
        %v323 = vld [vmem:[%s210 + $0x8c] sm:$0x1]
        %v324 = vld [vmem:[%s210 + $0x98] sm:$0x1]
        %v325 = vld [vmem:[%s210 + $0xa4] sm:$0x1]
        %v326 = vld [vmem:[%s210 + $0xb0] sm:$0x1]
        %v327 = vld [vmem:[%s210 + $0xbc] sm:$0x1]
        %v328 = vunpack.c.l.bf16 %v312
        %v329 = vunpack.c.l.bf16 %v313
        %v330 = vunpack.c.l.bf16 %v314
        %v331 = vunpack.c.l.bf16 %v315
        %v332 = vunpack.c.l.bf16 %v316
        %v333 = vunpack.c.l.bf16 %v317
        %v334 = vunpack.c.l.bf16 %v318
        %v335 = vunpack.c.l.bf16 %v319
        %v336 = vunpack.c.l.bf16 %v320
        %v337 = vunpack.c.l.bf16 %v321
        %v338 = vunpack.c.l.bf16 %v322
        %v339 = vunpack.c.l.bf16 %v323
        %v340 = vunpack.c.l.bf16 %v324
        %v341 = vunpack.c.l.bf16 %v325
        %v342 = vunpack.c.l.bf16 %v326
        %v343 = vunpack.c.l.bf16 %v327
        %vm392 = vcmask 1046528
        %v393 = vrot.slane %v280, 1
        %v394 = vrot.slane %v281, 1
        %v395 = vsel %vm392, %v393, %v394
        %v396 = vrot.slane %v328, 1
        %v397 = vsel %vm392, %v394, %v396
        %v398 = vrot.slane %v282, 1
        %v399 = vrot.slane %v283, 1
        %v400 = vsel %vm392, %v398, %v399
        %v401 = vrot.slane %v329, 1
        %v402 = vsel %vm392, %v399, %v401
        %v403 = vrot.slane %v284, 1
        %v404 = vrot.slane %v285, 1
        %v405 = vsel %vm392, %v403, %v404
        %v406 = vrot.slane %v330, 1
        %v407 = vsel %vm392, %v404, %v406
        %v408 = vrot.slane %v286, 1
        %v409 = vrot.slane %v287, 1
        %v410 = vsel %vm392, %v408, %v409
        %v411 = vrot.slane %v331, 1
        %v412 = vsel %vm392, %v409, %v411
        %v413 = vrot.slane %v288, 1
        %v414 = vrot.slane %v289, 1
        %v415 = vsel %vm392, %v413, %v414
        %v416 = vrot.slane %v332, 1
        %v417 = vsel %vm392, %v414, %v416
        %v418 = vrot.slane %v290, 1
        %v419 = vrot.slane %v291, 1
        %v420 = vsel %vm392, %v418, %v419
        %v421 = vrot.slane %v333, 1
        %v422 = vsel %vm392, %v419, %v421
        %v423 = vrot.slane %v292, 1
        %v424 = vrot.slane %v293, 1
        %v425 = vsel %vm392, %v423, %v424
        %v426 = vrot.slane %v334, 1
        %v427 = vsel %vm392, %v424, %v426
        %v428 = vrot.slane %v294, 1
        %v429 = vrot.slane %v295, 1
        %v430 = vsel %vm392, %v428, %v429
        %v431 = vrot.slane %v335, 1
        %v432 = vsel %vm392, %v429, %v431
        %v433 = vrot.slane %v296, 1
        %v434 = vrot.slane %v297, 1
        %v435 = vsel %vm392, %v433, %v434
        %v436 = vrot.slane %v336, 1
        %v437 = vsel %vm392, %v434, %v436
        %v438 = vrot.slane %v298, 1
        %v439 = vrot.slane %v299, 1
        %v440 = vsel %vm392, %v438, %v439
        %v441 = vrot.slane %v337, 1
        %v442 = vsel %vm392, %v439, %v441
        %v443 = vrot.slane %v300, 1
        %v444 = vrot.slane %v301, 1
        %v445 = vsel %vm392, %v443, %v444
        %v446 = vrot.slane %v338, 1
        %v447 = vsel %vm392, %v444, %v446
        %v448 = vrot.slane %v302, 1
        %v449 = vrot.slane %v303, 1
        %v450 = vsel %vm392, %v448, %v449
        %v451 = vrot.slane %v339, 1
        %v452 = vsel %vm392, %v449, %v451
        %v453 = vrot.slane %v304, 1
        %v454 = vrot.slane %v305, 1
        %v455 = vsel %vm392, %v453, %v454
        %v456 = vrot.slane %v340, 1
        %v457 = vsel %vm392, %v454, %v456
        %v458 = vrot.slane %v306, 1
        %v459 = vrot.slane %v307, 1
        %v460 = vsel %vm392, %v458, %v459
        %v461 = vrot.slane %v341, 1
        %v462 = vsel %vm392, %v459, %v461
        %v463 = vrot.slane %v308, 1
        %v464 = vrot.slane %v309, 1
        %v465 = vsel %vm392, %v463, %v464
        %v466 = vrot.slane %v342, 1
        %v467 = vsel %vm392, %v464, %v466
        %v468 = vrot.slane %v310, 1
        %v469 = vrot.slane %v311, 1
        %v470 = vsel %vm392, %v468, %v469
        %v471 = vrot.slane %v343, 1
        %v472 = vsel %vm392, %v469, %v471
        %v473 = vld [vmem:[%s210] sm:$0xe]
        %v474 = vld [vmem:[%s210 + $0xc] sm:$0xe]
        %v475 = vld [vmem:[%s210 + $0x18] sm:$0xe]
        %v476 = vld [vmem:[%s210 + $0x24] sm:$0xe]
        %v477 = vld [vmem:[%s210 + $0x30] sm:$0xe]
        %v478 = vld [vmem:[%s210 + $0x3c] sm:$0xe]
        %v479 = vld [vmem:[%s210 + $0x48] sm:$0xe]
        %v480 = vld [vmem:[%s210 + $0x54] sm:$0xe]
        %v481 = vld [vmem:[%s210 + $0x60] sm:$0xe]
        %v482 = vld [vmem:[%s210 + $0x6c] sm:$0xe]
        %v483 = vld [vmem:[%s210 + $0x78] sm:$0xe]
        %v484 = vld [vmem:[%s210 + $0x84] sm:$0xe]
        %v485 = vld [vmem:[%s210 + $0x90] sm:$0xe]
        %v486 = vld [vmem:[%s210 + $0x9c] sm:$0xe]
        %v487 = vld [vmem:[%s210 + $0xa8] sm:$0xe]
        %v488 = vld [vmem:[%s210 + $0xb4] sm:$0xe]
        %v489 = vunpack.c.l.bf16 %v473
        %v490 = vunpack.c.l.bf16 %v474
        %v491 = vunpack.c.l.bf16 %v475
        %v492 = vunpack.c.l.bf16 %v476
        %v493 = vunpack.c.l.bf16 %v477
        %v494 = vunpack.c.l.bf16 %v478
        %v495 = vunpack.c.l.bf16 %v479
        %v496 = vunpack.c.l.bf16 %v480
        %v497 = vunpack.c.l.bf16 %v481
        %v498 = vunpack.c.l.bf16 %v482
        %v499 = vunpack.c.l.bf16 %v483
        %v500 = vunpack.c.l.bf16 %v484
        %v501 = vunpack.c.l.bf16 %v485
        %v502 = vunpack.c.l.bf16 %v486
        %v503 = vunpack.c.l.bf16 %v487
        %v504 = vunpack.c.l.bf16 %v488
        %vm521 = vcmask 1045504
        %v522 = vrot.slane %v489, 2
        %v523 = vrot.slane %v281, 2
        %v524 = vsel %vm521, %v522, %v523
        %v525 = vrot.slane %v328, 2
        %v526 = vsel %vm521, %v523, %v525
        %v527 = vrot.slane %v490, 2
        %v528 = vrot.slane %v283, 2
        %v529 = vsel %vm521, %v527, %v528
        %v530 = vrot.slane %v329, 2
        %v531 = vsel %vm521, %v528, %v530
        %v532 = vrot.slane %v491, 2
        %v533 = vrot.slane %v285, 2
        %v534 = vsel %vm521, %v532, %v533
        %v535 = vrot.slane %v330, 2
        %v536 = vsel %vm521, %v533, %v535
        %v537 = vrot.slane %v492, 2
        %v538 = vrot.slane %v287, 2
        %v539 = vsel %vm521, %v537, %v538
        %v540 = vrot.slane %v331, 2
        %v541 = vsel %vm521, %v538, %v540
        %v542 = vrot.slane %v493, 2
        %v543 = vrot.slane %v289, 2
        %v544 = vsel %vm521, %v542, %v543
        %v545 = vrot.slane %v332, 2
        %v546 = vsel %vm521, %v543, %v545
        %v547 = vrot.slane %v494, 2
        %v548 = vrot.slane %v291, 2
        %v549 = vsel %vm521, %v547, %v548
        %v550 = vrot.slane %v333, 2
        %v551 = vsel %vm521, %v548, %v550
        %v552 = vrot.slane %v495, 2
        %v553 = vrot.slane %v293, 2
        %v554 = vsel %vm521, %v552, %v553
        %v555 = vrot.slane %v334, 2
        %v556 = vsel %vm521, %v553, %v555
        %v557 = vrot.slane %v496, 2
        %v558 = vrot.slane %v295, 2
        %v559 = vsel %vm521, %v557, %v558
        %v560 = vrot.slane %v335, 2
        %v561 = vsel %vm521, %v558, %v560
        %v562 = vrot.slane %v497, 2
        %v563 = vrot.slane %v297, 2
        %v564 = vsel %vm521, %v562, %v563
        %v565 = vrot.slane %v336, 2
        %v566 = vsel %vm521, %v563, %v565
        %v567 = vrot.slane %v498, 2
        %v568 = vrot.slane %v299, 2
        %v569 = vsel %vm521, %v567, %v568
        %v570 = vrot.slane %v337, 2
        %v571 = vsel %vm521, %v568, %v570
        %v572 = vrot.slane %v499, 2
        %v573 = vrot.slane %v301, 2
        %v574 = vsel %vm521, %v572, %v573
        %v575 = vrot.slane %v338, 2
        %v576 = vsel %vm521, %v573, %v575
        %v577 = vrot.slane %v500, 2
        %v578 = vrot.slane %v303, 2
        %v579 = vsel %vm521, %v577, %v578
        %v580 = vrot.slane %v339, 2
        %v581 = vsel %vm521, %v578, %v580
        %v582 = vrot.slane %v501, 2
        %v583 = vrot.slane %v305, 2
        %v584 = vsel %vm521, %v582, %v583
        %v585 = vrot.slane %v340, 2
        %v586 = vsel %vm521, %v583, %v585
        %v587 = vrot.slane %v502, 2
        %v588 = vrot.slane %v307, 2
        %v589 = vsel %vm521, %v587, %v588
        %v590 = vrot.slane %v341, 2
        %v591 = vsel %vm521, %v588, %v590
        %v592 = vrot.slane %v503, 2
        %v593 = vrot.slane %v309, 2
        %v594 = vsel %vm521, %v592, %v593
        %v595 = vrot.slane %v342, 2
        %v596 = vsel %vm521, %v593, %v595
        %v597 = vrot.slane %v504, 2
        %v598 = vrot.slane %v311, 2
        %v599 = vsel %vm521, %v597, %v598
        %v600 = vrot.slane %v343, 2
        %v601 = vsel %vm521, %v598, %v600
        %s602 = scalar_lea.vmem %s210, 12 [#allocation2]
        %v603 = vld [vmem:[%s602] sm:$0xf]
        %v604 = vld [vmem:[%s602 + $0x4] sm:$0xf]
        %v605 = vld [vmem:[%s602 + $0xc] sm:$0xf]
        %v606 = vld [vmem:[%s602 + $0x10] sm:$0xf]
        %v607 = vld [vmem:[%s602 + $0x18] sm:$0xf]
        %v608 = vld [vmem:[%s602 + $0x1c] sm:$0xf]
        %v609 = vld [vmem:[%s602 + $0x24] sm:$0xf]
        %v610 = vld [vmem:[%s602 + $0x28] sm:$0xf]
        %v611 = vld [vmem:[%s602 + $0x30] sm:$0xf]
        %v612 = vld [vmem:[%s602 + $0x34] sm:$0xf]
        %v613 = vld [vmem:[%s602 + $0x3c] sm:$0xf]
        %v614 = vld [vmem:[%s602 + $0x40] sm:$0xf]
        %v615 = vld [vmem:[%s602 + $0x48] sm:$0xf]
        %v616 = vld [vmem:[%s602 + $0x4c] sm:$0xf]
        %v617 = vld [vmem:[%s602 + $0x54] sm:$0xf]
        %v618 = vld [vmem:[%s602 + $0x58] sm:$0xf]
        %v619 = vld [vmem:[%s602 + $0x60] sm:$0xf]
        %v620 = vld [vmem:[%s602 + $0x64] sm:$0xf]
        %v621 = vld [vmem:[%s602 + $0x6c] sm:$0xf]
        %v622 = vld [vmem:[%s602 + $0x70] sm:$0xf]
        %v623 = vld [vmem:[%s602 + $0x78] sm:$0xf]
        %v624 = vld [vmem:[%s602 + $0x7c] sm:$0xf]
        %v625 = vld [vmem:[%s602 + $0x84] sm:$0xf]
        %v626 = vld [vmem:[%s602 + $0x88] sm:$0xf]
        %v627 = vld [vmem:[%s602 + $0x90] sm:$0xf]
        %v628 = vld [vmem:[%s602 + $0x94] sm:$0xf]
        %v629 = vld [vmem:[%s602 + $0x9c] sm:$0xf]
        %v630 = vld [vmem:[%s602 + $0xa0] sm:$0xf]
        %v631 = vld [vmem:[%s602 + $0xa8] sm:$0xf]
        %v632 = vld [vmem:[%s602 + $0xac] sm:$0xf]
        %v633 = vld [vmem:[%s602 + $0xb4] sm:$0xf]
        %v634 = vld [vmem:[%s602 + $0xb8] sm:$0xf]
        %v635 = vunpack.c.l.bf16 %v603
        %v636 = vunpack.c.l.bf16 %v604
        %v637 = vunpack.c.l.bf16 %v605
        %v638 = vunpack.c.l.bf16 %v606
        %v639 = vunpack.c.l.bf16 %v607
        %v640 = vunpack.c.l.bf16 %v608
        %v641 = vunpack.c.l.bf16 %v609
        %v642 = vunpack.c.l.bf16 %v610
        %v643 = vunpack.c.l.bf16 %v611
        %v644 = vunpack.c.l.bf16 %v612
        %v645 = vunpack.c.l.bf16 %v613
        %v646 = vunpack.c.l.bf16 %v614
        %v647 = vunpack.c.l.bf16 %v615
        %v648 = vunpack.c.l.bf16 %v616
        %v649 = vunpack.c.l.bf16 %v617
        %v650 = vunpack.c.l.bf16 %v618
        %v651 = vunpack.c.l.bf16 %v619
        %v652 = vunpack.c.l.bf16 %v620
        %v653 = vunpack.c.l.bf16 %v621
        %v654 = vunpack.c.l.bf16 %v622
        %v655 = vunpack.c.l.bf16 %v623
        %v656 = vunpack.c.l.bf16 %v624
        %v657 = vunpack.c.l.bf16 %v625
        %v658 = vunpack.c.l.bf16 %v626
        %v659 = vunpack.c.l.bf16 %v627
        %v660 = vunpack.c.l.bf16 %v628
        %v661 = vunpack.c.l.bf16 %v629
        %v662 = vunpack.c.l.bf16 %v630
        %v663 = vunpack.c.l.bf16 %v631
        %v664 = vunpack.c.l.bf16 %v632
        %v665 = vunpack.c.l.bf16 %v633
        %v666 = vunpack.c.l.bf16 %v634
        %v667 = vld [vmem:[%s602 + $0x8] sm:$0x1]
        %v668 = vld [vmem:[%s602 + $0x14] sm:$0x1]
        %v669 = vld [vmem:[%s602 + $0x20] sm:$0x1]
        %v670 = vld [vmem:[%s602 + $0x2c] sm:$0x1]
        %v671 = vld [vmem:[%s602 + $0x38] sm:$0x1]
        %v672 = vld [vmem:[%s602 + $0x44] sm:$0x1]
        %v673 = vld [vmem:[%s602 + $0x50] sm:$0x1]
        %v674 = vld [vmem:[%s602 + $0x5c] sm:$0x1]
        %v675 = vld [vmem:[%s602 + $0x68] sm:$0x1]
        %v676 = vld [vmem:[%s602 + $0x74] sm:$0x1]
        %v677 = vld [vmem:[%s602 + $0x80] sm:$0x1]
        %v678 = vld [vmem:[%s602 + $0x8c] sm:$0x1]
        %v679 = vld [vmem:[%s602 + $0x98] sm:$0x1]
        %v680 = vld [vmem:[%s602 + $0xa4] sm:$0x1]
        %v681 = vld [vmem:[%s602 + $0xb0] sm:$0x1]
        %v682 = vld [vmem:[%s602 + $0xbc] sm:$0x1]
        %v683 = vunpack.c.l.bf16 %v667
        %v684 = vunpack.c.l.bf16 %v668
        %v685 = vunpack.c.l.bf16 %v669
        %v686 = vunpack.c.l.bf16 %v670
        %v687 = vunpack.c.l.bf16 %v671
        %v688 = vunpack.c.l.bf16 %v672
        %v689 = vunpack.c.l.bf16 %v673
        %v690 = vunpack.c.l.bf16 %v674
        %v691 = vunpack.c.l.bf16 %v675
        %v692 = vunpack.c.l.bf16 %v676
        %v693 = vunpack.c.l.bf16 %v677
        %v694 = vunpack.c.l.bf16 %v678
        %v695 = vunpack.c.l.bf16 %v679
        %v696 = vunpack.c.l.bf16 %v680
        %v697 = vunpack.c.l.bf16 %v681
        %v698 = vunpack.c.l.bf16 %v682
        %v747 = vrot.slane %v635, 1
        %v748 = vrot.slane %v636, 1
        %v749 = vsel %vm392, %v747, %v748
        %v750 = vrot.slane %v683, 1
        %v751 = vsel %vm392, %v748, %v750
        %v752 = vrot.slane %v637, 1
        %v753 = vrot.slane %v638, 1
        %v754 = vsel %vm392, %v752, %v753
        %v755 = vrot.slane %v684, 1
        %v756 = vsel %vm392, %v753, %v755
        %v757 = vrot.slane %v639, 1
        %v758 = vrot.slane %v640, 1
        %v759 = vsel %vm392, %v757, %v758
        %v760 = vrot.slane %v685, 1
        %v761 = vsel %vm392, %v758, %v760
        %v762 = vrot.slane %v641, 1
        %v763 = vrot.slane %v642, 1
        %v764 = vsel %vm392, %v762, %v763
        %v765 = vrot.slane %v686, 1
        %v766 = vsel %vm392, %v763, %v765
        %v767 = vrot.slane %v643, 1
        %v768 = vrot.slane %v644, 1
        %v769 = vsel %vm392, %v767, %v768
        %v770 = vrot.slane %v687, 1
        %v771 = vsel %vm392, %v768, %v770
        %v772 = vrot.slane %v645, 1
        %v773 = vrot.slane %v646, 1
        %v774 = vsel %vm392, %v772, %v773
        %v775 = vrot.slane %v688, 1
        %v776 = vsel %vm392, %v773, %v775
        %v777 = vrot.slane %v647, 1
        %v778 = vrot.slane %v648, 1
        %v779 = vsel %vm392, %v777, %v778
        %v780 = vrot.slane %v689, 1
        %v781 = vsel %vm392, %v778, %v780
        %v782 = vrot.slane %v649, 1
        %v783 = vrot.slane %v650, 1
        %v784 = vsel %vm392, %v782, %v783
        %v785 = vrot.slane %v690, 1
        %v786 = vsel %vm392, %v783, %v785
        %v787 = vrot.slane %v651, 1
        %v788 = vrot.slane %v652, 1
        %v789 = vsel %vm392, %v787, %v788
        %v790 = vrot.slane %v691, 1
        %v791 = vsel %vm392, %v788, %v790
        %v792 = vrot.slane %v653, 1
        %v793 = vrot.slane %v654, 1
        %v794 = vsel %vm392, %v792, %v793
        %v795 = vrot.slane %v692, 1
        %v796 = vsel %vm392, %v793, %v795
        %v797 = vrot.slane %v655, 1
        %v798 = vrot.slane %v656, 1
        %v799 = vsel %vm392, %v797, %v798
        %v800 = vrot.slane %v693, 1
        %v801 = vsel %vm392, %v798, %v800
        %v802 = vrot.slane %v657, 1
        %v803 = vrot.slane %v658, 1
        %v804 = vsel %vm392, %v802, %v803
        %v805 = vrot.slane %v694, 1
        %v806 = vsel %vm392, %v803, %v805
        %v807 = vrot.slane %v659, 1
        %v808 = vrot.slane %v660, 1
        %v809 = vsel %vm392, %v807, %v808
        %v810 = vrot.slane %v695, 1
        %v811 = vsel %vm392, %v808, %v810
        %v812 = vrot.slane %v661, 1
        %v813 = vrot.slane %v662, 1
        %v814 = vsel %vm392, %v812, %v813
        %v815 = vrot.slane %v696, 1
        %v816 = vsel %vm392, %v813, %v815
        %v817 = vrot.slane %v663, 1
        %v818 = vrot.slane %v664, 1
        %v819 = vsel %vm392, %v817, %v818
        %v820 = vrot.slane %v697, 1
        %v821 = vsel %vm392, %v818, %v820
        %v822 = vrot.slane %v665, 1
        %v823 = vrot.slane %v666, 1
        %v824 = vsel %vm392, %v822, %v823
        %v825 = vrot.slane %v698, 1
        %v826 = vsel %vm392, %v823, %v825
        %v827 = vld [vmem:[%s602] sm:$0xe]
        %v828 = vld [vmem:[%s602 + $0xc] sm:$0xe]
        %v829 = vld [vmem:[%s602 + $0x18] sm:$0xe]
        %v830 = vld [vmem:[%s602 + $0x24] sm:$0xe]
        %v831 = vld [vmem:[%s602 + $0x30] sm:$0xe]
        %v832 = vld [vmem:[%s602 + $0x3c] sm:$0xe]
        %v833 = vld [vmem:[%s602 + $0x48] sm:$0xe]
        %v834 = vld [vmem:[%s602 + $0x54] sm:$0xe]
        %v835 = vld [vmem:[%s602 + $0x60] sm:$0xe]
        %v836 = vld [vmem:[%s602 + $0x6c] sm:$0xe]
        %v837 = vld [vmem:[%s602 + $0x78] sm:$0xe]
        %v838 = vld [vmem:[%s602 + $0x84] sm:$0xe]
        %v839 = vld [vmem:[%s602 + $0x90] sm:$0xe]
        %v840 = vld [vmem:[%s602 + $0x9c] sm:$0xe]
        %v841 = vld [vmem:[%s602 + $0xa8] sm:$0xe]
        %v842 = vld [vmem:[%s602 + $0xb4] sm:$0xe]
        %v843 = vunpack.c.l.bf16 %v827
        %v844 = vunpack.c.l.bf16 %v828
        %v845 = vunpack.c.l.bf16 %v829
        %v846 = vunpack.c.l.bf16 %v830
        %v847 = vunpack.c.l.bf16 %v831
        %v848 = vunpack.c.l.bf16 %v832
        %v849 = vunpack.c.l.bf16 %v833
        %v850 = vunpack.c.l.bf16 %v834
        %v851 = vunpack.c.l.bf16 %v835
        %v852 = vunpack.c.l.bf16 %v836
        %v853 = vunpack.c.l.bf16 %v837
        %v854 = vunpack.c.l.bf16 %v838
        %v855 = vunpack.c.l.bf16 %v839
        %v856 = vunpack.c.l.bf16 %v840
        %v857 = vunpack.c.l.bf16 %v841
        %v858 = vunpack.c.l.bf16 %v842
        %v875 = vrot.slane %v843, 2
        %v876 = vrot.slane %v636, 2
        %v877 = vsel %vm521, %v875, %v876
        %v878 = vrot.slane %v683, 2
        %v879 = vsel %vm521, %v876, %v878
        %v880 = vrot.slane %v844, 2
        %v881 = vrot.slane %v638, 2
        %v882 = vsel %vm521, %v880, %v881
        %v883 = vrot.slane %v684, 2
        %v884 = vsel %vm521, %v881, %v883
        %v885 = vrot.slane %v845, 2
        %v886 = vrot.slane %v640, 2
        %v887 = vsel %vm521, %v885, %v886
        %v888 = vrot.slane %v685, 2
        %v889 = vsel %vm521, %v886, %v888
        %v890 = vrot.slane %v846, 2
        %v891 = vrot.slane %v642, 2
        %v892 = vsel %vm521, %v890, %v891
        %v893 = vrot.slane %v686, 2
        %v894 = vsel %vm521, %v891, %v893
        %v895 = vrot.slane %v847, 2
        %v896 = vrot.slane %v644, 2
        %v897 = vsel %vm521, %v895, %v896
        %v898 = vrot.slane %v687, 2
        %v899 = vsel %vm521, %v896, %v898
        %v900 = vrot.slane %v848, 2
        %v901 = vrot.slane %v646, 2
        %v902 = vsel %vm521, %v900, %v901
        %v903 = vrot.slane %v688, 2
        %v904 = vsel %vm521, %v901, %v903
        %v905 = vrot.slane %v849, 2
        %v906 = vrot.slane %v648, 2
        %v907 = vsel %vm521, %v905, %v906
        %v908 = vrot.slane %v689, 2
        %v909 = vsel %vm521, %v906, %v908
        %v910 = vrot.slane %v850, 2
        %v911 = vrot.slane %v650, 2
        %v912 = vsel %vm521, %v910, %v911
        %v913 = vrot.slane %v690, 2
        %v914 = vsel %vm521, %v911, %v913
        %v915 = vrot.slane %v851, 2
        %v916 = vrot.slane %v652, 2
        %v917 = vsel %vm521, %v915, %v916
        %v918 = vrot.slane %v691, 2
        %v919 = vsel %vm521, %v916, %v918
        %v920 = vrot.slane %v852, 2
        %v921 = vrot.slane %v654, 2
        %v922 = vsel %vm521, %v920, %v921
        %v923 = vrot.slane %v692, 2
        %v924 = vsel %vm521, %v921, %v923
        %v925 = vrot.slane %v853, 2
        %v926 = vrot.slane %v656, 2
        %v927 = vsel %vm521, %v925, %v926
        %v928 = vrot.slane %v693, 2
        %v929 = vsel %vm521, %v926, %v928
        %v930 = vrot.slane %v854, 2
        %v931 = vrot.slane %v658, 2
        %v932 = vsel %vm521, %v930, %v931
        %v933 = vrot.slane %v694, 2
        %v934 = vsel %vm521, %v931, %v933
        %v935 = vrot.slane %v855, 2
        %v936 = vrot.slane %v660, 2
        %v937 = vsel %vm521, %v935, %v936
        %v938 = vrot.slane %v695, 2
        %v939 = vsel %vm521, %v936, %v938
        %v940 = vrot.slane %v856, 2
        %v941 = vrot.slane %v662, 2
        %v942 = vsel %vm521, %v940, %v941
        %v943 = vrot.slane %v696, 2
        %v944 = vsel %vm521, %v941, %v943
        %v945 = vrot.slane %v857, 2
        %v946 = vrot.slane %v664, 2
        %v947 = vsel %vm521, %v945, %v946
        %v948 = vrot.slane %v697, 2
        %v949 = vsel %vm521, %v946, %v948
        %v950 = vrot.slane %v858, 2
        %v951 = vrot.slane %v666, 2
        %v952 = vsel %vm521, %v950, %v951
        %v953 = vrot.slane %v698, 2
        %v954 = vsel %vm521, %v951, %v953
        %s955 = scalar_lea.vmem %s210, 24 [#allocation2]
        %v956 = vld [vmem:[%s955] sm:$0xf]
        %v957 = vld [vmem:[%s955 + $0x4] sm:$0xf]
        %v958 = vld [vmem:[%s955 + $0xc] sm:$0xf]
        %v959 = vld [vmem:[%s955 + $0x10] sm:$0xf]
        %v960 = vld [vmem:[%s955 + $0x18] sm:$0xf]
        %v961 = vld [vmem:[%s955 + $0x1c] sm:$0xf]
        %v962 = vld [vmem:[%s955 + $0x24] sm:$0xf]
        %v963 = vld [vmem:[%s955 + $0x28] sm:$0xf]
        %v964 = vld [vmem:[%s955 + $0x30] sm:$0xf]
        %v965 = vld [vmem:[%s955 + $0x34] sm:$0xf]
        %v966 = vld [vmem:[%s955 + $0x3c] sm:$0xf]
        %v967 = vld [vmem:[%s955 + $0x40] sm:$0xf]
        %v968 = vld [vmem:[%s955 + $0x48] sm:$0xf]
        %v969 = vld [vmem:[%s955 + $0x4c] sm:$0xf]
        %v970 = vld [vmem:[%s955 + $0x54] sm:$0xf]
        %v971 = vld [vmem:[%s955 + $0x58] sm:$0xf]
        %v972 = vld [vmem:[%s955 + $0x60] sm:$0xf]
        %v973 = vld [vmem:[%s955 + $0x64] sm:$0xf]
        %v974 = vld [vmem:[%s955 + $0x6c] sm:$0xf]
        %v975 = vld [vmem:[%s955 + $0x70] sm:$0xf]
        %v976 = vld [vmem:[%s955 + $0x78] sm:$0xf]
        %v977 = vld [vmem:[%s955 + $0x7c] sm:$0xf]
        %v978 = vld [vmem:[%s955 + $0x84] sm:$0xf]
        %v979 = vld [vmem:[%s955 + $0x88] sm:$0xf]
        %v980 = vld [vmem:[%s955 + $0x90] sm:$0xf]
        %v981 = vld [vmem:[%s955 + $0x94] sm:$0xf]
        %v982 = vld [vmem:[%s955 + $0x9c] sm:$0xf]
        %v983 = vld [vmem:[%s955 + $0xa0] sm:$0xf]
        %v984 = vld [vmem:[%s955 + $0xa8] sm:$0xf]
        %v985 = vld [vmem:[%s955 + $0xac] sm:$0xf]
        %v986 = vld [vmem:[%s955 + $0xb4] sm:$0xf]
        %v987 = vld [vmem:[%s955 + $0xb8] sm:$0xf]
        %v988 = vunpack.c.l.bf16 %v956
        %v989 = vunpack.c.l.bf16 %v957
        %v990 = vunpack.c.l.bf16 %v958
        %v991 = vunpack.c.l.bf16 %v959
        %v992 = vunpack.c.l.bf16 %v960
        %v993 = vunpack.c.l.bf16 %v961
        %v994 = vunpack.c.l.bf16 %v962
        %v995 = vunpack.c.l.bf16 %v963
        %v996 = vunpack.c.l.bf16 %v964
        %v997 = vunpack.c.l.bf16 %v965
        %v998 = vunpack.c.l.bf16 %v966
        %v999 = vunpack.c.l.bf16 %v967
        %v1000 = vunpack.c.l.bf16 %v968
        %v1001 = vunpack.c.l.bf16 %v969
        %v1002 = vunpack.c.l.bf16 %v970
        %v1003 = vunpack.c.l.bf16 %v971
        %v1004 = vunpack.c.l.bf16 %v972
        %v1005 = vunpack.c.l.bf16 %v973
        %v1006 = vunpack.c.l.bf16 %v974
        %v1007 = vunpack.c.l.bf16 %v975
        %v1008 = vunpack.c.l.bf16 %v976
        %v1009 = vunpack.c.l.bf16 %v977
        %v1010 = vunpack.c.l.bf16 %v978
        %v1011 = vunpack.c.l.bf16 %v979
        %v1012 = vunpack.c.l.bf16 %v980
        %v1013 = vunpack.c.l.bf16 %v981
        %v1014 = vunpack.c.l.bf16 %v982
        %v1015 = vunpack.c.l.bf16 %v983
        %v1016 = vunpack.c.l.bf16 %v984
        %v1017 = vunpack.c.l.bf16 %v985
        %v1018 = vunpack.c.l.bf16 %v986
        %v1019 = vunpack.c.l.bf16 %v987
        %v1020 = vld [vmem:[%s955 + $0x8] sm:$0x1]
        %v1021 = vld [vmem:[%s955 + $0x14] sm:$0x1]
        %v1022 = vld [vmem:[%s955 + $0x20] sm:$0x1]
        %v1023 = vld [vmem:[%s955 + $0x2c] sm:$0x1]
        %v1024 = vld [vmem:[%s955 + $0x38] sm:$0x1]
        %v1025 = vld [vmem:[%s955 + $0x44] sm:$0x1]
        %v1026 = vld [vmem:[%s955 + $0x50] sm:$0x1]
        %v1027 = vld [vmem:[%s955 + $0x5c] sm:$0x1]
        %v1028 = vld [vmem:[%s955 + $0x68] sm:$0x1]
        %v1029 = vld [vmem:[%s955 + $0x74] sm:$0x1]
        %v1030 = vld [vmem:[%s955 + $0x80] sm:$0x1]
        %v1031 = vld [vmem:[%s955 + $0x8c] sm:$0x1]
        %v1032 = vld [vmem:[%s955 + $0x98] sm:$0x1]
        %v1033 = vld [vmem:[%s955 + $0xa4] sm:$0x1]
        %v1034 = vld [vmem:[%s955 + $0xb0] sm:$0x1]
        %v1035 = vld [vmem:[%s955 + $0xbc] sm:$0x1]
        %v1036 = vunpack.c.l.bf16 %v1020
        %v1037 = vunpack.c.l.bf16 %v1021
        %v1038 = vunpack.c.l.bf16 %v1022
        %v1039 = vunpack.c.l.bf16 %v1023
        %v1040 = vunpack.c.l.bf16 %v1024
        %v1041 = vunpack.c.l.bf16 %v1025
        %v1042 = vunpack.c.l.bf16 %v1026
        %v1043 = vunpack.c.l.bf16 %v1027
        %v1044 = vunpack.c.l.bf16 %v1028
        %v1045 = vunpack.c.l.bf16 %v1029
        %v1046 = vunpack.c.l.bf16 %v1030
        %v1047 = vunpack.c.l.bf16 %v1031
        %v1048 = vunpack.c.l.bf16 %v1032
        %v1049 = vunpack.c.l.bf16 %v1033
        %v1050 = vunpack.c.l.bf16 %v1034
        %v1051 = vunpack.c.l.bf16 %v1035
        %v1100 = vrot.slane %v988, 1
        %v1101 = vrot.slane %v989, 1
        %v1102 = vsel %vm392, %v1100, %v1101
        %v1103 = vrot.slane %v1036, 1
        %v1104 = vsel %vm392, %v1101, %v1103
        %v1105 = vrot.slane %v990, 1
        %v1106 = vrot.slane %v991, 1
        %v1107 = vsel %vm392, %v1105, %v1106
        %v1108 = vrot.slane %v1037, 1
        %v1109 = vsel %vm392, %v1106, %v1108
        %v1110 = vrot.slane %v992, 1
        %v1111 = vrot.slane %v993, 1
        %v1112 = vsel %vm392, %v1110, %v1111
        %v1113 = vrot.slane %v1038, 1
        %v1114 = vsel %vm392, %v1111, %v1113
        %v1115 = vrot.slane %v994, 1
        %v1116 = vrot.slane %v995, 1
        %v1117 = vsel %vm392, %v1115, %v1116
        %v1118 = vrot.slane %v1039, 1
        %v1119 = vsel %vm392, %v1116, %v1118
        %v1120 = vrot.slane %v996, 1
        %v1121 = vrot.slane %v997, 1
        %v1122 = vsel %vm392, %v1120, %v1121
        %v1123 = vrot.slane %v1040, 1
        %v1124 = vsel %vm392, %v1121, %v1123
        %v1125 = vrot.slane %v998, 1
        %v1126 = vrot.slane %v999, 1
        %v1127 = vsel %vm392, %v1125, %v1126
        %v1128 = vrot.slane %v1041, 1
        %v1129 = vsel %vm392, %v1126, %v1128
        %v1130 = vrot.slane %v1000, 1
        %v1131 = vrot.slane %v1001, 1
        %v1132 = vsel %vm392, %v1130, %v1131
        %v1133 = vrot.slane %v1042, 1
        %v1134 = vsel %vm392, %v1131, %v1133
        %v1135 = vrot.slane %v1002, 1
        %v1136 = vrot.slane %v1003, 1
        %v1137 = vsel %vm392, %v1135, %v1136
        %v1138 = vrot.slane %v1043, 1
        %v1139 = vsel %vm392, %v1136, %v1138
        %v1140 = vrot.slane %v1004, 1
        %v1141 = vrot.slane %v1005, 1
        %v1142 = vsel %vm392, %v1140, %v1141
        %v1143 = vrot.slane %v1044, 1
        %v1144 = vsel %vm392, %v1141, %v1143
        %v1145 = vrot.slane %v1006, 1
        %v1146 = vrot.slane %v1007, 1
        %v1147 = vsel %vm392, %v1145, %v1146
        %v1148 = vrot.slane %v1045, 1
        %v1149 = vsel %vm392, %v1146, %v1148
        %v1150 = vrot.slane %v1008, 1
        %v1151 = vrot.slane %v1009, 1
        %v1152 = vsel %vm392, %v1150, %v1151
        %v1153 = vrot.slane %v1046, 1
        %v1154 = vsel %vm392, %v1151, %v1153
        %v1155 = vrot.slane %v1010, 1
        %v1156 = vrot.slane %v1011, 1
        %v1157 = vsel %vm392, %v1155, %v1156
        %v1158 = vrot.slane %v1047, 1
        %v1159 = vsel %vm392, %v1156, %v1158
        %v1160 = vrot.slane %v1012, 1
        %v1161 = vrot.slane %v1013, 1
        %v1162 = vsel %vm392, %v1160, %v1161
        %v1163 = vrot.slane %v1048, 1
        %v1164 = vsel %vm392, %v1161, %v1163
        %v1165 = vrot.slane %v1014, 1
        %v1166 = vrot.slane %v1015, 1
        %v1167 = vsel %vm392, %v1165, %v1166
        %v1168 = vrot.slane %v1049, 1
        %v1169 = vsel %vm392, %v1166, %v1168
        %v1170 = vrot.slane %v1016, 1
        %v1171 = vrot.slane %v1017, 1
        %v1172 = vsel %vm392, %v1170, %v1171
        %v1173 = vrot.slane %v1050, 1
        %v1174 = vsel %vm392, %v1171, %v1173
        %v1175 = vrot.slane %v1018, 1
        %v1176 = vrot.slane %v1019, 1
        %v1177 = vsel %vm392, %v1175, %v1176
        %v1178 = vrot.slane %v1051, 1
        %v1179 = vsel %vm392, %v1176, %v1178
        %v1180 = vld [vmem:[%s955] sm:$0xe]
        %v1181 = vld [vmem:[%s955 + $0xc] sm:$0xe]
        %v1182 = vld [vmem:[%s955 + $0x18] sm:$0xe]
        %v1183 = vld [vmem:[%s955 + $0x24] sm:$0xe]
        %v1184 = vld [vmem:[%s955 + $0x30] sm:$0xe]
        %v1185 = vld [vmem:[%s955 + $0x3c] sm:$0xe]
        %v1186 = vld [vmem:[%s955 + $0x48] sm:$0xe]
        %v1187 = vld [vmem:[%s955 + $0x54] sm:$0xe]
        %v1188 = vld [vmem:[%s955 + $0x60] sm:$0xe]
        %v1189 = vld [vmem:[%s955 + $0x6c] sm:$0xe]
        %v1190 = vld [vmem:[%s955 + $0x78] sm:$0xe]
        %v1191 = vld [vmem:[%s955 + $0x84] sm:$0xe]
        %v1192 = vld [vmem:[%s955 + $0x90] sm:$0xe]
        %v1193 = vld [vmem:[%s955 + $0x9c] sm:$0xe]
        %v1194 = vld [vmem:[%s955 + $0xa8] sm:$0xe]
        %v1195 = vld [vmem:[%s955 + $0xb4] sm:$0xe]
        %v1196 = vunpack.c.l.bf16 %v1180
        %v1197 = vunpack.c.l.bf16 %v1181
        %v1198 = vunpack.c.l.bf16 %v1182
        %v1199 = vunpack.c.l.bf16 %v1183
        %v1200 = vunpack.c.l.bf16 %v1184
        %v1201 = vunpack.c.l.bf16 %v1185
        %v1202 = vunpack.c.l.bf16 %v1186
        %v1203 = vunpack.c.l.bf16 %v1187
        %v1204 = vunpack.c.l.bf16 %v1188
        %v1205 = vunpack.c.l.bf16 %v1189
        %v1206 = vunpack.c.l.bf16 %v1190
        %v1207 = vunpack.c.l.bf16 %v1191
        %v1208 = vunpack.c.l.bf16 %v1192
        %v1209 = vunpack.c.l.bf16 %v1193
        %v1210 = vunpack.c.l.bf16 %v1194
        %v1211 = vunpack.c.l.bf16 %v1195
        %v1228 = vrot.slane %v1196, 2
        %v1229 = vrot.slane %v989, 2
        %v1230 = vsel %vm521, %v1228, %v1229
        %v1231 = vrot.slane %v1036, 2
        %v1232 = vsel %vm521, %v1229, %v1231
        %v1233 = vrot.slane %v1197, 2
        %v1234 = vrot.slane %v991, 2
        %v1235 = vsel %vm521, %v1233, %v1234
        %v1236 = vrot.slane %v1037, 2
        %v1237 = vsel %vm521, %v1234, %v1236
        %v1238 = vrot.slane %v1198, 2
        %v1239 = vrot.slane %v993, 2
        %v1240 = vsel %vm521, %v1238, %v1239
        %v1241 = vrot.slane %v1038, 2
        %v1242 = vsel %vm521, %v1239, %v1241
        %v1243 = vrot.slane %v1199, 2
        %v1244 = vrot.slane %v995, 2
        %v1245 = vsel %vm521, %v1243, %v1244
        %v1246 = vrot.slane %v1039, 2
        %v1247 = vsel %vm521, %v1244, %v1246
        %v1248 = vrot.slane %v1200, 2
        %v1249 = vrot.slane %v997, 2
        %v1250 = vsel %vm521, %v1248, %v1249
        %v1251 = vrot.slane %v1040, 2
        %v1252 = vsel %vm521, %v1249, %v1251
        %v1253 = vrot.slane %v1201, 2
        %v1254 = vrot.slane %v999, 2
        %v1255 = vsel %vm521, %v1253, %v1254
        %v1256 = vrot.slane %v1041, 2
        %v1257 = vsel %vm521, %v1254, %v1256
        %v1258 = vrot.slane %v1202, 2
        %v1259 = vrot.slane %v1001, 2
        %v1260 = vsel %vm521, %v1258, %v1259
        %v1261 = vrot.slane %v1042, 2
        %v1262 = vsel %vm521, %v1259, %v1261
        %v1263 = vrot.slane %v1203, 2
        %v1264 = vrot.slane %v1003, 2
        %v1265 = vsel %vm521, %v1263, %v1264
        %v1266 = vrot.slane %v1043, 2
        %v1267 = vsel %vm521, %v1264, %v1266
        %v1268 = vrot.slane %v1204, 2
        %v1269 = vrot.slane %v1005, 2
        %v1270 = vsel %vm521, %v1268, %v1269
        %v1271 = vrot.slane %v1044, 2
        %v1272 = vsel %vm521, %v1269, %v1271
        %v1273 = vrot.slane %v1205, 2
        %v1274 = vrot.slane %v1007, 2
        %v1275 = vsel %vm521, %v1273, %v1274
        %v1276 = vrot.slane %v1045, 2
        %v1277 = vsel %vm521, %v1274, %v1276
        %v1278 = vrot.slane %v1206, 2
        %v1279 = vrot.slane %v1009, 2
        %v1280 = vsel %vm521, %v1278, %v1279
        %v1281 = vrot.slane %v1046, 2
        %v1282 = vsel %vm521, %v1279, %v1281
        %v1283 = vrot.slane %v1207, 2
        %v1284 = vrot.slane %v1011, 2
        %v1285 = vsel %vm521, %v1283, %v1284
        %v1286 = vrot.slane %v1047, 2
        %v1287 = vsel %vm521, %v1284, %v1286
        %v1288 = vrot.slane %v1208, 2
        %v1289 = vrot.slane %v1013, 2
        %v1290 = vsel %vm521, %v1288, %v1289
        %v1291 = vrot.slane %v1048, 2
        %v1292 = vsel %vm521, %v1289, %v1291
        %v1293 = vrot.slane %v1209, 2
        %v1294 = vrot.slane %v1015, 2
        %v1295 = vsel %vm521, %v1293, %v1294
        %v1296 = vrot.slane %v1049, 2
        %v1297 = vsel %vm521, %v1294, %v1296
        %v1298 = vrot.slane %v1210, 2
        %v1299 = vrot.slane %v1017, 2
        %v1300 = vsel %vm521, %v1298, %v1299
        %v1301 = vrot.slane %v1050, 2
        %v1302 = vsel %vm521, %v1299, %v1301
        %v1303 = vrot.slane %v1211, 2
        %v1304 = vrot.slane %v1019, 2
        %v1305 = vsel %vm521, %v1303, %v1304
        %v1306 = vrot.slane %v1051, 2
        %v1307 = vsel %vm521, %v1304, %v1306
        %1308 = vrot.lane.b32.xlu0 %v395, 4
        %v1309 = vpop.permute.xlu0 %1308
        %1310 = vrot.lane.b32.xlu0 %v397, 4
        %v1311 = vpop.permute.xlu0 %1310
        %1312 = vrot.lane.b32.xlu0 %v400, 4
        %v1313 = vpop.permute.xlu0 %1312
        %1314 = vrot.lane.b32.xlu0 %v402, 4
        %v1315 = vpop.permute.xlu0 %1314
        %1316 = vrot.lane.b32.xlu0 %v405, 4
        %v1317 = vpop.permute.xlu0 %1316
        %1318 = vrot.lane.b32.xlu0 %v407, 4
        %v1319 = vpop.permute.xlu0 %1318
        %1320 = vrot.lane.b32.xlu0 %v410, 4
        %v1321 = vpop.permute.xlu0 %1320
        %1322 = vrot.lane.b32.xlu0 %v412, 4
        %v1323 = vpop.permute.xlu0 %1322
        %1324 = vrot.lane.b32.xlu0 %v415, 4
        %v1325 = vpop.permute.xlu0 %1324
        %1326 = vrot.lane.b32.xlu0 %v417, 4
        %v1327 = vpop.permute.xlu0 %1326
        %1328 = vrot.lane.b32.xlu0 %v420, 4
        %v1329 = vpop.permute.xlu0 %1328
        %1330 = vrot.lane.b32.xlu0 %v422, 4
        %v1331 = vpop.permute.xlu0 %1330
        %1332 = vrot.lane.b32.xlu0 %v425, 4
        %v1333 = vpop.permute.xlu0 %1332
        %1334 = vrot.lane.b32.xlu0 %v427, 4
        %v1335 = vpop.permute.xlu0 %1334
        %1336 = vrot.lane.b32.xlu0 %v430, 4
        %v1337 = vpop.permute.xlu0 %1336
        %1338 = vrot.lane.b32.xlu0 %v432, 4
        %v1339 = vpop.permute.xlu0 %1338
        %1340 = vrot.lane.b32.xlu0 %v435, 4
        %v1341 = vpop.permute.xlu0 %1340
        %1342 = vrot.lane.b32.xlu0 %v437, 4
        %v1343 = vpop.permute.xlu0 %1342
        %1344 = vrot.lane.b32.xlu0 %v440, 4
        %v1345 = vpop.permute.xlu0 %1344
        %1346 = vrot.lane.b32.xlu0 %v442, 4
        %v1347 = vpop.permute.xlu0 %1346
        %1348 = vrot.lane.b32.xlu0 %v445, 4
        %v1349 = vpop.permute.xlu0 %1348
        %1350 = vrot.lane.b32.xlu0 %v447, 4
        %v1351 = vpop.permute.xlu0 %1350
        %1352 = vrot.lane.b32.xlu0 %v450, 4
        %v1353 = vpop.permute.xlu0 %1352
        %1354 = vrot.lane.b32.xlu0 %v452, 4
        %v1355 = vpop.permute.xlu0 %1354
        %1356 = vrot.lane.b32.xlu0 %v455, 4
        %v1357 = vpop.permute.xlu0 %1356
        %1358 = vrot.lane.b32.xlu0 %v457, 4
        %v1359 = vpop.permute.xlu0 %1358
        %1360 = vrot.lane.b32.xlu0 %v460, 4
        %v1361 = vpop.permute.xlu0 %1360
        %1362 = vrot.lane.b32.xlu0 %v462, 4
        %v1363 = vpop.permute.xlu0 %1362
        %1364 = vrot.lane.b32.xlu0 %v465, 4
        %v1365 = vpop.permute.xlu0 %1364
        %1366 = vrot.lane.b32.xlu0 %v467, 4
        %v1367 = vpop.permute.xlu0 %1366
        %1368 = vrot.lane.b32.xlu0 %v470, 4
        %v1369 = vpop.permute.xlu0 %1368
        %1370 = vrot.lane.b32.xlu0 %v472, 4
        %v1371 = vpop.permute.xlu0 %1370
        %1404 = vrot.lane.b32.xlu0 %v524, 8
        %v1405 = vpop.permute.xlu0 %1404
        %1406 = vrot.lane.b32.xlu0 %v526, 8
        %v1407 = vpop.permute.xlu0 %1406
        %1408 = vrot.lane.b32.xlu0 %v529, 8
        %v1409 = vpop.permute.xlu0 %1408
        %1410 = vrot.lane.b32.xlu0 %v531, 8
        %v1411 = vpop.permute.xlu0 %1410
        %1412 = vrot.lane.b32.xlu0 %v534, 8
        %v1413 = vpop.permute.xlu0 %1412
        %1414 = vrot.lane.b32.xlu0 %v536, 8
        %v1415 = vpop.permute.xlu0 %1414
        %1416 = vrot.lane.b32.xlu0 %v539, 8
        %v1417 = vpop.permute.xlu0 %1416
        %1418 = vrot.lane.b32.xlu0 %v541, 8
        %v1419 = vpop.permute.xlu0 %1418
        %1420 = vrot.lane.b32.xlu0 %v544, 8
        %v1421 = vpop.permute.xlu0 %1420
        %1422 = vrot.lane.b32.xlu0 %v546, 8
        %v1423 = vpop.permute.xlu0 %1422
        %1424 = vrot.lane.b32.xlu0 %v549, 8
        %v1425 = vpop.permute.xlu0 %1424
        %1426 = vrot.lane.b32.xlu0 %v551, 8
        %v1427 = vpop.permute.xlu0 %1426
        %1428 = vrot.lane.b32.xlu0 %v554, 8
        %v1429 = vpop.permute.xlu0 %1428
        %1430 = vrot.lane.b32.xlu0 %v556, 8
        %v1431 = vpop.permute.xlu0 %1430
        %1432 = vrot.lane.b32.xlu0 %v559, 8
        %v1433 = vpop.permute.xlu0 %1432
        %1434 = vrot.lane.b32.xlu0 %v561, 8
        %v1435 = vpop.permute.xlu0 %1434
        %1436 = vrot.lane.b32.xlu0 %v564, 8
        %v1437 = vpop.permute.xlu0 %1436
        %1438 = vrot.lane.b32.xlu0 %v566, 8
        %v1439 = vpop.permute.xlu0 %1438
        %1440 = vrot.lane.b32.xlu0 %v569, 8
        %v1441 = vpop.permute.xlu0 %1440
        %1442 = vrot.lane.b32.xlu0 %v571, 8
        %v1443 = vpop.permute.xlu0 %1442
        %1444 = vrot.lane.b32.xlu0 %v574, 8
        %v1445 = vpop.permute.xlu0 %1444
        %1446 = vrot.lane.b32.xlu0 %v576, 8
        %v1447 = vpop.permute.xlu0 %1446
        %1448 = vrot.lane.b32.xlu0 %v579, 8
        %v1449 = vpop.permute.xlu0 %1448
        %1450 = vrot.lane.b32.xlu0 %v581, 8
        %v1451 = vpop.permute.xlu0 %1450
        %1452 = vrot.lane.b32.xlu0 %v584, 8
        %v1453 = vpop.permute.xlu0 %1452
        %1454 = vrot.lane.b32.xlu0 %v586, 8
        %v1455 = vpop.permute.xlu0 %1454
        %1456 = vrot.lane.b32.xlu0 %v589, 8
        %v1457 = vpop.permute.xlu0 %1456
        %1458 = vrot.lane.b32.xlu0 %v591, 8
        %v1459 = vpop.permute.xlu0 %1458
        %1460 = vrot.lane.b32.xlu0 %v594, 8
        %v1461 = vpop.permute.xlu0 %1460
        %1462 = vrot.lane.b32.xlu0 %v596, 8
        %v1463 = vpop.permute.xlu0 %1462
        %1464 = vrot.lane.b32.xlu0 %v599, 8
        %v1465 = vpop.permute.xlu0 %1464
        %1466 = vrot.lane.b32.xlu0 %v601, 8
        %v1467 = vpop.permute.xlu0 %1466
        %1500 = vrot.lane.b32.xlu0 %v635, 12
        %v1501 = vpop.permute.xlu0 %1500
        %1502 = vrot.lane.b32.xlu0 %v636, 12
        %v1503 = vpop.permute.xlu0 %1502
        %1504 = vrot.lane.b32.xlu0 %v637, 12
        %v1505 = vpop.permute.xlu0 %1504
        %1506 = vrot.lane.b32.xlu0 %v638, 12
        %v1507 = vpop.permute.xlu0 %1506
        %1508 = vrot.lane.b32.xlu0 %v639, 12
        %v1509 = vpop.permute.xlu0 %1508
        %1510 = vrot.lane.b32.xlu0 %v640, 12
        %v1511 = vpop.permute.xlu0 %1510
        %1512 = vrot.lane.b32.xlu0 %v641, 12
        %v1513 = vpop.permute.xlu0 %1512
        %1514 = vrot.lane.b32.xlu0 %v642, 12
        %v1515 = vpop.permute.xlu0 %1514
        %1516 = vrot.lane.b32.xlu0 %v643, 12
        %v1517 = vpop.permute.xlu0 %1516
        %1518 = vrot.lane.b32.xlu0 %v644, 12
        %v1519 = vpop.permute.xlu0 %1518
        %1520 = vrot.lane.b32.xlu0 %v645, 12
        %v1521 = vpop.permute.xlu0 %1520
        %1522 = vrot.lane.b32.xlu0 %v646, 12
        %v1523 = vpop.permute.xlu0 %1522
        %1524 = vrot.lane.b32.xlu0 %v647, 12
        %v1525 = vpop.permute.xlu0 %1524
        %1526 = vrot.lane.b32.xlu0 %v648, 12
        %v1527 = vpop.permute.xlu0 %1526
        %1528 = vrot.lane.b32.xlu0 %v649, 12
        %v1529 = vpop.permute.xlu0 %1528
        %1530 = vrot.lane.b32.xlu0 %v650, 12
        %v1531 = vpop.permute.xlu0 %1530
        %1532 = vrot.lane.b32.xlu0 %v651, 12
        %v1533 = vpop.permute.xlu0 %1532
        %1534 = vrot.lane.b32.xlu0 %v652, 12
        %v1535 = vpop.permute.xlu0 %1534
        %1536 = vrot.lane.b32.xlu0 %v653, 12
        %v1537 = vpop.permute.xlu0 %1536
        %1538 = vrot.lane.b32.xlu0 %v654, 12
        %v1539 = vpop.permute.xlu0 %1538
        %1540 = vrot.lane.b32.xlu0 %v655, 12
        %v1541 = vpop.permute.xlu0 %1540
        %1542 = vrot.lane.b32.xlu0 %v656, 12
        %v1543 = vpop.permute.xlu0 %1542
        %1544 = vrot.lane.b32.xlu0 %v657, 12
        %v1545 = vpop.permute.xlu0 %1544
        %1546 = vrot.lane.b32.xlu0 %v658, 12
        %v1547 = vpop.permute.xlu0 %1546
        %1548 = vrot.lane.b32.xlu0 %v659, 12
        %v1549 = vpop.permute.xlu0 %1548
        %1550 = vrot.lane.b32.xlu0 %v660, 12
        %v1551 = vpop.permute.xlu0 %1550
        %1552 = vrot.lane.b32.xlu0 %v661, 12
        %v1553 = vpop.permute.xlu0 %1552
        %1554 = vrot.lane.b32.xlu0 %v662, 12
        %v1555 = vpop.permute.xlu0 %1554
        %1556 = vrot.lane.b32.xlu0 %v663, 12
        %v1557 = vpop.permute.xlu0 %1556
        %1558 = vrot.lane.b32.xlu0 %v664, 12
        %v1559 = vpop.permute.xlu0 %1558
        %1560 = vrot.lane.b32.xlu0 %v665, 12
        %v1561 = vpop.permute.xlu0 %1560
        %1562 = vrot.lane.b32.xlu0 %v666, 12
        %v1563 = vpop.permute.xlu0 %1562
        %1596 = vrot.lane.b32.xlu0 %v749, 16
        %v1597 = vpop.permute.xlu0 %1596
        %1598 = vrot.lane.b32.xlu0 %v751, 16
        %v1599 = vpop.permute.xlu0 %1598
        %1600 = vrot.lane.b32.xlu0 %v754, 16
        %v1601 = vpop.permute.xlu0 %1600
        %1602 = vrot.lane.b32.xlu0 %v756, 16
        %v1603 = vpop.permute.xlu0 %1602
        %1604 = vrot.lane.b32.xlu0 %v759, 16
        %v1605 = vpop.permute.xlu0 %1604
        %1606 = vrot.lane.b32.xlu0 %v761, 16
        %v1607 = vpop.permute.xlu0 %1606
        %1608 = vrot.lane.b32.xlu0 %v764, 16
        %v1609 = vpop.permute.xlu0 %1608
        %1610 = vrot.lane.b32.xlu0 %v766, 16
        %v1611 = vpop.permute.xlu0 %1610
        %1612 = vrot.lane.b32.xlu0 %v769, 16
        %v1613 = vpop.permute.xlu0 %1612
        %1614 = vrot.lane.b32.xlu0 %v771, 16
        %v1615 = vpop.permute.xlu0 %1614
        %1616 = vrot.lane.b32.xlu0 %v774, 16
        %v1617 = vpop.permute.xlu0 %1616
        %1618 = vrot.lane.b32.xlu0 %v776, 16
        %v1619 = vpop.permute.xlu0 %1618
        %1620 = vrot.lane.b32.xlu0 %v779, 16
        %v1621 = vpop.permute.xlu0 %1620
        %1622 = vrot.lane.b32.xlu0 %v781, 16
        %v1623 = vpop.permute.xlu0 %1622
        %1624 = vrot.lane.b32.xlu0 %v784, 16
        %v1625 = vpop.permute.xlu0 %1624
        %1626 = vrot.lane.b32.xlu0 %v786, 16
        %v1627 = vpop.permute.xlu0 %1626
        %1628 = vrot.lane.b32.xlu0 %v789, 16
        %v1629 = vpop.permute.xlu0 %1628
        %1630 = vrot.lane.b32.xlu0 %v791, 16
        %v1631 = vpop.permute.xlu0 %1630
        %1632 = vrot.lane.b32.xlu0 %v794, 16
        %v1633 = vpop.permute.xlu0 %1632
        %1634 = vrot.lane.b32.xlu0 %v796, 16
        %v1635 = vpop.permute.xlu0 %1634
        %1636 = vrot.lane.b32.xlu0 %v799, 16
        %v1637 = vpop.permute.xlu0 %1636
        %1638 = vrot.lane.b32.xlu0 %v801, 16
        %v1639 = vpop.permute.xlu0 %1638
        %1640 = vrot.lane.b32.xlu0 %v804, 16
        %v1641 = vpop.permute.xlu0 %1640
        %1642 = vrot.lane.b32.xlu0 %v806, 16
        %v1643 = vpop.permute.xlu0 %1642
        %1644 = vrot.lane.b32.xlu0 %v809, 16
        %v1645 = vpop.permute.xlu0 %1644
        %1646 = vrot.lane.b32.xlu0 %v811, 16
        %v1647 = vpop.permute.xlu0 %1646
        %1648 = vrot.lane.b32.xlu0 %v814, 16
        %v1649 = vpop.permute.xlu0 %1648
        %1650 = vrot.lane.b32.xlu0 %v816, 16
        %v1651 = vpop.permute.xlu0 %1650
        %1652 = vrot.lane.b32.xlu0 %v819, 16
        %v1653 = vpop.permute.xlu0 %1652
        %1654 = vrot.lane.b32.xlu0 %v821, 16
        %v1655 = vpop.permute.xlu0 %1654
        %1656 = vrot.lane.b32.xlu0 %v824, 16
        %v1657 = vpop.permute.xlu0 %1656
        %1658 = vrot.lane.b32.xlu0 %v826, 16
        %v1659 = vpop.permute.xlu0 %1658
        %1692 = vrot.lane.b32.xlu0 %v877, 20
        %v1693 = vpop.permute.xlu0 %1692
        %1694 = vrot.lane.b32.xlu0 %v879, 20
        %v1695 = vpop.permute.xlu0 %1694
        %1696 = vrot.lane.b32.xlu0 %v882, 20
        %v1697 = vpop.permute.xlu0 %1696
        %1698 = vrot.lane.b32.xlu0 %v884, 20
        %v1699 = vpop.permute.xlu0 %1698
        %1700 = vrot.lane.b32.xlu0 %v887, 20
        %v1701 = vpop.permute.xlu0 %1700
        %1702 = vrot.lane.b32.xlu0 %v889, 20
        %v1703 = vpop.permute.xlu0 %1702
        %1704 = vrot.lane.b32.xlu0 %v892, 20
        %v1705 = vpop.permute.xlu0 %1704
        %1706 = vrot.lane.b32.xlu0 %v894, 20
        %v1707 = vpop.permute.xlu0 %1706
        %1708 = vrot.lane.b32.xlu0 %v897, 20
        %v1709 = vpop.permute.xlu0 %1708
        %1710 = vrot.lane.b32.xlu0 %v899, 20
        %v1711 = vpop.permute.xlu0 %1710
        %1712 = vrot.lane.b32.xlu0 %v902, 20
        %v1713 = vpop.permute.xlu0 %1712
        %1714 = vrot.lane.b32.xlu0 %v904, 20
        %v1715 = vpop.permute.xlu0 %1714
        %1716 = vrot.lane.b32.xlu0 %v907, 20
        %v1717 = vpop.permute.xlu0 %1716
        %1718 = vrot.lane.b32.xlu0 %v909, 20
        %v1719 = vpop.permute.xlu0 %1718
        %1720 = vrot.lane.b32.xlu0 %v912, 20
        %v1721 = vpop.permute.xlu0 %1720
        %1722 = vrot.lane.b32.xlu0 %v914, 20
        %v1723 = vpop.permute.xlu0 %1722
        %1724 = vrot.lane.b32.xlu0 %v917, 20
        %v1725 = vpop.permute.xlu0 %1724
        %1726 = vrot.lane.b32.xlu0 %v919, 20
        %v1727 = vpop.permute.xlu0 %1726
        %1728 = vrot.lane.b32.xlu0 %v922, 20
        %v1729 = vpop.permute.xlu0 %1728
        %1730 = vrot.lane.b32.xlu0 %v924, 20
        %v1731 = vpop.permute.xlu0 %1730
        %1732 = vrot.lane.b32.xlu0 %v927, 20
        %v1733 = vpop.permute.xlu0 %1732
        %1734 = vrot.lane.b32.xlu0 %v929, 20
        %v1735 = vpop.permute.xlu0 %1734
        %1736 = vrot.lane.b32.xlu0 %v932, 20
        %v1737 = vpop.permute.xlu0 %1736
        %1738 = vrot.lane.b32.xlu0 %v934, 20
        %v1739 = vpop.permute.xlu0 %1738
        %1740 = vrot.lane.b32.xlu0 %v937, 20
        %v1741 = vpop.permute.xlu0 %1740
        %1742 = vrot.lane.b32.xlu0 %v939, 20
        %v1743 = vpop.permute.xlu0 %1742
        %1744 = vrot.lane.b32.xlu0 %v942, 20
        %v1745 = vpop.permute.xlu0 %1744
        %1746 = vrot.lane.b32.xlu0 %v944, 20
        %v1747 = vpop.permute.xlu0 %1746
        %1748 = vrot.lane.b32.xlu0 %v947, 20
        %v1749 = vpop.permute.xlu0 %1748
        %1750 = vrot.lane.b32.xlu0 %v949, 20
        %v1751 = vpop.permute.xlu0 %1750
        %1752 = vrot.lane.b32.xlu0 %v952, 20
        %v1753 = vpop.permute.xlu0 %1752
        %1754 = vrot.lane.b32.xlu0 %v954, 20
        %v1755 = vpop.permute.xlu0 %1754
        %1788 = vrot.lane.b32.xlu0 %v988, 24
        %v1789 = vpop.permute.xlu0 %1788
        %1790 = vrot.lane.b32.xlu0 %v989, 24
        %v1791 = vpop.permute.xlu0 %1790
        %1792 = vrot.lane.b32.xlu0 %v990, 24
        %v1793 = vpop.permute.xlu0 %1792
        %1794 = vrot.lane.b32.xlu0 %v991, 24
        %v1795 = vpop.permute.xlu0 %1794
        %1796 = vrot.lane.b32.xlu0 %v992, 24
        %v1797 = vpop.permute.xlu0 %1796
        %1798 = vrot.lane.b32.xlu0 %v993, 24
        %v1799 = vpop.permute.xlu0 %1798
        %1800 = vrot.lane.b32.xlu0 %v994, 24
        %v1801 = vpop.permute.xlu0 %1800
        %1802 = vrot.lane.b32.xlu0 %v995, 24
        %v1803 = vpop.permute.xlu0 %1802
        %1804 = vrot.lane.b32.xlu0 %v996, 24
        %v1805 = vpop.permute.xlu0 %1804
        %1806 = vrot.lane.b32.xlu0 %v997, 24
        %v1807 = vpop.permute.xlu0 %1806
        %1808 = vrot.lane.b32.xlu0 %v998, 24
        %v1809 = vpop.permute.xlu0 %1808
        %1810 = vrot.lane.b32.xlu0 %v999, 24
        %v1811 = vpop.permute.xlu0 %1810
        %1812 = vrot.lane.b32.xlu0 %v1000, 24
        %v1813 = vpop.permute.xlu0 %1812
        %1814 = vrot.lane.b32.xlu0 %v1001, 24
        %v1815 = vpop.permute.xlu0 %1814
        %1816 = vrot.lane.b32.xlu0 %v1002, 24
        %v1817 = vpop.permute.xlu0 %1816
        %1818 = vrot.lane.b32.xlu0 %v1003, 24
        %v1819 = vpop.permute.xlu0 %1818
        %1820 = vrot.lane.b32.xlu0 %v1004, 24
        %v1821 = vpop.permute.xlu0 %1820
        %1822 = vrot.lane.b32.xlu0 %v1005, 24
        %v1823 = vpop.permute.xlu0 %1822
        %1824 = vrot.lane.b32.xlu0 %v1006, 24
        %v1825 = vpop.permute.xlu0 %1824
        %1826 = vrot.lane.b32.xlu0 %v1007, 24
        %v1827 = vpop.permute.xlu0 %1826
        %1828 = vrot.lane.b32.xlu0 %v1008, 24
        %v1829 = vpop.permute.xlu0 %1828
        %1830 = vrot.lane.b32.xlu0 %v1009, 24
        %v1831 = vpop.permute.xlu0 %1830
        %1832 = vrot.lane.b32.xlu0 %v1010, 24
        %v1833 = vpop.permute.xlu0 %1832
        %1834 = vrot.lane.b32.xlu0 %v1011, 24
        %v1835 = vpop.permute.xlu0 %1834
        %1836 = vrot.lane.b32.xlu0 %v1012, 24
        %v1837 = vpop.permute.xlu0 %1836
        %1838 = vrot.lane.b32.xlu0 %v1013, 24
        %v1839 = vpop.permute.xlu0 %1838
        %1840 = vrot.lane.b32.xlu0 %v1014, 24
        %v1841 = vpop.permute.xlu0 %1840
        %1842 = vrot.lane.b32.xlu0 %v1015, 24
        %v1843 = vpop.permute.xlu0 %1842
        %1844 = vrot.lane.b32.xlu0 %v1016, 24
        %v1845 = vpop.permute.xlu0 %1844
        %1846 = vrot.lane.b32.xlu0 %v1017, 24
        %v1847 = vpop.permute.xlu0 %1846
        %1848 = vrot.lane.b32.xlu0 %v1018, 24
        %v1849 = vpop.permute.xlu0 %1848
        %1850 = vrot.lane.b32.xlu0 %v1019, 24
        %v1851 = vpop.permute.xlu0 %1850
        %1884 = vrot.lane.b32.xlu0 %v1102, 28
        %v1885 = vpop.permute.xlu0 %1884
        %1886 = vrot.lane.b32.xlu0 %v1104, 28
        %v1887 = vpop.permute.xlu0 %1886
        %1888 = vrot.lane.b32.xlu0 %v1107, 28
        %v1889 = vpop.permute.xlu0 %1888
        %1890 = vrot.lane.b32.xlu0 %v1109, 28
        %v1891 = vpop.permute.xlu0 %1890
        %1892 = vrot.lane.b32.xlu0 %v1112, 28
        %v1893 = vpop.permute.xlu0 %1892
        %1894 = vrot.lane.b32.xlu0 %v1114, 28
        %v1895 = vpop.permute.xlu0 %1894
        %1896 = vrot.lane.b32.xlu0 %v1117, 28
        %v1897 = vpop.permute.xlu0 %1896
        %1898 = vrot.lane.b32.xlu0 %v1119, 28
        %v1899 = vpop.permute.xlu0 %1898
        %1900 = vrot.lane.b32.xlu0 %v1122, 28
        %v1901 = vpop.permute.xlu0 %1900
        %1902 = vrot.lane.b32.xlu0 %v1124, 28
        %v1903 = vpop.permute.xlu0 %1902
        %1904 = vrot.lane.b32.xlu0 %v1127, 28
        %v1905 = vpop.permute.xlu0 %1904
        %1906 = vrot.lane.b32.xlu0 %v1129, 28
        %v1907 = vpop.permute.xlu0 %1906
        %1908 = vrot.lane.b32.xlu0 %v1132, 28
        %v1909 = vpop.permute.xlu0 %1908
        %1910 = vrot.lane.b32.xlu0 %v1134, 28
        %v1911 = vpop.permute.xlu0 %1910
        %1912 = vrot.lane.b32.xlu0 %v1137, 28
        %v1913 = vpop.permute.xlu0 %1912
        %1914 = vrot.lane.b32.xlu0 %v1139, 28
        %v1915 = vpop.permute.xlu0 %1914
        %1916 = vrot.lane.b32.xlu0 %v1142, 28
        %v1917 = vpop.permute.xlu0 %1916
        %1918 = vrot.lane.b32.xlu0 %v1144, 28
        %v1919 = vpop.permute.xlu0 %1918
        %1920 = vrot.lane.b32.xlu0 %v1147, 28
        %v1921 = vpop.permute.xlu0 %1920
        %1922 = vrot.lane.b32.xlu0 %v1149, 28
        %v1923 = vpop.permute.xlu0 %1922
        %1924 = vrot.lane.b32.xlu0 %v1152, 28
        %v1925 = vpop.permute.xlu0 %1924
        %1926 = vrot.lane.b32.xlu0 %v1154, 28
        %v1927 = vpop.permute.xlu0 %1926
        %1928 = vrot.lane.b32.xlu0 %v1157, 28
        %v1929 = vpop.permute.xlu0 %1928
        %1930 = vrot.lane.b32.xlu0 %v1159, 28
        %v1931 = vpop.permute.xlu0 %1930
        %1932 = vrot.lane.b32.xlu0 %v1162, 28
        %v1933 = vpop.permute.xlu0 %1932
        %1934 = vrot.lane.b32.xlu0 %v1164, 28
        %v1935 = vpop.permute.xlu0 %1934
        %1936 = vrot.lane.b32.xlu0 %v1167, 28
        %v1937 = vpop.permute.xlu0 %1936
        %1938 = vrot.lane.b32.xlu0 %v1169, 28
        %v1939 = vpop.permute.xlu0 %1938
        %1940 = vrot.lane.b32.xlu0 %v1172, 28
        %v1941 = vpop.permute.xlu0 %1940
        %1942 = vrot.lane.b32.xlu0 %v1174, 28
        %v1943 = vpop.permute.xlu0 %1942
        %1944 = vrot.lane.b32.xlu0 %v1177, 28
        %v1945 = vpop.permute.xlu0 %1944
        %1946 = vrot.lane.b32.xlu0 %v1179, 28
        %v1947 = vpop.permute.xlu0 %1946
        %1980 = vrot.lane.b32.xlu0 %v1230, 32
        %v1981 = vpop.permute.xlu0 %1980
        %1982 = vrot.lane.b32.xlu0 %v1232, 32
        %v1983 = vpop.permute.xlu0 %1982
        %1984 = vrot.lane.b32.xlu0 %v1235, 32
        %v1985 = vpop.permute.xlu0 %1984
        %1986 = vrot.lane.b32.xlu0 %v1237, 32
        %v1987 = vpop.permute.xlu0 %1986
        %1988 = vrot.lane.b32.xlu0 %v1240, 32
        %v1989 = vpop.permute.xlu0 %1988
        %1990 = vrot.lane.b32.xlu0 %v1242, 32
        %v1991 = vpop.permute.xlu0 %1990
        %1992 = vrot.lane.b32.xlu0 %v1245, 32
        %v1993 = vpop.permute.xlu0 %1992
        %1994 = vrot.lane.b32.xlu0 %v1247, 32
        %v1995 = vpop.permute.xlu0 %1994
        %1996 = vrot.lane.b32.xlu0 %v1250, 32
        %v1997 = vpop.permute.xlu0 %1996
        %1998 = vrot.lane.b32.xlu0 %v1252, 32
        %v1999 = vpop.permute.xlu0 %1998
        %2000 = vrot.lane.b32.xlu0 %v1255, 32
        %v2001 = vpop.permute.xlu0 %2000
        %2002 = vrot.lane.b32.xlu0 %v1257, 32
        %v2003 = vpop.permute.xlu0 %2002
        %2004 = vrot.lane.b32.xlu0 %v1260, 32
        %v2005 = vpop.permute.xlu0 %2004
        %2006 = vrot.lane.b32.xlu0 %v1262, 32
        %v2007 = vpop.permute.xlu0 %2006
        %2008 = vrot.lane.b32.xlu0 %v1265, 32
        %v2009 = vpop.permute.xlu0 %2008
        %2010 = vrot.lane.b32.xlu0 %v1267, 32
        %v2011 = vpop.permute.xlu0 %2010
        %2012 = vrot.lane.b32.xlu0 %v1270, 32
        %v2013 = vpop.permute.xlu0 %2012
        %2014 = vrot.lane.b32.xlu0 %v1272, 32
        %v2015 = vpop.permute.xlu0 %2014
        %2016 = vrot.lane.b32.xlu0 %v1275, 32
        %v2017 = vpop.permute.xlu0 %2016
        %2018 = vrot.lane.b32.xlu0 %v1277, 32
        %v2019 = vpop.permute.xlu0 %2018
        %2020 = vrot.lane.b32.xlu0 %v1280, 32
        %v2021 = vpop.permute.xlu0 %2020
        %2022 = vrot.lane.b32.xlu0 %v1282, 32
        %v2023 = vpop.permute.xlu0 %2022
        %2024 = vrot.lane.b32.xlu0 %v1285, 32
        %v2025 = vpop.permute.xlu0 %2024
        %2026 = vrot.lane.b32.xlu0 %v1287, 32
        %v2027 = vpop.permute.xlu0 %2026
        %2028 = vrot.lane.b32.xlu0 %v1290, 32
        %v2029 = vpop.permute.xlu0 %2028
        %2030 = vrot.lane.b32.xlu0 %v1292, 32
        %v2031 = vpop.permute.xlu0 %2030
        %2032 = vrot.lane.b32.xlu0 %v1295, 32
        %v2033 = vpop.permute.xlu0 %2032
        %2034 = vrot.lane.b32.xlu0 %v1297, 32
        %v2035 = vpop.permute.xlu0 %2034
        %2036 = vrot.lane.b32.xlu0 %v1300, 32
        %v2037 = vpop.permute.xlu0 %2036
        %2038 = vrot.lane.b32.xlu0 %v1302, 32
        %v2039 = vpop.permute.xlu0 %2038
        %2040 = vrot.lane.b32.xlu0 %v1305, 32
        %v2041 = vpop.permute.xlu0 %2040
        %2042 = vrot.lane.b32.xlu0 %v1307, 32
        %v2043 = vpop.permute.xlu0 %2042
        %vm2076 = vcmask 31744
        %v2077 = vsel %vm2076, %v280, %v1309
        %v2078 = vsel %vm2076, %v281, %v1311
        %v2079 = vsel %vm2076, %v282, %v1313
        %v2080 = vsel %vm2076, %v283, %v1315
        %v2081 = vsel %vm2076, %v284, %v1317
        %v2082 = vsel %vm2076, %v285, %v1319
        %v2083 = vsel %vm2076, %v286, %v1321
        %v2084 = vsel %vm2076, %v287, %v1323
        %v2085 = vsel %vm2076, %v288, %v1325
        %v2086 = vsel %vm2076, %v289, %v1327
        %v2087 = vsel %vm2076, %v290, %v1329
        %v2088 = vsel %vm2076, %v291, %v1331
        %v2089 = vsel %vm2076, %v292, %v1333
        %v2090 = vsel %vm2076, %v293, %v1335
        %v2091 = vsel %vm2076, %v294, %v1337
        %v2092 = vsel %vm2076, %v295, %v1339
        %v2093 = vsel %vm2076, %v296, %v1341
        %v2094 = vsel %vm2076, %v297, %v1343
        %v2095 = vsel %vm2076, %v298, %v1345
        %v2096 = vsel %vm2076, %v299, %v1347
        %v2097 = vsel %vm2076, %v300, %v1349
        %v2098 = vsel %vm2076, %v301, %v1351
        %v2099 = vsel %vm2076, %v302, %v1353
        %v2100 = vsel %vm2076, %v303, %v1355
        %v2101 = vsel %vm2076, %v304, %v1357
        %v2102 = vsel %vm2076, %v305, %v1359
        %v2103 = vsel %vm2076, %v306, %v1361
        %v2104 = vsel %vm2076, %v307, %v1363
        %v2105 = vsel %vm2076, %v308, %v1365
        %v2106 = vsel %vm2076, %v309, %v1367
        %v2107 = vsel %vm2076, %v310, %v1369
        %v2108 = vsel %vm2076, %v311, %v1371
        %vm2109 = vcmask 64512
        %v2110 = vsel %vm2109, %v2077, %v1405
        %v2111 = vsel %vm2109, %v2078, %v1407
        %v2112 = vsel %vm2109, %v2079, %v1409
        %v2113 = vsel %vm2109, %v2080, %v1411
        %v2114 = vsel %vm2109, %v2081, %v1413
        %v2115 = vsel %vm2109, %v2082, %v1415
        %v2116 = vsel %vm2109, %v2083, %v1417
        %v2117 = vsel %vm2109, %v2084, %v1419
        %v2118 = vsel %vm2109, %v2085, %v1421
        %v2119 = vsel %vm2109, %v2086, %v1423
        %v2120 = vsel %vm2109, %v2087, %v1425
        %v2121 = vsel %vm2109, %v2088, %v1427
        %v2122 = vsel %vm2109, %v2089, %v1429
        %v2123 = vsel %vm2109, %v2090, %v1431
        %v2124 = vsel %vm2109, %v2091, %v1433
        %v2125 = vsel %vm2109, %v2092, %v1435
        %v2126 = vsel %vm2109, %v2093, %v1437
        %v2127 = vsel %vm2109, %v2094, %v1439
        %v2128 = vsel %vm2109, %v2095, %v1441
        %v2129 = vsel %vm2109, %v2096, %v1443
        %v2130 = vsel %vm2109, %v2097, %v1445
        %v2131 = vsel %vm2109, %v2098, %v1447
        %v2132 = vsel %vm2109, %v2099, %v1449
        %v2133 = vsel %vm2109, %v2100, %v1451
        %v2134 = vsel %vm2109, %v2101, %v1453
        %v2135 = vsel %vm2109, %v2102, %v1455
        %v2136 = vsel %vm2109, %v2103, %v1457
        %v2137 = vsel %vm2109, %v2104, %v1459
        %v2138 = vsel %vm2109, %v2105, %v1461
        %v2139 = vsel %vm2109, %v2106, %v1463
        %v2140 = vsel %vm2109, %v2107, %v1465
        %v2141 = vsel %vm2109, %v2108, %v1467
        %vm2142 = vcmask 97280
        %v2143 = vsel %vm2142, %v2110, %v1501
        %v2144 = vsel %vm2142, %v2111, %v1503
        %v2145 = vsel %vm2142, %v2112, %v1505
        %v2146 = vsel %vm2142, %v2113, %v1507
        %v2147 = vsel %vm2142, %v2114, %v1509
        %v2148 = vsel %vm2142, %v2115, %v1511
        %v2149 = vsel %vm2142, %v2116, %v1513
        %v2150 = vsel %vm2142, %v2117, %v1515
        %v2151 = vsel %vm2142, %v2118, %v1517
        %v2152 = vsel %vm2142, %v2119, %v1519
        %v2153 = vsel %vm2142, %v2120, %v1521
        %v2154 = vsel %vm2142, %v2121, %v1523
        %v2155 = vsel %vm2142, %v2122, %v1525
        %v2156 = vsel %vm2142, %v2123, %v1527
        %v2157 = vsel %vm2142, %v2124, %v1529
        %v2158 = vsel %vm2142, %v2125, %v1531
        %v2159 = vsel %vm2142, %v2126, %v1533
        %v2160 = vsel %vm2142, %v2127, %v1535
        %v2161 = vsel %vm2142, %v2128, %v1537
        %v2162 = vsel %vm2142, %v2129, %v1539
        %v2163 = vsel %vm2142, %v2130, %v1541
        %v2164 = vsel %vm2142, %v2131, %v1543
        %v2165 = vsel %vm2142, %v2132, %v1545
        %v2166 = vsel %vm2142, %v2133, %v1547
        %v2167 = vsel %vm2142, %v2134, %v1549
        %v2168 = vsel %vm2142, %v2135, %v1551
        %v2169 = vsel %vm2142, %v2136, %v1553
        %v2170 = vsel %vm2142, %v2137, %v1555
        %v2171 = vsel %vm2142, %v2138, %v1557
        %v2172 = vsel %vm2142, %v2139, %v1559
        %v2173 = vsel %vm2142, %v2140, %v1561
        %v2174 = vsel %vm2142, %v2141, %v1563
        %vm2175 = vcmask 130048
        %v2176 = vsel %vm2175, %v2143, %v1597
        %v2177 = vsel %vm2175, %v2144, %v1599
        %v2178 = vsel %vm2175, %v2145, %v1601
        %v2179 = vsel %vm2175, %v2146, %v1603
        %v2180 = vsel %vm2175, %v2147, %v1605
        %v2181 = vsel %vm2175, %v2148, %v1607
        %v2182 = vsel %vm2175, %v2149, %v1609
        %v2183 = vsel %vm2175, %v2150, %v1611
        %v2184 = vsel %vm2175, %v2151, %v1613
        %v2185 = vsel %vm2175, %v2152, %v1615
        %v2186 = vsel %vm2175, %v2153, %v1617
        %v2187 = vsel %vm2175, %v2154, %v1619
        %v2188 = vsel %vm2175, %v2155, %v1621
        %v2189 = vsel %vm2175, %v2156, %v1623
        %v2190 = vsel %vm2175, %v2157, %v1625
        %v2191 = vsel %vm2175, %v2158, %v1627
        %v2192 = vsel %vm2175, %v2159, %v1629
        %v2193 = vsel %vm2175, %v2160, %v1631
        %v2194 = vsel %vm2175, %v2161, %v1633
        %v2195 = vsel %vm2175, %v2162, %v1635
        %v2196 = vsel %vm2175, %v2163, %v1637
        %v2197 = vsel %vm2175, %v2164, %v1639
        %v2198 = vsel %vm2175, %v2165, %v1641
        %v2199 = vsel %vm2175, %v2166, %v1643
        %v2200 = vsel %vm2175, %v2167, %v1645
        %v2201 = vsel %vm2175, %v2168, %v1647
        %v2202 = vsel %vm2175, %v2169, %v1649
        %v2203 = vsel %vm2175, %v2170, %v1651
        %v2204 = vsel %vm2175, %v2171, %v1653
        %v2205 = vsel %vm2175, %v2172, %v1655
        %v2206 = vsel %vm2175, %v2173, %v1657
        %v2207 = vsel %vm2175, %v2174, %v1659
        %vm2208 = vcmask 162816
        %v2209 = vsel %vm2208, %v2176, %v1693
        %v2210 = vsel %vm2208, %v2177, %v1695
        %v2211 = vsel %vm2208, %v2178, %v1697
        %v2212 = vsel %vm2208, %v2179, %v1699
        %v2213 = vsel %vm2208, %v2180, %v1701
        %v2214 = vsel %vm2208, %v2181, %v1703
        %v2215 = vsel %vm2208, %v2182, %v1705
        %v2216 = vsel %vm2208, %v2183, %v1707
        %v2217 = vsel %vm2208, %v2184, %v1709
        %v2218 = vsel %vm2208, %v2185, %v1711
        %v2219 = vsel %vm2208, %v2186, %v1713
        %v2220 = vsel %vm2208, %v2187, %v1715
        %v2221 = vsel %vm2208, %v2188, %v1717
        %v2222 = vsel %vm2208, %v2189, %v1719
        %v2223 = vsel %vm2208, %v2190, %v1721
        %v2224 = vsel %vm2208, %v2191, %v1723
        %v2225 = vsel %vm2208, %v2192, %v1725
        %v2226 = vsel %vm2208, %v2193, %v1727
        %v2227 = vsel %vm2208, %v2194, %v1729
        %v2228 = vsel %vm2208, %v2195, %v1731
        %v2229 = vsel %vm2208, %v2196, %v1733
        %v2230 = vsel %vm2208, %v2197, %v1735
        %v2231 = vsel %vm2208, %v2198, %v1737
        %v2232 = vsel %vm2208, %v2199, %v1739
        %v2233 = vsel %vm2208, %v2200, %v1741
        %v2234 = vsel %vm2208, %v2201, %v1743
        %v2235 = vsel %vm2208, %v2202, %v1745
        %v2236 = vsel %vm2208, %v2203, %v1747
        %v2237 = vsel %vm2208, %v2204, %v1749
        %v2238 = vsel %vm2208, %v2205, %v1751
        %v2239 = vsel %vm2208, %v2206, %v1753
        %v2240 = vsel %vm2208, %v2207, %v1755
        %vm2241 = vcmask 195584
        %v2242 = vsel %vm2241, %v2209, %v1789
        %v2243 = vsel %vm2241, %v2210, %v1791
        %v2244 = vsel %vm2241, %v2211, %v1793
        %v2245 = vsel %vm2241, %v2212, %v1795
        %v2246 = vsel %vm2241, %v2213, %v1797
        %v2247 = vsel %vm2241, %v2214, %v1799
        %v2248 = vsel %vm2241, %v2215, %v1801
        %v2249 = vsel %vm2241, %v2216, %v1803
        %v2250 = vsel %vm2241, %v2217, %v1805
        %v2251 = vsel %vm2241, %v2218, %v1807
        %v2252 = vsel %vm2241, %v2219, %v1809
        %v2253 = vsel %vm2241, %v2220, %v1811
        %v2254 = vsel %vm2241, %v2221, %v1813
        %v2255 = vsel %vm2241, %v2222, %v1815
        %v2256 = vsel %vm2241, %v2223, %v1817
        %v2257 = vsel %vm2241, %v2224, %v1819
        %v2258 = vsel %vm2241, %v2225, %v1821
        %v2259 = vsel %vm2241, %v2226, %v1823
        %v2260 = vsel %vm2241, %v2227, %v1825
        %v2261 = vsel %vm2241, %v2228, %v1827
        %v2262 = vsel %vm2241, %v2229, %v1829
        %v2263 = vsel %vm2241, %v2230, %v1831
        %v2264 = vsel %vm2241, %v2231, %v1833
        %v2265 = vsel %vm2241, %v2232, %v1835
        %v2266 = vsel %vm2241, %v2233, %v1837
        %v2267 = vsel %vm2241, %v2234, %v1839
        %v2268 = vsel %vm2241, %v2235, %v1841
        %v2269 = vsel %vm2241, %v2236, %v1843
        %v2270 = vsel %vm2241, %v2237, %v1845
        %v2271 = vsel %vm2241, %v2238, %v1847
        %v2272 = vsel %vm2241, %v2239, %v1849
        %v2273 = vsel %vm2241, %v2240, %v1851
        %vm2274 = vcmask 228352
        %v2275 = vsel %vm2274, %v2242, %v1885
        %v2276 = vsel %vm2274, %v2243, %v1887
        %v2277 = vsel %vm2274, %v2244, %v1889
        %v2278 = vsel %vm2274, %v2245, %v1891
        %v2279 = vsel %vm2274, %v2246, %v1893
        %v2280 = vsel %vm2274, %v2247, %v1895
        %v2281 = vsel %vm2274, %v2248, %v1897
        %v2282 = vsel %vm2274, %v2249, %v1899
        %v2283 = vsel %vm2274, %v2250, %v1901
        %v2284 = vsel %vm2274, %v2251, %v1903
        %v2285 = vsel %vm2274, %v2252, %v1905
        %v2286 = vsel %vm2274, %v2253, %v1907
        %v2287 = vsel %vm2274, %v2254, %v1909
        %v2288 = vsel %vm2274, %v2255, %v1911
        %v2289 = vsel %vm2274, %v2256, %v1913
        %v2290 = vsel %vm2274, %v2257, %v1915
        %v2291 = vsel %vm2274, %v2258, %v1917
        %v2292 = vsel %vm2274, %v2259, %v1919
        %v2293 = vsel %vm2274, %v2260, %v1921
        %v2294 = vsel %vm2274, %v2261, %v1923
        %v2295 = vsel %vm2274, %v2262, %v1925
        %v2296 = vsel %vm2274, %v2263, %v1927
        %v2297 = vsel %vm2274, %v2264, %v1929
        %v2298 = vsel %vm2274, %v2265, %v1931
        %v2299 = vsel %vm2274, %v2266, %v1933
        %v2300 = vsel %vm2274, %v2267, %v1935
        %v2301 = vsel %vm2274, %v2268, %v1937
        %v2302 = vsel %vm2274, %v2269, %v1939
        %v2303 = vsel %vm2274, %v2270, %v1941
        %v2304 = vsel %vm2274, %v2271, %v1943
        %v2305 = vsel %vm2274, %v2272, %v1945
        %v2306 = vsel %vm2274, %v2273, %v1947
        %vm2307 = vcmask 261120
        %v2308 = vsel %vm2307, %v2275, %v1981
        %v2309 = vsel %vm2307, %v2276, %v1983
        %v2310 = vsel %vm2307, %v2277, %v1985
        %v2311 = vsel %vm2307, %v2278, %v1987
        %v2312 = vsel %vm2307, %v2279, %v1989
        %v2313 = vsel %vm2307, %v2280, %v1991
        %v2314 = vsel %vm2307, %v2281, %v1993
        %v2315 = vsel %vm2307, %v2282, %v1995
        %v2316 = vsel %vm2307, %v2283, %v1997
        %v2317 = vsel %vm2307, %v2284, %v1999
        %v2318 = vsel %vm2307, %v2285, %v2001
        %v2319 = vsel %vm2307, %v2286, %v2003
        %v2320 = vsel %vm2307, %v2287, %v2005
        %v2321 = vsel %vm2307, %v2288, %v2007
        %v2322 = vsel %vm2307, %v2289, %v2009
        %v2323 = vsel %vm2307, %v2290, %v2011
        %v2324 = vsel %vm2307, %v2291, %v2013
        %v2325 = vsel %vm2307, %v2292, %v2015
        %v2326 = vsel %vm2307, %v2293, %v2017
        %v2327 = vsel %vm2307, %v2294, %v2019
        %v2328 = vsel %vm2307, %v2295, %v2021
        %v2329 = vsel %vm2307, %v2296, %v2023
        %v2330 = vsel %vm2307, %v2297, %v2025
        %v2331 = vsel %vm2307, %v2298, %v2027
        %v2332 = vsel %vm2307, %v2299, %v2029
        %v2333 = vsel %vm2307, %v2300, %v2031
        %v2334 = vsel %vm2307, %v2301, %v2033
        %v2335 = vsel %vm2307, %v2302, %v2035
        %v2336 = vsel %vm2307, %v2303, %v2037
        %v2337 = vsel %vm2307, %v2304, %v2039
        %v2338 = vsel %vm2307, %v2305, %v2041
        %v2339 = vsel %vm2307, %v2306, %v2043
        %vm2340 = vcmask 293888
        %v2341 = vsel %vm2340, %v2308, 0.0
        %v2342 = vsel %vm2340, %v2309, 0.0
        %v2343 = vsel %vm2340, %v2310, 0.0
        %v2344 = vsel %vm2340, %v2311, 0.0
        %v2345 = vsel %vm2340, %v2312, 0.0
        %v2346 = vsel %vm2340, %v2313, 0.0
        %v2347 = vsel %vm2340, %v2314, 0.0
        %v2348 = vsel %vm2340, %v2315, 0.0
        %v2349 = vsel %vm2340, %v2316, 0.0
        %v2350 = vsel %vm2340, %v2317, 0.0
        %v2351 = vsel %vm2340, %v2318, 0.0
        %v2352 = vsel %vm2340, %v2319, 0.0
        %v2353 = vsel %vm2340, %v2320, 0.0
        %v2354 = vsel %vm2340, %v2321, 0.0
        %v2355 = vsel %vm2340, %v2322, 0.0
        %v2356 = vsel %vm2340, %v2323, 0.0
        %v2357 = vsel %vm2340, %v2324, 0.0
        %v2358 = vsel %vm2340, %v2325, 0.0
        %v2359 = vsel %vm2340, %v2326, 0.0
        %v2360 = vsel %vm2340, %v2327, 0.0
        %v2361 = vsel %vm2340, %v2328, 0.0
        %v2362 = vsel %vm2340, %v2329, 0.0
        %v2363 = vsel %vm2340, %v2330, 0.0
        %v2364 = vsel %vm2340, %v2331, 0.0
        %v2365 = vsel %vm2340, %v2332, 0.0
        %v2366 = vsel %vm2340, %v2333, 0.0
        %v2367 = vsel %vm2340, %v2334, 0.0
        %v2368 = vsel %vm2340, %v2335, 0.0
        %v2369 = vsel %vm2340, %v2336, 0.0
        %v2370 = vsel %vm2340, %v2337, 0.0
        %v2371 = vsel %vm2340, %v2338, 0.0
        %v2372 = vsel %vm2340, %v2339, 0.0
        %v2373 = vpack.c.bf16 %v2342, %v2341
        %v2374 = vpack.c.bf16 %v2344, %v2343
        %v2375 = vpack.c.bf16 %v2346, %v2345
        %v2376 = vpack.c.bf16 %v2348, %v2347
        %v2377 = vpack.c.bf16 %v2350, %v2349
        %v2378 = vpack.c.bf16 %v2352, %v2351
        %v2379 = vpack.c.bf16 %v2354, %v2353
        %v2380 = vpack.c.bf16 %v2356, %v2355
        %v2381 = vpack.c.bf16 %v2358, %v2357
        %v2382 = vpack.c.bf16 %v2360, %v2359
        %v2383 = vpack.c.bf16 %v2362, %v2361
        %v2384 = vpack.c.bf16 %v2364, %v2363
        %v2385 = vpack.c.bf16 %v2366, %v2365
        %v2386 = vpack.c.bf16 %v2368, %v2367
        %v2387 = vpack.c.bf16 %v2370, %v2369
        %v2388 = vpack.c.bf16 %v2372, %v2371
        %v2389 = vld [vmem:[#allocation5] sm:$0xf]
        %v2390 = vld [vmem:[#allocation5 + $0x4] sm:$0xf]
        %v2391 = vld [vmem:[#allocation5 + $0x8] sm:$0xf]
        %v2392 = vld [vmem:[#allocation5 + $0xc] sm:$0xf]
        %v2393 = vld [vmem:[#allocation5 + $0x10] sm:$0xf]
        %v2394 = vld [vmem:[#allocation5 + $0x14] sm:$0xf]
        %v2395 = vld [vmem:[#allocation5 + $0x18] sm:$0xf]
        %v2396 = vld [vmem:[#allocation5 + $0x1c] sm:$0xf]
        %v2397 = vld [vmem:[#allocation5 + $0x20] sm:$0xf]
        %v2398 = vld [vmem:[#allocation5 + $0x24] sm:$0xf]
        %v2399 = vld [vmem:[#allocation5 + $0x28] sm:$0xf]
        %v2400 = vld [vmem:[#allocation5 + $0x2c] sm:$0xf]
        %v2401 = vld [vmem:[#allocation5 + $0x30] sm:$0xf]
        %v2402 = vld [vmem:[#allocation5 + $0x34] sm:$0xf]
        %v2403 = vld [vmem:[#allocation5 + $0x38] sm:$0xf]
        %v2404 = vld [vmem:[#allocation5 + $0x3c] sm:$0xf]
        %v2421 = vunpack.c.l.b16 %v2389
        %v2422 = vunpack.c.l.b16 %v2390
        %v2423 = vunpack.c.l.b16 %v2391
        %v2424 = vunpack.c.l.b16 %v2392
        %v2425 = vunpack.c.l.b16 %v2393
        %v2426 = vunpack.c.l.b16 %v2394
        %v2427 = vunpack.c.l.b16 %v2395
        %v2428 = vunpack.c.l.b16 %v2396
        %v2429 = vunpack.c.l.b16 %v2397
        %v2430 = vunpack.c.l.b16 %v2398
        %v2431 = vunpack.c.l.b16 %v2399
        %v2432 = vunpack.c.l.b16 %v2400
        %v2433 = vunpack.c.l.b16 %v2401
        %v2434 = vunpack.c.l.b16 %v2402
        %v2435 = vunpack.c.l.b16 %v2403
        %v2436 = vunpack.c.l.b16 %v2404
        %v2437 = vpack.c.b16 %v2422, %v2421
        %v2438 = vpack.c.b16 %v2424, %v2423
        %v2439 = vpack.c.b16 %v2426, %v2425
        %v2440 = vpack.c.b16 %v2428, %v2427
        %v2441 = vpack.c.b16 %v2430, %v2429
        %v2442 = vpack.c.b16 %v2432, %v2431
        %v2443 = vpack.c.b16 %v2434, %v2433
        %v2444 = vpack.c.b16 %v2436, %v2435
        %2453 = vmatprep.subr.bf16.mxu0 0
        %2454 = vmatpush1.bf16.msra.mxu0 %v2437
        %2455 = vmatprep.subr.bf16.mxu0 0
        %2456 = vmatpush1.bf16.msra.mxu0 %v2438
        %2457 = vmatprep.subr.bf16.mxu0 0
        %2458 = vmatpush1.bf16.msra.mxu0 %v2439
        %2459 = vmatprep.subr.bf16.mxu0 0
        %2460 = vmatpush1.bf16.msra.mxu0 %v2440
        %2461 = vmatprep.subr.bf16.mxu0 0
        %2462 = vmatpush1.bf16.msra.mxu0 %v2441
        %2463 = vmatprep.subr.bf16.mxu0 0
        %2464 = vmatpush1.bf16.msra.mxu0 %v2442
        %2465 = vmatprep.subr.bf16.mxu0 0
        %2466 = vmatpush1.bf16.msra.mxu0 %v2443
        %2467 = vmatprep.subr.bf16.mxu0 0
        %2468 = vmatpush1.bf16.msra.mxu0 %v2444
        %2469 = vmatprep.subr.bf16.mxu0 0
        %2470 = vmatpush1.bf16.msra.mxu0 0
        %2471 = vmatprep.subr.bf16.mxu0 0
        %2472 = vmatpush1.bf16.msra.mxu0 0
        %2473 = vmatprep.subr.bf16.mxu0 0
        %2474 = vmatpush1.bf16.msra.mxu0 0
        %2475 = vmatprep.subr.bf16.mxu0 0
        %2476 = vmatpush1.bf16.msra.mxu0 0
        %2477 = vmatprep.subr.bf16.mxu0 0
        %2478 = vmatpush1.bf16.msra.mxu0 0
        %2479 = vmatprep.subr.bf16.mxu0 0
        %2480 = vmatpush1.bf16.msra.mxu0 0
        %2481 = vmatprep.subr.bf16.mxu0 0
        %2482 = vmatpush1.bf16.msra.mxu0 0
        %2483 = vmatprep.subr.bf16.mxu0 0
        %2484 = vmatpush1.bf16.msra.mxu0 0
        %2485 = vmatprep.mubr.bf16.mxu0 0
        %2486 = vmatmul.mubr.bf16.gmra.mrb[0].mxu0 %v2373
        %v2487 = vpop.f32.mrb[0].mxu0
        %v2488 = vadd.f32 0.0, %v2487
        %v2489 = vpop.f32.mrb[0].mxu0
        %v2490 = vpop.f32.mrb[0].mxu0
        %v2491 = vadd.f32 0.0, %v2490
        %v2492 = vpop.f32.mrb[0].mxu0
        %2493 = vmatprep.mubr.bf16.mxu0 0
        %2494 = vmatmul.mubr.bf16.gmra.mrb[0].mxu0 %v2374
        %v2495 = vpop.f32.mrb[0].mxu0
        %v2496 = vadd.f32 0.0, %v2495
        %v2497 = vpop.f32.mrb[0].mxu0
        %v2498 = vpop.f32.mrb[0].mxu0
        %v2499 = vadd.f32 0.0, %v2498
        %v2500 = vpop.f32.mrb[0].mxu0
        %2501 = vmatprep.mubr.bf16.mxu0 0
        %2502 = vmatmul.mubr.bf16.gmra.mrb[0].mxu0 %v2375
        %v2503 = vpop.f32.mrb[0].mxu0
        %v2504 = vadd.f32 0.0, %v2503
        %v2505 = vpop.f32.mrb[0].mxu0
        %v2506 = vpop.f32.mrb[0].mxu0
        %v2507 = vadd.f32 0.0, %v2506
        %v2508 = vpop.f32.mrb[0].mxu0
        %2509 = vmatprep.mubr.bf16.mxu0 0
        %2510 = vmatmul.mubr.bf16.gmra.mrb[0].mxu0 %v2376
        %v2511 = vpop.f32.mrb[0].mxu0
        %v2512 = vadd.f32 0.0, %v2511
        %v2513 = vpop.f32.mrb[0].mxu0
        %v2514 = vpop.f32.mrb[0].mxu0
        %v2515 = vadd.f32 0.0, %v2514
        %v2516 = vpop.f32.mrb[0].mxu0
        %2517 = vmatprep.mubr.bf16.mxu0 0
        %2518 = vmatmul.mubr.bf16.gmra.mrb[0].mxu0 %v2377
        %v2519 = vpop.f32.mrb[0].mxu0
        %v2520 = vadd.f32 0.0, %v2519
        %v2521 = vpop.f32.mrb[0].mxu0
        %v2522 = vpop.f32.mrb[0].mxu0
        %v2523 = vadd.f32 0.0, %v2522
        %v2524 = vpop.f32.mrb[0].mxu0
        %2525 = vmatprep.mubr.bf16.mxu0 0
        %2526 = vmatmul.mubr.bf16.gmra.mrb[0].mxu0 %v2378
        %v2527 = vpop.f32.mrb[0].mxu0
        %v2528 = vadd.f32 0.0, %v2527
        %v2529 = vpop.f32.mrb[0].mxu0
        %v2530 = vpop.f32.mrb[0].mxu0
        %v2531 = vadd.f32 0.0, %v2530
        %v2532 = vpop.f32.mrb[0].mxu0
        %2533 = vmatprep.mubr.bf16.mxu0 0
        %2534 = vmatmul.mubr.bf16.gmra.mrb[0].mxu0 %v2379
        %v2535 = vpop.f32.mrb[0].mxu0
        %v2536 = vadd.f32 0.0, %v2535
        %v2537 = vpop.f32.mrb[0].mxu0
        %v2538 = vpop.f32.mrb[0].mxu0
        %v2539 = vadd.f32 0.0, %v2538
        %v2540 = vpop.f32.mrb[0].mxu0
        %2541 = vmatprep.mubr.bf16.mxu0 0
        %2542 = vmatmul.mubr.bf16.gmra.mrb[0].mxu0 %v2380
        %v2543 = vpop.f32.mrb[0].mxu0
        %v2544 = vadd.f32 0.0, %v2543
        %v2545 = vpop.f32.mrb[0].mxu0
        %v2546 = vpop.f32.mrb[0].mxu0
        %v2547 = vadd.f32 0.0, %v2546
        %v2548 = vpop.f32.mrb[0].mxu0
        %2549 = vmatprep.mubr.bf16.mxu0 0
        %2550 = vmatmul.mubr.bf16.gmra.mrb[0].mxu0 %v2381
        %v2551 = vpop.f32.mrb[0].mxu0
        %v2552 = vadd.f32 0.0, %v2551
        %v2553 = vpop.f32.mrb[0].mxu0
        %v2554 = vpop.f32.mrb[0].mxu0
        %v2555 = vadd.f32 0.0, %v2554
        %v2556 = vpop.f32.mrb[0].mxu0
        %2557 = vmatprep.mubr.bf16.mxu0 0
        %2558 = vmatmul.mubr.bf16.gmra.mrb[0].mxu0 %v2382
        %v2559 = vpop.f32.mrb[0].mxu0
        %v2560 = vadd.f32 0.0, %v2559
        %v2561 = vpop.f32.mrb[0].mxu0
        %v2562 = vpop.f32.mrb[0].mxu0
        %v2563 = vadd.f32 0.0, %v2562
        %v2564 = vpop.f32.mrb[0].mxu0
        %2565 = vmatprep.mubr.bf16.mxu0 0
        %2566 = vmatmul.mubr.bf16.gmra.mrb[0].mxu0 %v2383
        %v2567 = vpop.f32.mrb[0].mxu0
        %v2568 = vadd.f32 0.0, %v2567
        %v2569 = vpop.f32.mrb[0].mxu0
        %v2570 = vpop.f32.mrb[0].mxu0
        %v2571 = vadd.f32 0.0, %v2570
        %v2572 = vpop.f32.mrb[0].mxu0
        %2573 = vmatprep.mubr.bf16.mxu0 0
        %2574 = vmatmul.mubr.bf16.gmra.mrb[0].mxu0 %v2384
        %v2575 = vpop.f32.mrb[0].mxu0
        %v2576 = vadd.f32 0.0, %v2575
        %v2577 = vpop.f32.mrb[0].mxu0
        %v2578 = vpop.f32.mrb[0].mxu0
        %v2579 = vadd.f32 0.0, %v2578
        %v2580 = vpop.f32.mrb[0].mxu0
        %2581 = vmatprep.mubr.bf16.mxu0 0
        %2582 = vmatmul.mubr.bf16.gmra.mrb[0].mxu0 %v2385
        %v2583 = vpop.f32.mrb[0].mxu0
        %v2584 = vadd.f32 0.0, %v2583
        %v2585 = vpop.f32.mrb[0].mxu0
        %v2586 = vpop.f32.mrb[0].mxu0
        %v2587 = vadd.f32 0.0, %v2586
        %v2588 = vpop.f32.mrb[0].mxu0
        %2589 = vmatprep.mubr.bf16.mxu0 0
        %2590 = vmatmul.mubr.bf16.gmra.mrb[0].mxu0 %v2386
        %v2591 = vpop.f32.mrb[0].mxu0
        %v2592 = vadd.f32 0.0, %v2591
        %v2593 = vpop.f32.mrb[0].mxu0
        %v2594 = vpop.f32.mrb[0].mxu0
        %v2595 = vadd.f32 0.0, %v2594
        %v2596 = vpop.f32.mrb[0].mxu0
        %2597 = vmatprep.mubr.bf16.mxu0 0
        %2598 = vmatmul.mubr.bf16.gmra.mrb[0].mxu0 %v2387
        %v2599 = vpop.f32.mrb[0].mxu0
        %v2600 = vadd.f32 0.0, %v2599
        %v2601 = vpop.f32.mrb[0].mxu0
        %v2602 = vpop.f32.mrb[0].mxu0
        %v2603 = vadd.f32 0.0, %v2602
        %v2604 = vpop.f32.mrb[0].mxu0
        %2605 = vmatprep.mubr.bf16.mxu0 0
        %2606 = vmatmul.mubr.bf16.gmra.mrb[0].mxu0 %v2388
        %v2607 = vpop.f32.mrb[0].mxu0
        %v2608 = vadd.f32 0.0, %v2607
        %v2609 = vpop.f32.mrb[0].mxu0
        %v2610 = vpop.f32.mrb[0].mxu0
        %v2611 = vadd.f32 0.0, %v2610
        %v2612 = vpop.f32.mrb[0].mxu0
        %2613 = vdwg.mxu0
        %v2614 = vpack.c.bf16 %v2491, %v2488
        %v2615 = vpack.c.bf16 %v2499, %v2496
        %v2616 = vpack.c.bf16 %v2507, %v2504
        %v2617 = vpack.c.bf16 %v2515, %v2512
        %v2618 = vpack.c.bf16 %v2523, %v2520
        %v2619 = vpack.c.bf16 %v2531, %v2528
        %v2620 = vpack.c.bf16 %v2539, %v2536
        %v2621 = vpack.c.bf16 %v2547, %v2544
        %v2622 = vpack.c.bf16 %v2555, %v2552
        %v2623 = vpack.c.bf16 %v2563, %v2560
        %v2624 = vpack.c.bf16 %v2571, %v2568
        %v2625 = vpack.c.bf16 %v2579, %v2576
        %v2626 = vpack.c.bf16 %v2587, %v2584
        %v2627 = vpack.c.bf16 %v2595, %v2592
        %v2628 = vpack.c.bf16 %v2603, %v2600
        %v2629 = vpack.c.bf16 %v2611, %v2608
        %v2646 = vunpack.c.l.b16 %v2614
        %v2647 = vunpack.c.h.b16 %v2614
        %v2648 = vunpack.c.l.b16 %v2615
        %v2649 = vunpack.c.h.b16 %v2615
        %v2650 = vunpack.c.l.b16 %v2616
        %v2651 = vunpack.c.h.b16 %v2616
        %v2652 = vunpack.c.l.b16 %v2617
        %v2653 = vunpack.c.h.b16 %v2617
        %v2654 = vunpack.c.l.b16 %v2618
        %v2655 = vunpack.c.h.b16 %v2618
        %v2656 = vunpack.c.l.b16 %v2619
        %v2657 = vunpack.c.h.b16 %v2619
        %v2658 = vunpack.c.l.b16 %v2620
        %v2659 = vunpack.c.h.b16 %v2620
        %v2660 = vunpack.c.l.b16 %v2621
        %v2661 = vunpack.c.h.b16 %v2621
        %v2662 = vunpack.c.l.b16 %v2622
        %v2663 = vunpack.c.h.b16 %v2622
        %v2664 = vunpack.c.l.b16 %v2623
        %v2665 = vunpack.c.h.b16 %v2623
        %v2666 = vunpack.c.l.b16 %v2624
        %v2667 = vunpack.c.h.b16 %v2624
        %v2668 = vunpack.c.l.b16 %v2625
        %v2669 = vunpack.c.h.b16 %v2625
        %v2670 = vunpack.c.l.b16 %v2626
        %v2671 = vunpack.c.h.b16 %v2626
        %v2672 = vunpack.c.l.b16 %v2627
        %v2673 = vunpack.c.h.b16 %v2627
        %v2674 = vunpack.c.l.b16 %v2628
        %v2675 = vunpack.c.h.b16 %v2628
        %v2676 = vunpack.c.l.b16 %v2629
        %v2677 = vunpack.c.h.b16 %v2629
        %v2678 = vpack.c.b16 %v2646, %v2646
        %v2679 = vpack.c.b16 %v2647, %v2647
        %v2680 = vpack.c.b16 %v2648, %v2648
        %v2681 = vpack.c.b16 %v2649, %v2649
        %v2682 = vpack.c.b16 %v2650, %v2650
        %v2683 = vpack.c.b16 %v2651, %v2651
        %v2684 = vpack.c.b16 %v2652, %v2652
        %v2685 = vpack.c.b16 %v2653, %v2653
        %v2686 = vpack.c.b16 %v2654, %v2654
        %v2687 = vpack.c.b16 %v2655, %v2655
        %v2688 = vpack.c.b16 %v2656, %v2656
        %v2689 = vpack.c.b16 %v2657, %v2657
        %v2690 = vpack.c.b16 %v2658, %v2658
        %v2691 = vpack.c.b16 %v2659, %v2659
        %v2692 = vpack.c.b16 %v2660, %v2660
        %v2693 = vpack.c.b16 %v2661, %v2661
        %v2694 = vpack.c.b16 %v2662, %v2662
        %v2695 = vpack.c.b16 %v2663, %v2663
        %v2696 = vpack.c.b16 %v2664, %v2664
        %v2697 = vpack.c.b16 %v2665, %v2665
        %v2698 = vpack.c.b16 %v2666, %v2666
        %v2699 = vpack.c.b16 %v2667, %v2667
        %v2700 = vpack.c.b16 %v2668, %v2668
        %v2701 = vpack.c.b16 %v2669, %v2669
        %v2702 = vpack.c.b16 %v2670, %v2670
        %v2703 = vpack.c.b16 %v2671, %v2671
        %v2704 = vpack.c.b16 %v2672, %v2672
        %v2705 = vpack.c.b16 %v2673, %v2673
        %v2706 = vpack.c.b16 %v2674, %v2674
        %v2707 = vpack.c.b16 %v2675, %v2675
        %v2708 = vpack.c.b16 %v2676, %v2676
        %v2709 = vpack.c.b16 %v2677, %v2677
        %2742 = vst [vmem:[%s234] sm:$0xf] %v2678
        %2743 = vst [vmem:[%s234 + $0x4] sm:$0xf] %v2679
        %2744 = vst [vmem:[%s234 + $0x8] sm:$0xf] %v2680
        %2745 = vst [vmem:[%s234 + $0xc] sm:$0xf] %v2681
        %2746 = vst [vmem:[%s234 + $0x10] sm:$0xf] %v2682
        %2747 = vst [vmem:[%s234 + $0x14] sm:$0xf] %v2683
        %2748 = vst [vmem:[%s234 + $0x18] sm:$0xf] %v2684
        %2749 = vst [vmem:[%s234 + $0x1c] sm:$0xf] %v2685
        %2750 = vst [vmem:[%s234 + $0x20] sm:$0xf] %v2686
        %2751 = vst [vmem:[%s234 + $0x24] sm:$0xf] %v2687
        %2752 = vst [vmem:[%s234 + $0x28] sm:$0xf] %v2688
        %2753 = vst [vmem:[%s234 + $0x2c] sm:$0xf] %v2689
        %2754 = vst [vmem:[%s234 + $0x30] sm:$0xf] %v2690
        %2755 = vst [vmem:[%s234 + $0x34] sm:$0xf] %v2691
        %2756 = vst [vmem:[%s234 + $0x38] sm:$0xf] %v2692
        %2757 = vst [vmem:[%s234 + $0x3c] sm:$0xf] %v2693
        %2758 = vst [vmem:[%s234 + $0x40] sm:$0xf] %v2694
        %2759 = vst [vmem:[%s234 + $0x44] sm:$0xf] %v2695
        %2760 = vst [vmem:[%s234 + $0x48] sm:$0xf] %v2696
        %2761 = vst [vmem:[%s234 + $0x4c] sm:$0xf] %v2697
        %2762 = vst [vmem:[%s234 + $0x50] sm:$0xf] %v2698
        %2763 = vst [vmem:[%s234 + $0x54] sm:$0xf] %v2699
        %2764 = vst [vmem:[%s234 + $0x58] sm:$0xf] %v2700
        %2765 = vst [vmem:[%s234 + $0x5c] sm:$0xf] %v2701
        %2766 = vst [vmem:[%s234 + $0x60] sm:$0xf] %v2702
        %2767 = vst [vmem:[%s234 + $0x64] sm:$0xf] %v2703
        %2768 = vst [vmem:[%s234 + $0x68] sm:$0xf] %v2704
        %2769 = vst [vmem:[%s234 + $0x6c] sm:$0xf] %v2705
        %2770 = vst [vmem:[%s234 + $0x70] sm:$0xf] %v2706
        %2771 = vst [vmem:[%s234 + $0x74] sm:$0xf] %v2707
        %2772 = vst [vmem:[%s234 + $0x78] sm:$0xf] %v2708
        %2773 = vst [vmem:[%s234 + $0x7c] sm:$0xf] %v2709
        %v2774 = vadd.f32 %v2488, %v2491
        %v2775 = vadd.f32 %v2774, %v2496
        %v2776 = vadd.f32 %v2775, %v2499
        %v2777 = vadd.f32 %v2776, %v2504
        %v2778 = vadd.f32 %v2777, %v2507
        %v2779 = vadd.f32 %v2778, %v2512
        %v2780 = vadd.f32 %v2779, %v2515
        %v2781 = vadd.f32 %v2780, %v2520
        %v2782 = vadd.f32 %v2781, %v2523
        %v2783 = vadd.f32 %v2782, %v2528
        %v2784 = vadd.f32 %v2783, %v2531
        %v2785 = vadd.f32 %v2784, %v2536
        %v2786 = vadd.f32 %v2785, %v2539
        %v2787 = vadd.f32 %v2786, %v2544
        %v2788 = vadd.f32 %v2787, %v2547
        %v2789 = vadd.f32 %v2788, %v2552
        %v2790 = vadd.f32 %v2789, %v2555
        %v2791 = vadd.f32 %v2790, %v2560
        %v2792 = vadd.f32 %v2791, %v2563
        %v2793 = vadd.f32 %v2792, %v2568
        %v2794 = vadd.f32 %v2793, %v2571
        %v2795 = vadd.f32 %v2794, %v2576
        %v2796 = vadd.f32 %v2795, %v2579
        %v2797 = vadd.f32 %v2796, %v2584
        %v2798 = vadd.f32 %v2797, %v2587
        %v2799 = vadd.f32 %v2798, %v2592
        %v2800 = vadd.f32 %v2799, %v2595
        %v2801 = vadd.f32 %v2800, %v2600
        %v2802 = vadd.f32 %v2801, %v2603
        %v2803 = vadd.f32 %v2802, %v2608
        %v2804 = vadd.f32 %v2803, %v2611
        %v2805 = vrot.slane %v2804, 4
        %v2806 = vadd.f32 %v2804, %v2805
        %v2807 = vrot.slane %v2806, 2
        %v2808 = vadd.f32 %v2806, %v2807
        %v2809 = vrot.slane %v2808, 1
        %v2810 = vadd.f32 %v2808, %v2809
        %2811 = vst [vmem:[%s240] sm:$0x1] %v2810
        %v2812 = vmul.f32 %v2488, %v2488
        %v2813 = vmul.f32 %v2491, %v2491
        %v2814 = vmul.f32 %v2496, %v2496
        %v2815 = vmul.f32 %v2499, %v2499
        %v2816 = vmul.f32 %v2504, %v2504
        %v2817 = vmul.f32 %v2507, %v2507
        %v2818 = vmul.f32 %v2512, %v2512
        %v2819 = vmul.f32 %v2515, %v2515
        %v2820 = vmul.f32 %v2520, %v2520
        %v2821 = vmul.f32 %v2523, %v2523
        %v2822 = vmul.f32 %v2528, %v2528
        %v2823 = vmul.f32 %v2531, %v2531
        %v2824 = vmul.f32 %v2536, %v2536
        %v2825 = vmul.f32 %v2539, %v2539
        %v2826 = vmul.f32 %v2544, %v2544
        %v2827 = vmul.f32 %v2547, %v2547
        %v2828 = vmul.f32 %v2552, %v2552
        %v2829 = vmul.f32 %v2555, %v2555
        %v2830 = vmul.f32 %v2560, %v2560
        %v2831 = vmul.f32 %v2563, %v2563
        %v2832 = vmul.f32 %v2568, %v2568
        %v2833 = vmul.f32 %v2571, %v2571
        %v2834 = vmul.f32 %v2576, %v2576
        %v2835 = vmul.f32 %v2579, %v2579
        %v2836 = vmul.f32 %v2584, %v2584
        %v2837 = vmul.f32 %v2587, %v2587
        %v2838 = vmul.f32 %v2592, %v2592
        %v2839 = vmul.f32 %v2595, %v2595
        %v2840 = vmul.f32 %v2600, %v2600
        %v2841 = vmul.f32 %v2603, %v2603
        %v2842 = vmul.f32 %v2608, %v2608
        %v2843 = vmul.f32 %v2611, %v2611
        %v2844 = vadd.f32 %v2812, %v2813
        %v2845 = vadd.f32 %v2844, %v2814
        %v2846 = vadd.f32 %v2845, %v2815
        %v2847 = vadd.f32 %v2846, %v2816
        %v2848 = vadd.f32 %v2847, %v2817
        %v2849 = vadd.f32 %v2848, %v2818
        %v2850 = vadd.f32 %v2849, %v2819
        %v2851 = vadd.f32 %v2850, %v2820
        %v2852 = vadd.f32 %v2851, %v2821
        %v2853 = vadd.f32 %v2852, %v2822
        %v2854 = vadd.f32 %v2853, %v2823
        %v2855 = vadd.f32 %v2854, %v2824
        %v2856 = vadd.f32 %v2855, %v2825
        %v2857 = vadd.f32 %v2856, %v2826
        %v2858 = vadd.f32 %v2857, %v2827
        %v2859 = vadd.f32 %v2858, %v2828
        %v2860 = vadd.f32 %v2859, %v2829
        %v2861 = vadd.f32 %v2860, %v2830
        %v2862 = vadd.f32 %v2861, %v2831
        %v2863 = vadd.f32 %v2862, %v2832
        %v2864 = vadd.f32 %v2863, %v2833
        %v2865 = vadd.f32 %v2864, %v2834
        %v2866 = vadd.f32 %v2865, %v2835
        %v2867 = vadd.f32 %v2866, %v2836
        %v2868 = vadd.f32 %v2867, %v2837
        %v2869 = vadd.f32 %v2868, %v2838
        %v2870 = vadd.f32 %v2869, %v2839
        %v2871 = vadd.f32 %v2870, %v2840
        %v2872 = vadd.f32 %v2871, %v2841
        %v2873 = vadd.f32 %v2872, %v2842
        %v2874 = vadd.f32 %v2873, %v2843
        %v2875 = vrot.slane %v2874, 4
        %v2876 = vadd.f32 %v2874, %v2875
        %v2877 = vrot.slane %v2876, 2
        %v2878 = vadd.f32 %v2876, %v2877
        %v2879 = vrot.slane %v2878, 1
        %v2880 = vadd.f32 %v2878, %v2879
        %2881 = vst [vmem:[%s246] sm:$0x1] %v2880
        %s2882 = sand.u32 %s81, 1
        %s2883 = scalar_lea.sflag [#allocation4], %s2882
        %s2884 = sand.u32 %s81, 1
        %s2885 = smul.addr %s2884, 128
        %s2886 = scalar_lea.vmem [#allocation7], %s2885
        %s2887 = sand.u32 %s26, 1
        %s2888 = scalar_lea.sflag [#allocation9], %s2887
        %s2889 = sand.u32 %s107, 1
        %s2890 = scalar_lea.vmem [#allocation8], %s2889
        %s2891 = sand.u32 %s26, 1
        %s2892 = scalar_lea.sflag [#allocation9], %s2891
        %s2893 = sand.u32 %s133, 1
        %s2894 = scalar_lea.vmem [#allocation10], %s2893
        // Predicated region
        $region37: #{basic_conv_forward.2} parent=27 // pred_check
          %p2895 = pneg %p91
        $region38: #{basic_conv_forward.2} parent=27 // pred_check_branch
          %2897 = sbr.rel (%p2895) target = $region40
        $region39: #{basic_conv_forward.2} parent=27 // pred_region
          %s2899 = ssub.s32 2048, 2048
          %2900 = vsyncadd %s2883, %s2899
          %s2901 = smul.addr %s26, 32
          %s2902 = smul.addr %s2901, 64
          %s2903 = scalar_lea.hbm %s2, %s2902
          %s2904 = sshll.u32 %s2886, 4
          %s2905 = int_to_ptr.vmem [resolvable:$true] %s2904
          %2910 = dma.vmem_to_hbm [thread:$0]  %s2905, 2048, %s2903, %s2883, 64, 64, 4
        $region40: #{basic_conv_forward.2} parent=27 // pred_fallthru
          _
        // Predicated region
        $region41: #{basic_conv_forward.2} parent=27 // pred_check
          %p2911 = pneg %p117
        $region42: #{basic_conv_forward.2} parent=27 // pred_check_branch
          %2913 = sbr.rel (%p2911) target = $region44
        $region43: #{basic_conv_forward.2} parent=27 // pred_region
          %s2915 = ssub.s32 16, 16
          %2916 = vsyncadd %s2888, %s2915
          %s2917 = smul.addr %s26, 16
          %s2918 = scalar_lea.hbm %s3, %s2917
          %s2920 = sshll.u32 %s2890, 4
          %s2921 = int_to_ptr.vmem [resolvable:$true] %s2920
          %2923 = dma.vmem_to_hbm [thread:$0]  %s2921, 16, %s2918, %s2888
        $region44: #{basic_conv_forward.2} parent=27 // pred_fallthru
          _
        // Predicated region
        $region45: #{basic_conv_forward.2} parent=27 // pred_check
          %p2924 = pneg %p143
        $region46: #{basic_conv_forward.2} parent=27 // pred_check_branch
          %2926 = sbr.rel (%p2924) target = $region48
        $region47: #{basic_conv_forward.2} parent=27 // pred_region
          %s2928 = ssub.s32 16, 16
          %2929 = vsyncadd %s2892, %s2928
          %s2930 = smul.addr %s26, 16
          %s2931 = scalar_lea.hbm %s4, %s2930
          %s2933 = sshll.u32 %s2894, 4
          %s2934 = int_to_ptr.vmem [resolvable:$true] %s2933
          %2936 = dma.vmem_to_hbm [thread:$0]  %s2934, 16, %s2931, %s2892
        $region48: #{basic_conv_forward.2} parent=27 // pred_fallthru
          _
      $region28: #{basic_conv_forward.2} parent=5 // pred_fallthru
        _
      %p2937 = scmp.le.s32.totalorder 2, %s21
      // Predicated region
      $region49: #{basic_conv_forward.2} parent=5 // pred_check
        %p2938 = pneg %p2937
      $region50: #{basic_conv_forward.2} parent=5 // pred_check_branch
        %2940 = sbr.rel (%p2938) target = $region52
      $region51: #{basic_conv_forward.2} parent=5 // pred_region
        %s2941 = ssub.s32 %s21, 2
        // Predicated region
        $region53: #{basic_conv_forward.2} parent=51 // pred_check
          %p2942 = pneg %p97
        $region54: #{basic_conv_forward.2} parent=51 // pred_check_branch
          %2944 = sbr.rel (%p2942) target = $region56
        $region55: #{basic_conv_forward.2} parent=51 // pred_region
          %s2945 = sand.u32 %s82, 1
          %s2946 = scalar_lea.sflag [#allocation4], %s2945
          %s2947 = sand.u32 %s82, 1
          %s2948 = smul.addr %s2947, 128
          %s2949 = scalar_lea.vmem [#allocation7], %s2948
          %2950 = dma.done %s2946, 2048
        $region56: #{basic_conv_forward.2} parent=51 // pred_fallthru
          _
        // Predicated region
        $region57: #{basic_conv_forward.2} parent=51 // pred_check
          %p2951 = pneg %p123
        $region58: #{basic_conv_forward.2} parent=51 // pred_check_branch
          %2953 = sbr.rel (%p2951) target = $region60
        $region59: #{basic_conv_forward.2} parent=51 // pred_region
          %s2954 = sand.u32 %s27, 1
          %s2955 = scalar_lea.sflag [#allocation9], %s2954
          %s2956 = sand.u32 %s108, 1
          %s2957 = scalar_lea.vmem [#allocation8], %s2956
          %2958 = dma.done %s2955, 16
        $region60: #{basic_conv_forward.2} parent=51 // pred_fallthru
          _
        // Predicated region
        $region61: #{basic_conv_forward.2} parent=51 // pred_check
          %p2959 = pneg %p149
        $region62: #{basic_conv_forward.2} parent=51 // pred_check_branch
          %2961 = sbr.rel (%p2959) target = $region64
        $region63: #{basic_conv_forward.2} parent=51 // pred_region
          %s2962 = sand.u32 %s27, 1
          %s2963 = scalar_lea.sflag [#allocation9], %s2962
          %s2964 = sand.u32 %s134, 1
          %s2965 = scalar_lea.vmem [#allocation10], %s2964
          %2966 = dma.done %s2963, 16
        $region64: #{basic_conv_forward.2} parent=51 // pred_fallthru
          _
      $region52: #{basic_conv_forward.2} parent=5 // pred_fallthru
        _
    $region6: #{basic_conv_forward.2} parent=1 // loop_footer
      %s25 = sadd.s32 1, %s21
    $region7: #{basic_conv_forward.2} parent=1 // loop_footer_branch
      %20 = sbr.rel target = $region3
    $region8: #{basic_conv_forward.2} parent=1 // loop_exit
      _
    %2967 = vsyncpa [#allocation3], 1
    %s2968 = scalar_lea.sflag [#allocation3], 1
    %2969 = vsyncpa %s2968, 1
    %2970 = vsyncpa [#allocation6], 1
    %2971 = vsyncpa [#allocation4], 1
    %s2972 = scalar_lea.sflag [#allocation4], 1
    %2973 = vsyncpa %s2972, 1
    %2974 = vsyncpa [#allocation9], 1
    %s2975 = scalar_lea.sflag [#allocation9], 1
    %2976 = vsyncpa %s2975, 1

</llo_original>
